<compile_context>
chip_gen: v5e
topology: v5e:2x2
jax: 0.10.0
libtpu: 0.0.40
codegen_flags: <defaults>
</compile_context>

<pallas_src>
import math
import functools

import jax
import jax.numpy as jnp
from jax import lax
from jax.experimental import pallas as pl
from jax.experimental.pallas import tpu as pltpu


# ---------------------------------------------------------------------------
# Kernel
# ---------------------------------------------------------------------------
def _sdpa_kernel(*refs, scale, relpos_mode):
    """One grid step: a batch of (S, dk) causal-attention blocks in VMEM.

    relpos_mode: None       -> plain causal attention (module default)
                 "fused"    -> refs = (q, k, v, krel(dk,S), out)
                 "stream"   -> refs = (q, k, v, bias(BB,S,S), out)
    """
    if relpos_mode == "fused":
        q_ref, k_ref, v_ref, krel_ref, o_ref = refs
    elif relpos_mode == "stream":
        q_ref, k_ref, v_ref, bias_ref, o_ref = refs
    else:
        q_ref, k_ref, v_ref, o_ref = refs

    # Fold the 1/sqrt(dk) scale into Q: S*dk VPU work instead of S*S.
    # (For bf16 inputs this rounds q*scale in bf16 before the matmul, a tiny
    #  documented deviation from the reference which scales the f32 scores.)
    q = q_ref[...] * scale                       # (BB, S, dk)
    k = k_ref[...]
    v = v_ref[...]
    bb, seq, dk = q.shape

    # Scores via a batched contraction on the last axis (no explicit K
    # transpose; NT contraction maps to the MXU directly).
    s = jnp.einsum("bqd,bkd->bqk", q, k,
                   preferred_element_type=jnp.float32)       # (BB, S, S) f32

    if relpos_mode == "fused":
        # Relative-position bias computed in-kernel:
        #   QP = (scaled q) @ Krelpos'   (MXU matmul, Krelpos' resident in VMEM)
        # followed by the Transformer-XL rel-shift as a strided lane rotation:
        # row i of the bias is row i of QP rotated right by i.  Krelpos'
        # columns were pre-rotated by one on the host so in-kernel rotation
        # amounts stay in [0, S).  Values rotated into the upper triangle are
        # garbage but the causal mask below removes them.
        qp = jnp.dot(q.reshape(bb * seq, dk), krel_ref[...],
                     preferred_element_type=jnp.float32)
        qp = qp.reshape(bb, seq, seq)
        qp = pltpu.roll(qp, 0, axis=2, stride=1, stride_axis=1)
        s = s + qp
    elif relpos_mode == "stream":
        # Fallback for sizeSeq not 128-aligned: bias (already scaled) streamed
        # from HBM.
        s = s + bias_ref[...].astype(jnp.float32)

    # Causal mask generated in-kernel (iota + VPU compare; no HBM stream).
    row = lax.broadcasted_iota(jnp.int32, (seq, seq), 0)
    col = lax.broadcasted_iota(jnp.int32, (seq, seq), 1)
    s = jnp.where((col <= row)[None, :, :], s, -jnp.inf)

    # Softmax in f32.  The diagonal is never masked, so every row -- including
    # padded zero rows/blocks -- has denom >= 1 and no 0/0 NaN can appear.
    m = jnp.max(s, axis=-1, keepdims=True)
    e = jnp.exp(s - m)                                        # (BB, S, S)
    denom = jnp.sum(e, axis=-1, keepdims=True)                # (BB, S, 1)

    # Normalize AFTER the PV matmul: the per-row scale commutes with the
    # matmul, so this is an S*dk multiply instead of S*S and drops one live
    # (BB, S, S) f32 temporary.  Exact division (no approx-reciprocal error).
    out = jnp.einsum("bqk,bkd->bqd", e.astype(v.dtype), v,
                     preferred_element_type=jnp.float32)      # (BB, S, dk)
    out = out / denom
    o_ref[...] = out.astype(o_ref.dtype)


# ---------------------------------------------------------------------------
# Generation-aware tiling
# ---------------------------------------------------------------------------
def _tpu_vmem_and_cores():
    """Best-effort query: per-core VMEM bytes and whether the part is multi-TC."""
    vmem_cap = 64 * 1024 * 1024          # conservative default (v7x-sized)
    try:
        vmem_cap = int(pltpu.get_tpu_info().vmem_capacity_bytes)
    except Exception:
        pass
    kind = ""
    try:
        kind = jax.devices()[0].device_kind.lower()
    except Exception:
        pass
    # v4 / v5p / v7x expose two TensorCores per device; v5e / v6e are 1-TC.
    multi_tc = any(tag in kind for tag in ("v4", "v5p", "v7", "tpu7"))
    return vmem_cap, multi_tc


def _choose_tiling(B, S, dk, itemsize, relpos_mode):
    """Pick (block_batch, num_grid_steps, vmem_limit_bytes)."""
    vmem_cap, multi_tc = _tpu_vmem_and_cores()

    # Per-attention-block working set:
    #   * Q/K/V/O tiles, double-buffered by the BlockSpec pipeline
    #   * live f32 transients inside the body: scores, exp, prob cast, f32 out,
    #     (+ relpos QP)  ->  ~5-6 x S*S*4 + 2 x S*dk*4
    io_per_block = 4 * S * dk * itemsize * 2
    if relpos_mode == "stream":
        io_per_block += 2 * S * S * itemsize          # streamed bias tile
    n_sxs = 6 if relpos_mode is not None else 5
    trans_per_block = n_sxs * S * S * 4 + 2 * S * dk * 4
    per_block = io_per_block + trans_per_block

    fixed = 2 * S * S * 4                             # iota row/col masks
    if relpos_mode == "fused":
        fixed += 2 * dk * S * itemsize                # resident Krelpos tile

    # ~45% of physical per-core VMEM for the tile set (128 MiB on v5e/v6e,
    # 64 MiB per TensorCore on v7x), leaving headroom for compiler scratch.
    budget = int(vmem_cap * 0.45) - fixed
    bb = max(1, min(B, budget // per_block))

    if multi_tc and B >= 2:
        # v7x / megacore: shard the "parallel" block axis across both cores
        # with an even step count so neither core idles on an odd tail tile.
        steps = max(2, pl.cdiv(B, bb))
        if steps % 2:
            steps += 1
        bb = pl.cdiv(B, steps)
        num_steps = steps
    else:
        # Single-TC (v5e/v6e): never shrink the tile for "core sharding"; only
        # keep a few steps for DMA/compute overlap when there is enough work.
        if B >= 8:
            bb = min(bb, pl.cdiv(B, 4))
        num_steps = pl.cdiv(B, bb)

    needed = fixed + per_block * bb
    vmem_limit = int(min(vmem_cap * 0.9, max(needed + (8 << 20), 32 << 20)))
    return bb, num_steps, vmem_limit


# ---------------------------------------------------------------------------
# pallas_call wrapper
# ---------------------------------------------------------------------------
def _attention_blocks(qb, kb, vb, krel=None, bias=None, *, block_batch=None):
    """qb/kb/vb: (B, S, dk) blocks; krel: (dk, S) fused table; bias: (B, S, S)."""
    B, S, dk = qb.shape
    relpos_mode = "fused" if krel is not None else ("stream" if bias is not None else None)
    itemsize = jnp.dtype(qb.dtype).itemsize
    bb, num_steps, vmem_limit = _choose_tiling(B, S, dk, itemsize, relpos_mode)
    if block_batch is not None:                      # test hook
        bb = block_batch
        num_steps = pl.cdiv(B, bb)

    # Pad the block axis with zero blocks so every tile is dense.  Padded
    # blocks are harmless: the causal diagonal stays unmasked, so their softmax
    # is well defined (denom >= 1) and their zero outputs are sliced away.
    B_pad = num_steps * bb
    if B_pad != B:
        pad = B_pad - B

        def _pad(x):
            return jnp.concatenate(
                [x, jnp.zeros((pad,) + x.shape[1:], x.dtype)], axis=0)

        qb, kb, vb = _pad(qb), _pad(kb), _pad(vb)
        if bias is not None:
            bias = _pad(bias)

    scale = 1.0 / math.sqrt(dk)
    kernel = functools.partial(_sdpa_kernel, scale=scale, relpos_mode=relpos_mode)

    in_specs = [
        pl.BlockSpec((bb, S, dk), lambda b: (b, 0, 0)),   # Q
        pl.BlockSpec((bb, S, dk), lambda b: (b, 0, 0)),   # K
        pl.BlockSpec((bb, S, dk), lambda b: (b, 0, 0)),   # V
    ]
    inputs = [qb, kb, vb]
    if relpos_mode == "fused":
        # Tiny (dk, S) table with a constant index map: DMA'd once, resident in
        # VMEM for the whole grid -- no (B, S, S) bias stream from HBM.
        in_specs.append(pl.BlockSpec((dk, S), lambda b: (0, 0)))
        inputs.append(krel.astype(qb.dtype))
    elif relpos_mode == "stream":
        in_specs.append(pl.BlockSpec((bb, S, S), lambda b: (b, 0, 0)))
        inputs.append(bias)

    # TODO(synk): if xprof still shows exposed DMA after the budget fix, add
    # pipeline_mode=pl.Buffered(3) to the Q/K/V specs (and account the extra
    # buffer in _choose_tiling).
    out = pl.pallas_call(
        kernel,
        out_shape=jax.ShapeDtypeStruct((B_pad, S, dk), qb.dtype),
        grid=(num_steps,),
        in_specs=in_specs,
        out_specs=pl.BlockSpec((bb, S, dk), lambda b: (b, 0, 0)),
        compiler_params=pltpu.CompilerParams(
            dimension_semantics=("parallel",),
            vmem_limit_bytes=vmem_limit),
    )(*inputs)
    return out[:B] if B_pad != B else out


# ---------------------------------------------------------------------------
# Module
# ---------------------------------------------------------------------------
class ScaledDotProductAttention:
    """JAX/Pallas port of the PyTorch module (eval mode: dropout == identity)."""

    def __init__(self, sizeSeq, dk, dropout, relpos=False, key=None):
        del dropout  # TODO(synk): training-mode dropout on the attention matrix not implemented
        self.sizeSeq = sizeSeq
        self.dk = dk
        self.relpos = relpos
        if relpos:
            stdv = 1.0 / math.sqrt(dk)    # initmat_ with dim=0 -> size dk
            key = jax.random.PRNGKey(42) if key is None else key
            self.Krelpos = jax.random.uniform(
                key, (dk, sizeSeq), jnp.float32, minval=-stdv, maxval=stdv)

    def prepare(self, x):
        N, S, k = x.shape
        r = S % self.sizeSeq
        if r > 0:
            pad = self.sizeSeq - r
            x = jnp.concatenate([x, jnp.zeros((N, pad, k), x.dtype)], axis=1)
            S += pad
        return x.reshape(N * (S // self.sizeSeq), self.sizeSeq, k)

    def _relpos_bias_stream(self, Qb):
        # Fallback for sizeSeq not 128-aligned: build the (B, S, S) bias in XLA
        # with the exact concat/reshape rel-shift of the PyTorch module (scale
        # folded into Krelpos so the kernel can add it directly).
        B = Qb.shape[0]
        S = self.sizeSeq
        QP = jnp.einsum("bsd,dt->bst", Qb,
                        self.Krelpos * (1.0 / math.sqrt(self.dk)))
        z = jnp.zeros((B, S, 1), QP.dtype)                      # buffer `z`
        QP = jnp.concatenate([z, QP], axis=2)                   # (B, S, S+1)
        return QP.reshape(B, S + 1, S)[:, 1:, :]                # rel-shift

    def __call__(self, Q, K, V, *, block_batch=None):
        N, S, k = Q.shape
        Qb, Kb, Vb = self.prepare(Q), self.prepare(K), self.prepare(V)
        krel = bias = None
        if self.relpos:
            if self.sizeSeq % 128 == 0:
                # Fused path: columns pre-rotated by one so the in-kernel
                # strided roll uses per-row amounts 0..sizeSeq-1.
                krel = jnp.roll(self.Krelpos, 1, axis=1)
            else:
                # TODO(synk): lane-sparse sizeSeq (<128) keeps the streamed
                # bias; packing several blocks along lanes would fix this.
                bias = self._relpos_bias_stream(Qb)
        out = _attention_blocks(Qb, Kb, Vb, krel=krel, bias=bias,
                                block_batch=block_batch)
        return out.reshape(N, -1, k)[:, :S]


# ---------------------------------------------------------------------------
# Pure-JAX reference (reproduces the PyTorch forward exactly)
# ---------------------------------------------------------------------------
def _reference(attn, Q, K, V):
    HI = jax.lax.Precision.HIGHEST
    N, S, k = Q.shape
    Qb, Kb, Vb = attn.prepare(Q), attn.prepare(K), attn.prepare(V)
    QK = jnp.einsum("bik,bjk->bij", Qb, Kb, precision=HI)
    if attn.relpos:
        B = Qb.shape[0]
        QP = jnp.einsum("bsd,dt->bst", Qb, attn.Krelpos, precision=HI)
        z = jnp.zeros((B, attn.sizeSeq, 1), QP.dtype)
        QP = jnp.concatenate([z, QP], axis=2)
        QK = QK + QP.reshape(B, attn.sizeSeq + 1, attn.sizeSeq)[:, 1:, :]
    tril = jnp.tril(jnp.ones((attn.sizeSeq, attn.sizeSeq), jnp.float32))
    mask = jnp.where(tril == 1.0, 0.0, -jnp.inf)
    s = QK / math.sqrt(Kb.shape[-1]) + mask[None]
    m = jnp.max(s, axis=-1, keepdims=True)
    e = jnp.exp(s - m)
    A = e / jnp.sum(e, axis=-1, keepdims=True)
    out = jnp.einsum("bij,bjk->bik", A, Vb, precision=HI)
    return out.reshape(N, -1, k)[:, :S]


if __name__ == "__main__":
    TOL = dict(atol=3e-3, rtol=3e-3)
    # sizeSeq = dk = 128 keeps score/output tiles lane-dense (no masked partial
    # stores) and fills the MXU; these are the production-like block sizes.
    sizeSeq, dk = 128, 128

    # Case 1: relpos=False (module default); S not a multiple of sizeSeq, so
    # the sequence-padding path is exercised (B = 6 blocks).
    N, S = 2, 300
    kq, kk, kv = jax.random.split(jax.random.PRNGKey(0), 3)
    Q = jax.random.normal(kq, (N, S, dk), jnp.float32)
    K = jax.random.normal(kk, (N, S, dk), jnp.float32)
    V = jax.random.normal(kv, (N, S, dk), jnp.float32)
    attn = ScaledDotProductAttention(sizeSeq, dk, dropout=0.0, relpos=False)
    out = attn(Q, K, V)
    jax.block_until_ready(out)
    assert out.shape == (N, S, dk)
    assert jnp.allclose(out, _reference(attn, Q, K, V), **TOL)

    # Case 2: relpos=True with the fused in-kernel bias (resident Krelpos +
    # strided-roll rel-shift; no (B,S,S) bias stream).
    N2, S2 = 3, 256
    k2q, k2k, k2v = jax.random.split(jax.random.PRNGKey(1), 3)
    Q2 = jax.random.normal(k2q, (N2, S2, dk), jnp.float32)
    K2 = jax.random.normal(k2k, (N2, S2, dk), jnp.float32)
    V2 = jax.random.normal(k2v, (N2, S2, dk), jnp.float32)
    attn_rp = ScaledDotProductAttention(sizeSeq, dk, dropout=0.0, relpos=True)
    out_rp = attn_rp(Q2, K2, V2)
    jax.block_until_ready(out_rp)
    assert out_rp.shape == (N2, S2, dk)
    assert jnp.allclose(out_rp, _reference(attn_rp, Q2, K2, V2), **TOL)

    # Case 3: force a small block-batch so the zero-block padding path and a
    # multi-step "parallel" grid are exercised (B=6 -> padded to 8, 2 steps).
    out_pad = attn(Q, K, V, block_batch=4)
    jax.block_until_ready(out_pad)
    assert jnp.allclose(out_pad, _reference(attn, Q, K, V), **TOL)

    print("KERNEL_OK")
</pallas_src>

<mosaic_0001>
module attributes {stable_mosaic.version = 11 : i64} {
  func.func @_sdpa_kernel(%arg0: i32, %arg1: memref<6x128x128xf32, #tpu.memory_space<vmem>>, %arg2: memref<6x128x128xf32, #tpu.memory_space<vmem>>, %arg3: memref<6x128x128xf32, #tpu.memory_space<vmem>>, %arg4: memref<6x128x128xf32, #tpu.memory_space<vmem>>) attributes {dimension_semantics = [#tpu.dimension_semantics<parallel>], iteration_bounds = array<i64: 1>, scalar_prefetch = 0 : i64, scratch_operands = 0 : i64, tpu.core_type = #tpu.core_type<tc>, window_params = [{transform_indices = @transform_0, window_bounds = array<i64: 6, 128, 128>}, {transform_indices = @transform_1, window_bounds = array<i64: 6, 128, 128>}, {transform_indices = @transform_2, window_bounds = array<i64: 6, 128, 128>}, {transform_indices = @transform_3, window_bounds = array<i64: 6, 128, 128>}]} {
    %c0 = arith.constant 0 : index
    %c0_0 = arith.constant 0 : index
    %c0_1 = arith.constant 0 : index
    %0 = vector.load %arg1[%c0, %c0_0, %c0_1] : memref<6x128x128xf32, #tpu.memory_space<vmem>>, vector<6x128x128xf32>
    %cst = arith.constant 0.0883883461 : f32
    %1 = vector.broadcast %cst : f32 to vector<6x128x128xf32>
    %2 = arith.mulf %0, %1 : vector<6x128x128xf32>
    %c0_2 = arith.constant 0 : index
    %c0_3 = arith.constant 0 : index
    %c0_4 = arith.constant 0 : index
    %3 = vector.load %arg2[%c0_2, %c0_3, %c0_4] : memref<6x128x128xf32, #tpu.memory_space<vmem>>, vector<6x128x128xf32>
    %c0_5 = arith.constant 0 : index
    %c0_6 = arith.constant 0 : index
    %c0_7 = arith.constant 0 : index
    %4 = vector.load %arg3[%c0_5, %c0_6, %c0_7] : memref<6x128x128xf32, #tpu.memory_space<vmem>>, vector<6x128x128xf32>
    "tpu.trace_start"() <{level = 10 : i32, message = "bqd,bkd->bqk"}> : () -> ()
    %cst_8 = arith.constant dense<0.000000e+00> : vector<6x128x128xf32>
    %5 = tpu.matmul %2, %3, %cst_8 {dimension_numbers = #tpu.dot_dimension_numbers<[2], [2], [1], [1], [0, 0, 0, 1, 1, 1], [0], [0]>} : vector<6x128x128xf32>, vector<6x128x128xf32>, vector<6x128x128xf32> -> vector<6x128x128xf32>
    "tpu.trace_stop"() : () -> ()
    %6 = tpu.iota {dimensions = array<i32: 0>} : vector<128x128xi32>
    %7 = tpu.iota {dimensions = array<i32: 1>} : vector<128x128xi32>
    %8 = arith.cmpi sle, %7, %6 : vector<128x128xi32>
    %9 = vector.shape_cast %8 : vector<128x128xi1> to vector<1x128x128xi1>
    %cst_9 = arith.constant 0xFF800000 : f32
    %10 = vector.shape_cast %9 : vector<1x128x128xi1> to vector<1x128x128xi1>
    %11 = vector.broadcast %10 : vector<1x128x128xi1> to vector<6x128x128xi1>
    %12 = vector.broadcast %cst_9 : f32 to vector<6x128x128xf32>
    %13 = arith.select %11, %5, %12 : vector<6x128x128xi1>, vector<6x128x128xf32>
    %cst_10 = arith.constant dense<0xFF800000> : vector<6x128xf32>
    %14 = vector.multi_reduction <maximumf>, %13, %cst_10 [2] : vector<6x128x128xf32> to vector<6x128xf32>
    %15 = vector.shape_cast %14 : vector<6x128xf32> to vector<6x128x1xf32>
    %16 = vector.broadcast %15 : vector<6x128x1xf32> to vector<6x128x128xf32>
    %17 = arith.subf %13, %16 : vector<6x128x128xf32>
    %18 = math.exp %17 : vector<6x128x128xf32>
    %cst_11 = arith.constant dense<0.000000e+00> : vector<6x128xf32>
    %19 = vector.multi_reduction <add>, %18, %cst_11 [2] : vector<6x128x128xf32> to vector<6x128xf32>
    %20 = vector.shape_cast %19 : vector<6x128xf32> to vector<6x128x1xf32>
    "tpu.trace_start"() <{level = 10 : i32, message = "bqk,bkd->bqd"}> : () -> ()
    %cst_12 = arith.constant dense<0.000000e+00> : vector<6x128x128xf32>
    %21 = tpu.matmul %18, %4, %cst_12 {dimension_numbers = #tpu.dot_dimension_numbers<[2], [1], [1], [2], [0, 0, 0, 1, 1, 2], [0], [0]>} : vector<6x128x128xf32>, vector<6x128x128xf32>, vector<6x128x128xf32> -> vector<6x128x128xf32>
    "tpu.trace_stop"() : () -> ()
    %22 = vector.broadcast %20 : vector<6x128x1xf32> to vector<6x128x128xf32>
    %23 = arith.divf %21, %22 : vector<6x128x128xf32>
    %c0_13 = arith.constant 0 : index
    %c0_14 = arith.constant 0 : index
    %c0_15 = arith.constant 0 : index
    %24 = vector.load %arg4[%c0_13, %c0_14, %c0_15] : memref<6x128x128xf32, #tpu.memory_space<vmem>>, vector<6x128x128xf32>
    tpu.vector_store %arg4[%c0_13, %c0_14, %c0_15], %23 {strides = array<i32>} : memref<6x128x128xf32, #tpu.memory_space<vmem>>, vector<6x128x128xf32>,
    return
  }
  func.func @transform_0(%arg0: i32) -> (i32, i32, i32) {
    %c0_i32 = arith.constant 0 : i32
    %c0_i32_0 = arith.constant 0 : i32
    %c0_i32_1 = arith.constant 0 : i32
    return %arg0, %c0_i32, %c0_i32_0 : i32, i32, i32
  }
  func.func @transform_1(%arg0: i32) -> (i32, i32, i32) {
    %c0_i32 = arith.constant 0 : i32
    %c0_i32_0 = arith.constant 0 : i32
    %c0_i32_1 = arith.constant 0 : i32
    return %arg0, %c0_i32, %c0_i32_0 : i32, i32, i32
  }
  func.func @transform_2(%arg0: i32) -> (i32, i32, i32) {
    %c0_i32 = arith.constant 0 : i32
    %c0_i32_0 = arith.constant 0 : i32
    %c0_i32_1 = arith.constant 0 : i32
    return %arg0, %c0_i32, %c0_i32_0 : i32, i32, i32
  }
  func.func @transform_3(%arg0: i32) -> (i32, i32, i32) {
    %c0_i32 = arith.constant 0 : i32
    %c0_i32_0 = arith.constant 0 : i32
    %c0_i32_1 = arith.constant 0 : i32
    return %arg0, %c0_i32, %c0_i32_0 : i32, i32, i32
  }
}

</mosaic_0001>

<llo_original>
// kernel: tpu_custom_call.1
$region0: #{tpu_custom_call.1}
  #allocation0 [shape = 'u32[]', space=smem, size = 0x4, offset = 0x4, fixed_abs, tag = 'smem constant byte address 0x4 - core index']
  #allocation1 [shape = 'u32[72,128]{1,0:T(1,128)}', space=vmem, size = 0x9000, scoped, tag = 'internal scratch']
  %s0 = inlined_call_operand.hbm [shape: f32[6,128,128], index: 0, kind: input, shape index: {}]
  %s1 = inlined_call_operand.hbm [shape: f32[6,128,128], index: 1, kind: input, shape index: {}]
  %s2 = inlined_call_operand.hbm [shape: f32[6,128,128], index: 2, kind: input, shape index: {}]
  %s3 = inlined_call_operand.hbm [shape: f32[6,128,128], index: 3, kind: output, shape index: {}]
  %s4 = sld [smem:[#allocation0]]
  $region34: #{tpu_custom_call.1} parent=0
    _
  %s6 = ssub.s32 1, %s4
  %s7 = scalar_select 0, %s6, %s4
  $region1: #{tpu_custom_call.1} parent=0
    #allocation2 [shape = 'u8[393216]{0}', space=vmem, size = 0x60000, scoped, tag = 'input window, operand 0, single buffered']
    #allocation3 [shape = 's32[1]{0}', space=sflag, size = 0x4, scoped, tag = 'scoped memory for tpu_custom_call.1']
    #allocation4 [shape = 's32[1]{0}', space=sflag, size = 0x4, scoped, tag = 'scoped memory for tpu_custom_call.1']
    #allocation5 [shape = 'u8[393216]{0}', space=vmem, size = 0x60000, scoped, tag = 'input window, operand 1, single buffered']
    #allocation6 [shape = 's32[1]{0}', space=sflag, size = 0x4, scoped, tag = 'scoped memory for tpu_custom_call.1']
    #allocation7 [shape = 'u8[393216]{0}', space=vmem, size = 0x60000, scoped, tag = 'input window, operand 2, single buffered']
    #allocation8 [shape = 'u8[393216]{0}', space=vmem, size = 0x60000, scoped, tag = 'output window, operand 0, single buffered']
    %8 = vsyncpa [#allocation3], 0
    %9 = vsyncpa [#allocation6], 0
    %10 = vsyncpa [#allocation4], 0
    // Predicated region
    $region2: #{tpu_custom_call.1} parent=1 // pred_check
      _
    $region3: #{tpu_custom_call.1} parent=1 // pred_check_branch
      %12 = sbr.rel (0) target = $region5
    $region4: #{tpu_custom_call.1} parent=1 // pred_region
      %14 = vsyncadd [#allocation3], 0
      %s15 = sshll.u32 %s0, 4
      %s16 = int_to_ptr.hbm [resolvable:$true] %s15
      %s17 = sshll.u32 [#allocation2], 4
      %s18 = int_to_ptr.vmem [resolvable:$true] %s17
      %23 = dma.hbm_to_vmem [thread:$0]  %s16, 12288, %s18, [#allocation3], 128, 128, 8
    $region5: #{tpu_custom_call.1} parent=1 // pred_fallthru
      _
    // Predicated region
    $region6: #{tpu_custom_call.1} parent=1 // pred_check
      _
    $region7: #{tpu_custom_call.1} parent=1 // pred_check_branch
      %25 = sbr.rel (0) target = $region9
    $region8: #{tpu_custom_call.1} parent=1 // pred_region
      %27 = vsyncadd [#allocation6], 0
      %s28 = sshll.u32 %s1, 4
      %s29 = int_to_ptr.hbm [resolvable:$true] %s28
      %s30 = sshll.u32 [#allocation5], 4
      %s31 = int_to_ptr.vmem [resolvable:$true] %s30
      %36 = dma.hbm_to_vmem [thread:$0]  %s29, 12288, %s31, [#allocation6], 128, 128, 8
    $region9: #{tpu_custom_call.1} parent=1 // pred_fallthru
      _
    // Predicated region
    $region10: #{tpu_custom_call.1} parent=1 // pred_check
      _
    $region11: #{tpu_custom_call.1} parent=1 // pred_check_branch
      %38 = sbr.rel (0) target = $region13
    $region12: #{tpu_custom_call.1} parent=1 // pred_region
      %40 = vsyncadd [#allocation6], 0
      %s41 = sshll.u32 %s2, 4
      %s42 = int_to_ptr.hbm [resolvable:$true] %s41
      %s43 = sshll.u32 [#allocation7], 4
      %s44 = int_to_ptr.vmem [resolvable:$true] %s43
      %49 = dma.hbm_to_vmem [thread:$0]  %s42, 12288, %s44, [#allocation6], 128, 128, 8
    $region13: #{tpu_custom_call.1} parent=1 // pred_fallthru
      _
    // Predicated region
    $region14: #{tpu_custom_call.1} parent=1 // pred_check
      _
    $region15: #{tpu_custom_call.1} parent=1 // pred_check_branch
      %51 = sbr.rel (0) target = $region17
    $region16: #{tpu_custom_call.1} parent=1 // pred_region
      %53 = dma.done [#allocation3], 12288
    $region17: #{tpu_custom_call.1} parent=1 // pred_fallthru
      _
    // Predicated region
    $region18: #{tpu_custom_call.1} parent=1 // pred_check
      _
    $region19: #{tpu_custom_call.1} parent=1 // pred_check_branch
      %55 = sbr.rel (0) target = $region21
    $region20: #{tpu_custom_call.1} parent=1 // pred_region
      %57 = dma.done [#allocation6], 12288
    $region21: #{tpu_custom_call.1} parent=1 // pred_fallthru
      _
    // Predicated region
    $region22: #{tpu_custom_call.1} parent=1 // pred_check
      _
    $region23: #{tpu_custom_call.1} parent=1 // pred_check_branch
      %59 = sbr.rel (0) target = $region25
    $region24: #{tpu_custom_call.1} parent=1 // pred_region
      %61 = dma.done [#allocation6], 12288
    $region25: #{tpu_custom_call.1} parent=1 // pred_fallthru
      _
    %v62 = vld [vmem:[#allocation2] sm:$0xff]
    %v63 = vld [vmem:[#allocation2 + $0x8] sm:$0xff]
    %v64 = vld [vmem:[#allocation2 + $0x10] sm:$0xff]
    %v65 = vld [vmem:[#allocation2 + $0x18] sm:$0xff]
    %v66 = vld [vmem:[#allocation2 + $0x20] sm:$0xff]
    %v67 = vld [vmem:[#allocation2 + $0x28] sm:$0xff]
    %v68 = vld [vmem:[#allocation2 + $0x30] sm:$0xff]
    %v69 = vld [vmem:[#allocation2 + $0x38] sm:$0xff]
    %v70 = vld [vmem:[#allocation2 + $0x40] sm:$0xff]
    %v71 = vld [vmem:[#allocation2 + $0x48] sm:$0xff]
    %v72 = vld [vmem:[#allocation2 + $0x50] sm:$0xff]
    %v73 = vld [vmem:[#allocation2 + $0x58] sm:$0xff]
    %v74 = vld [vmem:[#allocation2 + $0x60] sm:$0xff]
    %v75 = vld [vmem:[#allocation2 + $0x68] sm:$0xff]
    %v76 = vld [vmem:[#allocation2 + $0x70] sm:$0xff]
    %v77 = vld [vmem:[#allocation2 + $0x78] sm:$0xff]
    %v78 = vld [vmem:[#allocation2 + $0x80] sm:$0xff]
    %v79 = vld [vmem:[#allocation2 + $0x88] sm:$0xff]
    %v80 = vld [vmem:[#allocation2 + $0x90] sm:$0xff]
    %v81 = vld [vmem:[#allocation2 + $0x98] sm:$0xff]
    %v82 = vld [vmem:[#allocation2 + $0xa0] sm:$0xff]
    %v83 = vld [vmem:[#allocation2 + $0xa8] sm:$0xff]
    %v84 = vld [vmem:[#allocation2 + $0xb0] sm:$0xff]
    %v85 = vld [vmem:[#allocation2 + $0xb8] sm:$0xff]
    %v86 = vld [vmem:[#allocation2 + $0xc0] sm:$0xff]
    %v87 = vld [vmem:[#allocation2 + $0xc8] sm:$0xff]
    %v88 = vld [vmem:[#allocation2 + $0xd0] sm:$0xff]
    %v89 = vld [vmem:[#allocation2 + $0xd8] sm:$0xff]
    %v90 = vld [vmem:[#allocation2 + $0xe0] sm:$0xff]
    %v91 = vld [vmem:[#allocation2 + $0xe8] sm:$0xff]
    %v92 = vld [vmem:[#allocation2 + $0xf0] sm:$0xff]
    %v93 = vld [vmem:[#allocation2 + $0xf8] sm:$0xff]
    %v94 = vld [vmem:[#allocation2 + $0x100] sm:$0xff]
    %v95 = vld [vmem:[#allocation2 + $0x108] sm:$0xff]
    %v96 = vld [vmem:[#allocation2 + $0x110] sm:$0xff]
    %v97 = vld [vmem:[#allocation2 + $0x118] sm:$0xff]
    %v98 = vld [vmem:[#allocation2 + $0x120] sm:$0xff]
    %v99 = vld [vmem:[#allocation2 + $0x128] sm:$0xff]
    %v100 = vld [vmem:[#allocation2 + $0x130] sm:$0xff]
    %v101 = vld [vmem:[#allocation2 + $0x138] sm:$0xff]
    %v102 = vld [vmem:[#allocation2 + $0x140] sm:$0xff]
    %v103 = vld [vmem:[#allocation2 + $0x148] sm:$0xff]
    %v104 = vld [vmem:[#allocation2 + $0x150] sm:$0xff]
    %v105 = vld [vmem:[#allocation2 + $0x158] sm:$0xff]
    %v106 = vld [vmem:[#allocation2 + $0x160] sm:$0xff]
    %v107 = vld [vmem:[#allocation2 + $0x168] sm:$0xff]
    %v108 = vld [vmem:[#allocation2 + $0x170] sm:$0xff]
    %v109 = vld [vmem:[#allocation2 + $0x178] sm:$0xff]
    %v110 = vld [vmem:[#allocation2 + $0x180] sm:$0xff]
    %v111 = vld [vmem:[#allocation2 + $0x188] sm:$0xff]
    %v112 = vld [vmem:[#allocation2 + $0x190] sm:$0xff]
    %v113 = vld [vmem:[#allocation2 + $0x198] sm:$0xff]
    %v114 = vld [vmem:[#allocation2 + $0x1a0] sm:$0xff]
    %v115 = vld [vmem:[#allocation2 + $0x1a8] sm:$0xff]
    %v116 = vld [vmem:[#allocation2 + $0x1b0] sm:$0xff]
    %v117 = vld [vmem:[#allocation2 + $0x1b8] sm:$0xff]
    %v118 = vld [vmem:[#allocation2 + $0x1c0] sm:$0xff]
    %v119 = vld [vmem:[#allocation2 + $0x1c8] sm:$0xff]
    %v120 = vld [vmem:[#allocation2 + $0x1d0] sm:$0xff]
    %v121 = vld [vmem:[#allocation2 + $0x1d8] sm:$0xff]
    %v122 = vld [vmem:[#allocation2 + $0x1e0] sm:$0xff]
    %v123 = vld [vmem:[#allocation2 + $0x1e8] sm:$0xff]
    %v124 = vld [vmem:[#allocation2 + $0x1f0] sm:$0xff]
    %v125 = vld [vmem:[#allocation2 + $0x1f8] sm:$0xff]
    %v126 = vld [vmem:[#allocation2 + $0x200] sm:$0xff]
    %v127 = vld [vmem:[#allocation2 + $0x208] sm:$0xff]
    %v128 = vld [vmem:[#allocation2 + $0x210] sm:$0xff]
    %v129 = vld [vmem:[#allocation2 + $0x218] sm:$0xff]
    %v130 = vld [vmem:[#allocation2 + $0x220] sm:$0xff]
    %v131 = vld [vmem:[#allocation2 + $0x228] sm:$0xff]
    %v132 = vld [vmem:[#allocation2 + $0x230] sm:$0xff]
    %v133 = vld [vmem:[#allocation2 + $0x238] sm:$0xff]
    %v134 = vld [vmem:[#allocation2 + $0x240] sm:$0xff]
    %v135 = vld [vmem:[#allocation2 + $0x248] sm:$0xff]
    %v136 = vld [vmem:[#allocation2 + $0x250] sm:$0xff]
    %v137 = vld [vmem:[#allocation2 + $0x258] sm:$0xff]
    %v138 = vld [vmem:[#allocation2 + $0x260] sm:$0xff]
    %v139 = vld [vmem:[#allocation2 + $0x268] sm:$0xff]
    %v140 = vld [vmem:[#allocation2 + $0x270] sm:$0xff]
    %v141 = vld [vmem:[#allocation2 + $0x278] sm:$0xff]
    %v142 = vld [vmem:[#allocation2 + $0x280] sm:$0xff]
    %v143 = vld [vmem:[#allocation2 + $0x288] sm:$0xff]
    %v144 = vld [vmem:[#allocation2 + $0x290] sm:$0xff]
    %v145 = vld [vmem:[#allocation2 + $0x298] sm:$0xff]
    %v146 = vld [vmem:[#allocation2 + $0x2a0] sm:$0xff]
    %v147 = vld [vmem:[#allocation2 + $0x2a8] sm:$0xff]
    %v148 = vld [vmem:[#allocation2 + $0x2b0] sm:$0xff]
    %v149 = vld [vmem:[#allocation2 + $0x2b8] sm:$0xff]
    %v150 = vld [vmem:[#allocation2 + $0x2c0] sm:$0xff]
    %v151 = vld [vmem:[#allocation2 + $0x2c8] sm:$0xff]
    %v152 = vld [vmem:[#allocation2 + $0x2d0] sm:$0xff]
    %v153 = vld [vmem:[#allocation2 + $0x2d8] sm:$0xff]
    %v154 = vld [vmem:[#allocation2 + $0x2e0] sm:$0xff]
    %v155 = vld [vmem:[#allocation2 + $0x2e8] sm:$0xff]
    %v156 = vld [vmem:[#allocation2 + $0x2f0] sm:$0xff]
    %v157 = vld [vmem:[#allocation2 + $0x2f8] sm:$0xff]
    %v158 = vmul.f32 %v62, 0.088388346
    %v159 = vmul.f32 %v63, 0.088388346
    %v160 = vmul.f32 %v64, 0.088388346
    %v161 = vmul.f32 %v65, 0.088388346
    %v162 = vmul.f32 %v66, 0.088388346
    %v163 = vmul.f32 %v67, 0.088388346
    %v164 = vmul.f32 %v68, 0.088388346
    %v165 = vmul.f32 %v69, 0.088388346
    %v166 = vmul.f32 %v70, 0.088388346
    %v167 = vmul.f32 %v71, 0.088388346
    %v168 = vmul.f32 %v72, 0.088388346
    %v169 = vmul.f32 %v73, 0.088388346
    %v170 = vmul.f32 %v74, 0.088388346
    %v171 = vmul.f32 %v75, 0.088388346
    %v172 = vmul.f32 %v76, 0.088388346
    %v173 = vmul.f32 %v77, 0.088388346
    %v174 = vmul.f32 %v78, 0.088388346
    %v175 = vmul.f32 %v79, 0.088388346
    %v176 = vmul.f32 %v80, 0.088388346
    %v177 = vmul.f32 %v81, 0.088388346
    %v178 = vmul.f32 %v82, 0.088388346
    %v179 = vmul.f32 %v83, 0.088388346
    %v180 = vmul.f32 %v84, 0.088388346
    %v181 = vmul.f32 %v85, 0.088388346
    %v182 = vmul.f32 %v86, 0.088388346
    %v183 = vmul.f32 %v87, 0.088388346
    %v184 = vmul.f32 %v88, 0.088388346
    %v185 = vmul.f32 %v89, 0.088388346
    %v186 = vmul.f32 %v90, 0.088388346
    %v187 = vmul.f32 %v91, 0.088388346
    %v188 = vmul.f32 %v92, 0.088388346
    %v189 = vmul.f32 %v93, 0.088388346
    %v190 = vmul.f32 %v94, 0.088388346
    %v191 = vmul.f32 %v95, 0.088388346
    %v192 = vmul.f32 %v96, 0.088388346
    %v193 = vmul.f32 %v97, 0.088388346
    %v194 = vmul.f32 %v98, 0.088388346
    %v195 = vmul.f32 %v99, 0.088388346
    %v196 = vmul.f32 %v100, 0.088388346
    %v197 = vmul.f32 %v101, 0.088388346
    %v198 = vmul.f32 %v102, 0.088388346
    %v199 = vmul.f32 %v103, 0.088388346
    %v200 = vmul.f32 %v104, 0.088388346
    %v201 = vmul.f32 %v105, 0.088388346
    %v202 = vmul.f32 %v106, 0.088388346
    %v203 = vmul.f32 %v107, 0.088388346
    %v204 = vmul.f32 %v108, 0.088388346
    %v205 = vmul.f32 %v109, 0.088388346
    %v206 = vmul.f32 %v110, 0.088388346
    %v207 = vmul.f32 %v111, 0.088388346
    %v208 = vmul.f32 %v112, 0.088388346
    %v209 = vmul.f32 %v113, 0.088388346
    %v210 = vmul.f32 %v114, 0.088388346
    %v211 = vmul.f32 %v115, 0.088388346
    %v212 = vmul.f32 %v116, 0.088388346
    %v213 = vmul.f32 %v117, 0.088388346
    %v214 = vmul.f32 %v118, 0.088388346
    %v215 = vmul.f32 %v119, 0.088388346
    %v216 = vmul.f32 %v120, 0.088388346
    %v217 = vmul.f32 %v121, 0.088388346
    %v218 = vmul.f32 %v122, 0.088388346
    %v219 = vmul.f32 %v123, 0.088388346
    %v220 = vmul.f32 %v124, 0.088388346
    %v221 = vmul.f32 %v125, 0.088388346
    %v222 = vmul.f32 %v126, 0.088388346
    %v223 = vmul.f32 %v127, 0.088388346
    %v224 = vmul.f32 %v128, 0.088388346
    %v225 = vmul.f32 %v129, 0.088388346
    %v226 = vmul.f32 %v130, 0.088388346
    %v227 = vmul.f32 %v131, 0.088388346
    %v228 = vmul.f32 %v132, 0.088388346
    %v229 = vmul.f32 %v133, 0.088388346
    %v230 = vmul.f32 %v134, 0.088388346
    %v231 = vmul.f32 %v135, 0.088388346
    %v232 = vmul.f32 %v136, 0.088388346
    %v233 = vmul.f32 %v137, 0.088388346
    %v234 = vmul.f32 %v138, 0.088388346
    %v235 = vmul.f32 %v139, 0.088388346
    %v236 = vmul.f32 %v140, 0.088388346
    %v237 = vmul.f32 %v141, 0.088388346
    %v238 = vmul.f32 %v142, 0.088388346
    %v239 = vmul.f32 %v143, 0.088388346
    %v240 = vmul.f32 %v144, 0.088388346
    %v241 = vmul.f32 %v145, 0.088388346
    %v242 = vmul.f32 %v146, 0.088388346
    %v243 = vmul.f32 %v147, 0.088388346
    %v244 = vmul.f32 %v148, 0.088388346
    %v245 = vmul.f32 %v149, 0.088388346
    %v246 = vmul.f32 %v150, 0.088388346
    %v247 = vmul.f32 %v151, 0.088388346
    %v248 = vmul.f32 %v152, 0.088388346
    %v249 = vmul.f32 %v153, 0.088388346
    %v250 = vmul.f32 %v154, 0.088388346
    %v251 = vmul.f32 %v155, 0.088388346
    %v252 = vmul.f32 %v156, 0.088388346
    %v253 = vmul.f32 %v157, 0.088388346
    %v254 = vld [vmem:[#allocation5] sm:$0xff]
    %v255 = vld [vmem:[#allocation5 + $0x8] sm:$0xff]
    %v256 = vld [vmem:[#allocation5 + $0x10] sm:$0xff]
    %v257 = vld [vmem:[#allocation5 + $0x18] sm:$0xff]
    %v258 = vld [vmem:[#allocation5 + $0x20] sm:$0xff]
    %v259 = vld [vmem:[#allocation5 + $0x28] sm:$0xff]
    %v260 = vld [vmem:[#allocation5 + $0x30] sm:$0xff]
    %v261 = vld [vmem:[#allocation5 + $0x38] sm:$0xff]
    %v262 = vld [vmem:[#allocation5 + $0x40] sm:$0xff]
    %v263 = vld [vmem:[#allocation5 + $0x48] sm:$0xff]
    %v264 = vld [vmem:[#allocation5 + $0x50] sm:$0xff]
    %v265 = vld [vmem:[#allocation5 + $0x58] sm:$0xff]
    %v266 = vld [vmem:[#allocation5 + $0x60] sm:$0xff]
    %v267 = vld [vmem:[#allocation5 + $0x68] sm:$0xff]
    %v268 = vld [vmem:[#allocation5 + $0x70] sm:$0xff]
    %v269 = vld [vmem:[#allocation5 + $0x78] sm:$0xff]
    %v270 = vld [vmem:[#allocation5 + $0x80] sm:$0xff]
    %v271 = vld [vmem:[#allocation5 + $0x88] sm:$0xff]
    %v272 = vld [vmem:[#allocation5 + $0x90] sm:$0xff]
    %v273 = vld [vmem:[#allocation5 + $0x98] sm:$0xff]
    %v274 = vld [vmem:[#allocation5 + $0xa0] sm:$0xff]
    %v275 = vld [vmem:[#allocation5 + $0xa8] sm:$0xff]
    %v276 = vld [vmem:[#allocation5 + $0xb0] sm:$0xff]
    %v277 = vld [vmem:[#allocation5 + $0xb8] sm:$0xff]
    %v278 = vld [vmem:[#allocation5 + $0xc0] sm:$0xff]
    %v279 = vld [vmem:[#allocation5 + $0xc8] sm:$0xff]
    %v280 = vld [vmem:[#allocation5 + $0xd0] sm:$0xff]
    %v281 = vld [vmem:[#allocation5 + $0xd8] sm:$0xff]
    %v282 = vld [vmem:[#allocation5 + $0xe0] sm:$0xff]
    %v283 = vld [vmem:[#allocation5 + $0xe8] sm:$0xff]
    %v284 = vld [vmem:[#allocation5 + $0xf0] sm:$0xff]
    %v285 = vld [vmem:[#allocation5 + $0xf8] sm:$0xff]
    %v286 = vld [vmem:[#allocation5 + $0x100] sm:$0xff]
    %v287 = vld [vmem:[#allocation5 + $0x108] sm:$0xff]
    %v288 = vld [vmem:[#allocation5 + $0x110] sm:$0xff]
    %v289 = vld [vmem:[#allocation5 + $0x118] sm:$0xff]
    %v290 = vld [vmem:[#allocation5 + $0x120] sm:$0xff]
    %v291 = vld [vmem:[#allocation5 + $0x128] sm:$0xff]
    %v292 = vld [vmem:[#allocation5 + $0x130] sm:$0xff]
    %v293 = vld [vmem:[#allocation5 + $0x138] sm:$0xff]
    %v294 = vld [vmem:[#allocation5 + $0x140] sm:$0xff]
    %v295 = vld [vmem:[#allocation5 + $0x148] sm:$0xff]
    %v296 = vld [vmem:[#allocation5 + $0x150] sm:$0xff]
    %v297 = vld [vmem:[#allocation5 + $0x158] sm:$0xff]
    %v298 = vld [vmem:[#allocation5 + $0x160] sm:$0xff]
    %v299 = vld [vmem:[#allocation5 + $0x168] sm:$0xff]
    %v300 = vld [vmem:[#allocation5 + $0x170] sm:$0xff]
    %v301 = vld [vmem:[#allocation5 + $0x178] sm:$0xff]
    %v302 = vld [vmem:[#allocation5 + $0x180] sm:$0xff]
    %v303 = vld [vmem:[#allocation5 + $0x188] sm:$0xff]
    %v304 = vld [vmem:[#allocation5 + $0x190] sm:$0xff]
    %v305 = vld [vmem:[#allocation5 + $0x198] sm:$0xff]
    %v306 = vld [vmem:[#allocation5 + $0x1a0] sm:$0xff]
    %v307 = vld [vmem:[#allocation5 + $0x1a8] sm:$0xff]
    %v308 = vld [vmem:[#allocation5 + $0x1b0] sm:$0xff]
    %v309 = vld [vmem:[#allocation5 + $0x1b8] sm:$0xff]
    %v310 = vld [vmem:[#allocation5 + $0x1c0] sm:$0xff]
    %v311 = vld [vmem:[#allocation5 + $0x1c8] sm:$0xff]
    %v312 = vld [vmem:[#allocation5 + $0x1d0] sm:$0xff]
    %v313 = vld [vmem:[#allocation5 + $0x1d8] sm:$0xff]
    %v314 = vld [vmem:[#allocation5 + $0x1e0] sm:$0xff]
    %v315 = vld [vmem:[#allocation5 + $0x1e8] sm:$0xff]
    %v316 = vld [vmem:[#allocation5 + $0x1f0] sm:$0xff]
    %v317 = vld [vmem:[#allocation5 + $0x1f8] sm:$0xff]
    %v318 = vld [vmem:[#allocation5 + $0x200] sm:$0xff]
    %v319 = vld [vmem:[#allocation5 + $0x208] sm:$0xff]
    %v320 = vld [vmem:[#allocation5 + $0x210] sm:$0xff]
    %v321 = vld [vmem:[#allocation5 + $0x218] sm:$0xff]
    %v322 = vld [vmem:[#allocation5 + $0x220] sm:$0xff]
    %v323 = vld [vmem:[#allocation5 + $0x228] sm:$0xff]
    %v324 = vld [vmem:[#allocation5 + $0x230] sm:$0xff]
    %v325 = vld [vmem:[#allocation5 + $0x238] sm:$0xff]
    %v326 = vld [vmem:[#allocation5 + $0x240] sm:$0xff]
    %v327 = vld [vmem:[#allocation5 + $0x248] sm:$0xff]
    %v328 = vld [vmem:[#allocation5 + $0x250] sm:$0xff]
    %v329 = vld [vmem:[#allocation5 + $0x258] sm:$0xff]
    %v330 = vld [vmem:[#allocation5 + $0x260] sm:$0xff]
    %v331 = vld [vmem:[#allocation5 + $0x268] sm:$0xff]
    %v332 = vld [vmem:[#allocation5 + $0x270] sm:$0xff]
    %v333 = vld [vmem:[#allocation5 + $0x278] sm:$0xff]
    %v334 = vld [vmem:[#allocation5 + $0x280] sm:$0xff]
    %v335 = vld [vmem:[#allocation5 + $0x288] sm:$0xff]
    %v336 = vld [vmem:[#allocation5 + $0x290] sm:$0xff]
    %v337 = vld [vmem:[#allocation5 + $0x298] sm:$0xff]
    %v338 = vld [vmem:[#allocation5 + $0x2a0] sm:$0xff]
    %v339 = vld [vmem:[#allocation5 + $0x2a8] sm:$0xff]
    %v340 = vld [vmem:[#allocation5 + $0x2b0] sm:$0xff]
    %v341 = vld [vmem:[#allocation5 + $0x2b8] sm:$0xff]
    %v342 = vld [vmem:[#allocation5 + $0x2c0] sm:$0xff]
    %v343 = vld [vmem:[#allocation5 + $0x2c8] sm:$0xff]
    %v344 = vld [vmem:[#allocation5 + $0x2d0] sm:$0xff]
    %v345 = vld [vmem:[#allocation5 + $0x2d8] sm:$0xff]
    %v346 = vld [vmem:[#allocation5 + $0x2e0] sm:$0xff]
    %v347 = vld [vmem:[#allocation5 + $0x2e8] sm:$0xff]
    %v348 = vld [vmem:[#allocation5 + $0x2f0] sm:$0xff]
    %v349 = vld [vmem:[#allocation5 + $0x2f8] sm:$0xff]
    %v350 = vld [vmem:[#allocation7] sm:$0xff]
    %v351 = vld [vmem:[#allocation7 + $0x8] sm:$0xff]
    %v352 = vld [vmem:[#allocation7 + $0x10] sm:$0xff]
    %v353 = vld [vmem:[#allocation7 + $0x18] sm:$0xff]
    %v354 = vld [vmem:[#allocation7 + $0x20] sm:$0xff]
    %v355 = vld [vmem:[#allocation7 + $0x28] sm:$0xff]
    %v356 = vld [vmem:[#allocation7 + $0x30] sm:$0xff]
    %v357 = vld [vmem:[#allocation7 + $0x38] sm:$0xff]
    %v358 = vld [vmem:[#allocation7 + $0x40] sm:$0xff]
    %v359 = vld [vmem:[#allocation7 + $0x48] sm:$0xff]
    %v360 = vld [vmem:[#allocation7 + $0x50] sm:$0xff]
    %v361 = vld [vmem:[#allocation7 + $0x58] sm:$0xff]
    %v362 = vld [vmem:[#allocation7 + $0x60] sm:$0xff]
    %v363 = vld [vmem:[#allocation7 + $0x68] sm:$0xff]
    %v364 = vld [vmem:[#allocation7 + $0x70] sm:$0xff]
    %v365 = vld [vmem:[#allocation7 + $0x78] sm:$0xff]
    %v366 = vld [vmem:[#allocation7 + $0x80] sm:$0xff]
    %v367 = vld [vmem:[#allocation7 + $0x88] sm:$0xff]
    %v368 = vld [vmem:[#allocation7 + $0x90] sm:$0xff]
    %v369 = vld [vmem:[#allocation7 + $0x98] sm:$0xff]
    %v370 = vld [vmem:[#allocation7 + $0xa0] sm:$0xff]
    %v371 = vld [vmem:[#allocation7 + $0xa8] sm:$0xff]
    %v372 = vld [vmem:[#allocation7 + $0xb0] sm:$0xff]
    %v373 = vld [vmem:[#allocation7 + $0xb8] sm:$0xff]
    %v374 = vld [vmem:[#allocation7 + $0xc0] sm:$0xff]
    %v375 = vld [vmem:[#allocation7 + $0xc8] sm:$0xff]
    %v376 = vld [vmem:[#allocation7 + $0xd0] sm:$0xff]
    %v377 = vld [vmem:[#allocation7 + $0xd8] sm:$0xff]
    %v378 = vld [vmem:[#allocation7 + $0xe0] sm:$0xff]
    %v379 = vld [vmem:[#allocation7 + $0xe8] sm:$0xff]
    %v380 = vld [vmem:[#allocation7 + $0xf0] sm:$0xff]
    %v381 = vld [vmem:[#allocation7 + $0xf8] sm:$0xff]
    %v382 = vld [vmem:[#allocation7 + $0x100] sm:$0xff]
    %v383 = vld [vmem:[#allocation7 + $0x108] sm:$0xff]
    %v384 = vld [vmem:[#allocation7 + $0x110] sm:$0xff]
    %v385 = vld [vmem:[#allocation7 + $0x118] sm:$0xff]
    %v386 = vld [vmem:[#allocation7 + $0x120] sm:$0xff]
    %v387 = vld [vmem:[#allocation7 + $0x128] sm:$0xff]
    %v388 = vld [vmem:[#allocation7 + $0x130] sm:$0xff]
    %v389 = vld [vmem:[#allocation7 + $0x138] sm:$0xff]
    %v390 = vld [vmem:[#allocation7 + $0x140] sm:$0xff]
    %v391 = vld [vmem:[#allocation7 + $0x148] sm:$0xff]
    %v392 = vld [vmem:[#allocation7 + $0x150] sm:$0xff]
    %v393 = vld [vmem:[#allocation7 + $0x158] sm:$0xff]
    %v394 = vld [vmem:[#allocation7 + $0x160] sm:$0xff]
    %v395 = vld [vmem:[#allocation7 + $0x168] sm:$0xff]
    %v396 = vld [vmem:[#allocation7 + $0x170] sm:$0xff]
    %v397 = vld [vmem:[#allocation7 + $0x178] sm:$0xff]
    %v398 = vld [vmem:[#allocation7 + $0x180] sm:$0xff]
    %v399 = vld [vmem:[#allocation7 + $0x188] sm:$0xff]
    %v400 = vld [vmem:[#allocation7 + $0x190] sm:$0xff]
    %v401 = vld [vmem:[#allocation7 + $0x198] sm:$0xff]
    %v402 = vld [vmem:[#allocation7 + $0x1a0] sm:$0xff]
    %v403 = vld [vmem:[#allocation7 + $0x1a8] sm:$0xff]
    %v404 = vld [vmem:[#allocation7 + $0x1b0] sm:$0xff]
    %v405 = vld [vmem:[#allocation7 + $0x1b8] sm:$0xff]
    %v406 = vld [vmem:[#allocation7 + $0x1c0] sm:$0xff]
    %v407 = vld [vmem:[#allocation7 + $0x1c8] sm:$0xff]
    %v408 = vld [vmem:[#allocation7 + $0x1d0] sm:$0xff]
    %v409 = vld [vmem:[#allocation7 + $0x1d8] sm:$0xff]
    %v410 = vld [vmem:[#allocation7 + $0x1e0] sm:$0xff]
    %v411 = vld [vmem:[#allocation7 + $0x1e8] sm:$0xff]
    %v412 = vld [vmem:[#allocation7 + $0x1f0] sm:$0xff]
    %v413 = vld [vmem:[#allocation7 + $0x1f8] sm:$0xff]
    %v414 = vld [vmem:[#allocation7 + $0x200] sm:$0xff]
    %v415 = vld [vmem:[#allocation7 + $0x208] sm:$0xff]
    %v416 = vld [vmem:[#allocation7 + $0x210] sm:$0xff]
    %v417 = vld [vmem:[#allocation7 + $0x218] sm:$0xff]
    %v418 = vld [vmem:[#allocation7 + $0x220] sm:$0xff]
    %v419 = vld [vmem:[#allocation7 + $0x228] sm:$0xff]
    %v420 = vld [vmem:[#allocation7 + $0x230] sm:$0xff]
    %v421 = vld [vmem:[#allocation7 + $0x238] sm:$0xff]
    %v422 = vld [vmem:[#allocation7 + $0x240] sm:$0xff]
    %v423 = vld [vmem:[#allocation7 + $0x248] sm:$0xff]
    %v424 = vld [vmem:[#allocation7 + $0x250] sm:$0xff]
    %v425 = vld [vmem:[#allocation7 + $0x258] sm:$0xff]
    %v426 = vld [vmem:[#allocation7 + $0x260] sm:$0xff]
    %v427 = vld [vmem:[#allocation7 + $0x268] sm:$0xff]
    %v428 = vld [vmem:[#allocation7 + $0x270] sm:$0xff]
    %v429 = vld [vmem:[#allocation7 + $0x278] sm:$0xff]
    %v430 = vld [vmem:[#allocation7 + $0x280] sm:$0xff]
    %v431 = vld [vmem:[#allocation7 + $0x288] sm:$0xff]
    %v432 = vld [vmem:[#allocation7 + $0x290] sm:$0xff]
    %v433 = vld [vmem:[#allocation7 + $0x298] sm:$0xff]
    %v434 = vld [vmem:[#allocation7 + $0x2a0] sm:$0xff]
    %v435 = vld [vmem:[#allocation7 + $0x2a8] sm:$0xff]
    %v436 = vld [vmem:[#allocation7 + $0x2b0] sm:$0xff]
    %v437 = vld [vmem:[#allocation7 + $0x2b8] sm:$0xff]
    %v438 = vld [vmem:[#allocation7 + $0x2c0] sm:$0xff]
    %v439 = vld [vmem:[#allocation7 + $0x2c8] sm:$0xff]
    %v440 = vld [vmem:[#allocation7 + $0x2d0] sm:$0xff]
    %v441 = vld [vmem:[#allocation7 + $0x2d8] sm:$0xff]
    %v442 = vld [vmem:[#allocation7 + $0x2e0] sm:$0xff]
    %v443 = vld [vmem:[#allocation7 + $0x2e8] sm:$0xff]
    %v444 = vld [vmem:[#allocation7 + $0x2f0] sm:$0xff]
    %v445 = vld [vmem:[#allocation7 + $0x2f8] sm:$0xff]
    %446 = vmatpush.xpose.msra.mxu0 %v269
    %447 = vmatpush.xpose.msra.mxu0 %v268
    %448 = vmatpush.xpose.msra.mxu0 %v267
    %449 = vmatpush.xpose.msra.mxu0 %v266
    %450 = vmatpush.xpose.msra.mxu0 %v265
    %451 = vmatpush.xpose.msra.mxu0 %v264
    %452 = vmatpush.xpose.msra.mxu0 %v263
    %453 = vmatpush.xpose.msra.mxu0 %v262
    %454 = vmatpush.xpose.msra.mxu0 %v261
    %455 = vmatpush.xpose.msra.mxu0 %v260
    %456 = vmatpush.xpose.msra.mxu0 %v259
    %457 = vmatpush.xpose.msra.mxu0 %v258
    %458 = vmatpush.xpose.msra.mxu0 %v257
    %459 = vmatpush.xpose.msra.mxu0 %v256
    %460 = vmatpush.xpose.msra.mxu0 %v255
    %461 = vmatpush.xpose.msra.mxu0 %v254
    %462 = vmatmul.f32.gmra.mxu0 %v158
    %v463 = vpop.f32.mrf.mxu0
    %v464 = vadd.f32 0.0, %v463
    %465 = vmatmul.f32.gmra.mxu0 %v159
    %v466 = vpop.f32.mrf.mxu0
    %v467 = vadd.f32 0.0, %v466
    %468 = vmatmul.f32.gmra.mxu0 %v160
    %v469 = vpop.f32.mrf.mxu0
    %v470 = vadd.f32 0.0, %v469
    %471 = vmatmul.f32.gmra.mxu0 %v161
    %v472 = vpop.f32.mrf.mxu0
    %v473 = vadd.f32 0.0, %v472
    %474 = vmatmul.f32.gmra.mxu0 %v162
    %v475 = vpop.f32.mrf.mxu0
    %v476 = vadd.f32 0.0, %v475
    %477 = vmatmul.f32.gmra.mxu0 %v163
    %v478 = vpop.f32.mrf.mxu0
    %v479 = vadd.f32 0.0, %v478
    %480 = vmatmul.f32.gmra.mxu0 %v164
    %v481 = vpop.f32.mrf.mxu0
    %v482 = vadd.f32 0.0, %v481
    %483 = vmatmul.f32.gmra.mxu0 %v165
    %v484 = vpop.f32.mrf.mxu0
    %v485 = vadd.f32 0.0, %v484
    %486 = vmatmul.f32.gmra.mxu0 %v166
    %v487 = vpop.f32.mrf.mxu0
    %v488 = vadd.f32 0.0, %v487
    %489 = vmatmul.f32.gmra.mxu0 %v167
    %v490 = vpop.f32.mrf.mxu0
    %v491 = vadd.f32 0.0, %v490
    %492 = vmatmul.f32.gmra.mxu0 %v168
    %v493 = vpop.f32.mrf.mxu0
    %v494 = vadd.f32 0.0, %v493
    %495 = vmatmul.f32.gmra.mxu0 %v169
    %v496 = vpop.f32.mrf.mxu0
    %v497 = vadd.f32 0.0, %v496
    %498 = vmatmul.f32.gmra.mxu0 %v170
    %v499 = vpop.f32.mrf.mxu0
    %v500 = vadd.f32 0.0, %v499
    %501 = vmatmul.f32.gmra.mxu0 %v171
    %v502 = vpop.f32.mrf.mxu0
    %v503 = vadd.f32 0.0, %v502
    %504 = vmatmul.f32.gmra.mxu0 %v172
    %v505 = vpop.f32.mrf.mxu0
    %v506 = vadd.f32 0.0, %v505
    %507 = vmatmul.f32.gmra.mxu0 %v173
    %v508 = vpop.f32.mrf.mxu0
    %v509 = vadd.f32 0.0, %v508
    %510 = vdwg.mxu0
    %511 = vmatpush.xpose.msra.mxu0 %v285
    %512 = vmatpush.xpose.msra.mxu0 %v284
    %513 = vmatpush.xpose.msra.mxu0 %v283
    %514 = vmatpush.xpose.msra.mxu0 %v282
    %515 = vmatpush.xpose.msra.mxu0 %v281
    %516 = vmatpush.xpose.msra.mxu0 %v280
    %517 = vmatpush.xpose.msra.mxu0 %v279
    %518 = vmatpush.xpose.msra.mxu0 %v278
    %519 = vmatpush.xpose.msra.mxu0 %v277
    %520 = vmatpush.xpose.msra.mxu0 %v276
    %521 = vmatpush.xpose.msra.mxu0 %v275
    %522 = vmatpush.xpose.msra.mxu0 %v274
    %523 = vmatpush.xpose.msra.mxu0 %v273
    %524 = vmatpush.xpose.msra.mxu0 %v272
    %525 = vmatpush.xpose.msra.mxu0 %v271
    %526 = vmatpush.xpose.msra.mxu0 %v270
    %527 = vmatmul.f32.gmra.mxu0 %v174
    %v528 = vpop.f32.mrf.mxu0
    %v529 = vadd.f32 0.0, %v528
    %530 = vmatmul.f32.gmra.mxu0 %v175
    %v531 = vpop.f32.mrf.mxu0
    %v532 = vadd.f32 0.0, %v531
    %533 = vmatmul.f32.gmra.mxu0 %v176
    %v534 = vpop.f32.mrf.mxu0
    %v535 = vadd.f32 0.0, %v534
    %536 = vmatmul.f32.gmra.mxu0 %v177
    %v537 = vpop.f32.mrf.mxu0
    %v538 = vadd.f32 0.0, %v537
    %539 = vmatmul.f32.gmra.mxu0 %v178
    %v540 = vpop.f32.mrf.mxu0
    %v541 = vadd.f32 0.0, %v540
    %542 = vmatmul.f32.gmra.mxu0 %v179
    %v543 = vpop.f32.mrf.mxu0
    %v544 = vadd.f32 0.0, %v543
    %545 = vmatmul.f32.gmra.mxu0 %v180
    %v546 = vpop.f32.mrf.mxu0
    %v547 = vadd.f32 0.0, %v546
    %548 = vmatmul.f32.gmra.mxu0 %v181
    %v549 = vpop.f32.mrf.mxu0
    %v550 = vadd.f32 0.0, %v549
    %551 = vmatmul.f32.gmra.mxu0 %v182
    %v552 = vpop.f32.mrf.mxu0
    %v553 = vadd.f32 0.0, %v552
    %554 = vmatmul.f32.gmra.mxu0 %v183
    %v555 = vpop.f32.mrf.mxu0
    %v556 = vadd.f32 0.0, %v555
    %557 = vmatmul.f32.gmra.mxu0 %v184
    %v558 = vpop.f32.mrf.mxu0
    %v559 = vadd.f32 0.0, %v558
    %560 = vmatmul.f32.gmra.mxu0 %v185
    %v561 = vpop.f32.mrf.mxu0
    %v562 = vadd.f32 0.0, %v561
    %563 = vmatmul.f32.gmra.mxu0 %v186
    %v564 = vpop.f32.mrf.mxu0
    %v565 = vadd.f32 0.0, %v564
    %566 = vmatmul.f32.gmra.mxu0 %v187
    %v567 = vpop.f32.mrf.mxu0
    %v568 = vadd.f32 0.0, %v567
    %569 = vmatmul.f32.gmra.mxu0 %v188
    %v570 = vpop.f32.mrf.mxu0
    %v571 = vadd.f32 0.0, %v570
    %572 = vmatmul.f32.gmra.mxu0 %v189
    %v573 = vpop.f32.mrf.mxu0
    %v574 = vadd.f32 0.0, %v573
    %575 = vdwg.mxu0
    %576 = vmatpush.xpose.msra.mxu0 %v301
    %577 = vmatpush.xpose.msra.mxu0 %v300
    %578 = vmatpush.xpose.msra.mxu0 %v299
    %579 = vmatpush.xpose.msra.mxu0 %v298
    %580 = vmatpush.xpose.msra.mxu0 %v297
    %581 = vmatpush.xpose.msra.mxu0 %v296
    %582 = vmatpush.xpose.msra.mxu0 %v295
    %583 = vmatpush.xpose.msra.mxu0 %v294
    %584 = vmatpush.xpose.msra.mxu0 %v293
    %585 = vmatpush.xpose.msra.mxu0 %v292
    %586 = vmatpush.xpose.msra.mxu0 %v291
    %587 = vmatpush.xpose.msra.mxu0 %v290
    %588 = vmatpush.xpose.msra.mxu0 %v289
    %589 = vmatpush.xpose.msra.mxu0 %v288
    %590 = vmatpush.xpose.msra.mxu0 %v287
    %591 = vmatpush.xpose.msra.mxu0 %v286
    %592 = vmatmul.f32.gmra.mxu0 %v190
    %v593 = vpop.f32.mrf.mxu0
    %v594 = vadd.f32 0.0, %v593
    %595 = vmatmul.f32.gmra.mxu0 %v191
    %v596 = vpop.f32.mrf.mxu0
    %v597 = vadd.f32 0.0, %v596
    %598 = vmatmul.f32.gmra.mxu0 %v192
    %v599 = vpop.f32.mrf.mxu0
    %v600 = vadd.f32 0.0, %v599
    %601 = vmatmul.f32.gmra.mxu0 %v193
    %v602 = vpop.f32.mrf.mxu0
    %v603 = vadd.f32 0.0, %v602
    %604 = vmatmul.f32.gmra.mxu0 %v194
    %v605 = vpop.f32.mrf.mxu0
    %v606 = vadd.f32 0.0, %v605
    %607 = vmatmul.f32.gmra.mxu0 %v195
    %v608 = vpop.f32.mrf.mxu0
    %v609 = vadd.f32 0.0, %v608
    %610 = vmatmul.f32.gmra.mxu0 %v196
    %v611 = vpop.f32.mrf.mxu0
    %v612 = vadd.f32 0.0, %v611
    %613 = vmatmul.f32.gmra.mxu0 %v197
    %v614 = vpop.f32.mrf.mxu0
    %v615 = vadd.f32 0.0, %v614
    %616 = vmatmul.f32.gmra.mxu0 %v198
    %v617 = vpop.f32.mrf.mxu0
    %v618 = vadd.f32 0.0, %v617
    %619 = vmatmul.f32.gmra.mxu0 %v199
    %v620 = vpop.f32.mrf.mxu0
    %v621 = vadd.f32 0.0, %v620
    %622 = vmatmul.f32.gmra.mxu0 %v200
    %v623 = vpop.f32.mrf.mxu0
    %v624 = vadd.f32 0.0, %v623
    %625 = vmatmul.f32.gmra.mxu0 %v201
    %v626 = vpop.f32.mrf.mxu0
    %v627 = vadd.f32 0.0, %v626
    %628 = vmatmul.f32.gmra.mxu0 %v202
    %v629 = vpop.f32.mrf.mxu0
    %v630 = vadd.f32 0.0, %v629
    %631 = vmatmul.f32.gmra.mxu0 %v203
    %v632 = vpop.f32.mrf.mxu0
    %v633 = vadd.f32 0.0, %v632
    %634 = vmatmul.f32.gmra.mxu0 %v204
    %v635 = vpop.f32.mrf.mxu0
    %v636 = vadd.f32 0.0, %v635
    %637 = vmatmul.f32.gmra.mxu0 %v205
    %v638 = vpop.f32.mrf.mxu0
    %v639 = vadd.f32 0.0, %v638
    %640 = vdwg.mxu0
    %641 = vmatpush.xpose.msra.mxu0 %v317
    %642 = vmatpush.xpose.msra.mxu0 %v316
    %643 = vmatpush.xpose.msra.mxu0 %v315
    %644 = vmatpush.xpose.msra.mxu0 %v314
    %645 = vmatpush.xpose.msra.mxu0 %v313
    %646 = vmatpush.xpose.msra.mxu0 %v312
    %647 = vmatpush.xpose.msra.mxu0 %v311
    %648 = vmatpush.xpose.msra.mxu0 %v310
    %649 = vmatpush.xpose.msra.mxu0 %v309
    %650 = vmatpush.xpose.msra.mxu0 %v308
    %651 = vmatpush.xpose.msra.mxu0 %v307
    %652 = vmatpush.xpose.msra.mxu0 %v306
    %653 = vmatpush.xpose.msra.mxu0 %v305
    %654 = vmatpush.xpose.msra.mxu0 %v304
    %655 = vmatpush.xpose.msra.mxu0 %v303
    %656 = vmatpush.xpose.msra.mxu0 %v302
    %657 = vmatmul.f32.gmra.mxu0 %v206
    %v658 = vpop.f32.mrf.mxu0
    %v659 = vadd.f32 0.0, %v658
    %660 = vmatmul.f32.gmra.mxu0 %v207
    %v661 = vpop.f32.mrf.mxu0
    %v662 = vadd.f32 0.0, %v661
    %663 = vmatmul.f32.gmra.mxu0 %v208
    %v664 = vpop.f32.mrf.mxu0
    %v665 = vadd.f32 0.0, %v664
    %666 = vmatmul.f32.gmra.mxu0 %v209
    %v667 = vpop.f32.mrf.mxu0
    %v668 = vadd.f32 0.0, %v667
    %669 = vmatmul.f32.gmra.mxu0 %v210
    %v670 = vpop.f32.mrf.mxu0
    %v671 = vadd.f32 0.0, %v670
    %672 = vmatmul.f32.gmra.mxu0 %v211
    %v673 = vpop.f32.mrf.mxu0
    %v674 = vadd.f32 0.0, %v673
    %675 = vmatmul.f32.gmra.mxu0 %v212
    %v676 = vpop.f32.mrf.mxu0
    %v677 = vadd.f32 0.0, %v676
    %678 = vmatmul.f32.gmra.mxu0 %v213
    %v679 = vpop.f32.mrf.mxu0
    %v680 = vadd.f32 0.0, %v679
    %681 = vmatmul.f32.gmra.mxu0 %v214
    %v682 = vpop.f32.mrf.mxu0
    %v683 = vadd.f32 0.0, %v682
    %684 = vmatmul.f32.gmra.mxu0 %v215
    %v685 = vpop.f32.mrf.mxu0
    %v686 = vadd.f32 0.0, %v685
    %687 = vmatmul.f32.gmra.mxu0 %v216
    %v688 = vpop.f32.mrf.mxu0
    %v689 = vadd.f32 0.0, %v688
    %690 = vmatmul.f32.gmra.mxu0 %v217
    %v691 = vpop.f32.mrf.mxu0
    %v692 = vadd.f32 0.0, %v691
    %693 = vmatmul.f32.gmra.mxu0 %v218
    %v694 = vpop.f32.mrf.mxu0
    %v695 = vadd.f32 0.0, %v694
    %696 = vmatmul.f32.gmra.mxu0 %v219
    %v697 = vpop.f32.mrf.mxu0
    %v698 = vadd.f32 0.0, %v697
    %699 = vmatmul.f32.gmra.mxu0 %v220
    %v700 = vpop.f32.mrf.mxu0
    %v701 = vadd.f32 0.0, %v700
    %702 = vmatmul.f32.gmra.mxu0 %v221
    %v703 = vpop.f32.mrf.mxu0
    %v704 = vadd.f32 0.0, %v703
    %705 = vdwg.mxu0
    %706 = vmatpush.xpose.msra.mxu0 %v333
    %707 = vmatpush.xpose.msra.mxu0 %v332
    %708 = vmatpush.xpose.msra.mxu0 %v331
    %709 = vmatpush.xpose.msra.mxu0 %v330
    %710 = vmatpush.xpose.msra.mxu0 %v329
    %711 = vmatpush.xpose.msra.mxu0 %v328
    %712 = vmatpush.xpose.msra.mxu0 %v327
    %713 = vmatpush.xpose.msra.mxu0 %v326
    %714 = vmatpush.xpose.msra.mxu0 %v325
    %715 = vmatpush.xpose.msra.mxu0 %v324
    %716 = vmatpush.xpose.msra.mxu0 %v323
    %717 = vmatpush.xpose.msra.mxu0 %v322
    %718 = vmatpush.xpose.msra.mxu0 %v321
    %719 = vmatpush.xpose.msra.mxu0 %v320
    %720 = vmatpush.xpose.msra.mxu0 %v319
    %721 = vmatpush.xpose.msra.mxu0 %v318
    %722 = vmatmul.f32.gmra.mxu0 %v222
    %v723 = vpop.f32.mrf.mxu0
    %v724 = vadd.f32 0.0, %v723
    %725 = vmatmul.f32.gmra.mxu0 %v223
    %v726 = vpop.f32.mrf.mxu0
    %v727 = vadd.f32 0.0, %v726
    %728 = vmatmul.f32.gmra.mxu0 %v224
    %v729 = vpop.f32.mrf.mxu0
    %v730 = vadd.f32 0.0, %v729
    %731 = vmatmul.f32.gmra.mxu0 %v225
    %v732 = vpop.f32.mrf.mxu0
    %v733 = vadd.f32 0.0, %v732
    %734 = vmatmul.f32.gmra.mxu0 %v226
    %v735 = vpop.f32.mrf.mxu0
    %v736 = vadd.f32 0.0, %v735
    %737 = vmatmul.f32.gmra.mxu0 %v227
    %v738 = vpop.f32.mrf.mxu0
    %v739 = vadd.f32 0.0, %v738
    %740 = vmatmul.f32.gmra.mxu0 %v228
    %v741 = vpop.f32.mrf.mxu0
    %v742 = vadd.f32 0.0, %v741
    %743 = vmatmul.f32.gmra.mxu0 %v229
    %v744 = vpop.f32.mrf.mxu0
    %v745 = vadd.f32 0.0, %v744
    %746 = vmatmul.f32.gmra.mxu0 %v230
    %v747 = vpop.f32.mrf.mxu0
    %v748 = vadd.f32 0.0, %v747
    %749 = vmatmul.f32.gmra.mxu0 %v231
    %v750 = vpop.f32.mrf.mxu0
    %v751 = vadd.f32 0.0, %v750
    %752 = vmatmul.f32.gmra.mxu0 %v232
    %v753 = vpop.f32.mrf.mxu0
    %v754 = vadd.f32 0.0, %v753
    %755 = vmatmul.f32.gmra.mxu0 %v233
    %v756 = vpop.f32.mrf.mxu0
    %v757 = vadd.f32 0.0, %v756
    %758 = vmatmul.f32.gmra.mxu0 %v234
    %v759 = vpop.f32.mrf.mxu0
    %v760 = vadd.f32 0.0, %v759
    %761 = vmatmul.f32.gmra.mxu0 %v235
    %v762 = vpop.f32.mrf.mxu0
    %v763 = vadd.f32 0.0, %v762
    %764 = vmatmul.f32.gmra.mxu0 %v236
    %v765 = vpop.f32.mrf.mxu0
    %v766 = vadd.f32 0.0, %v765
    %767 = vmatmul.f32.gmra.mxu0 %v237
    %v768 = vpop.f32.mrf.mxu0
    %v769 = vadd.f32 0.0, %v768
    %770 = vdwg.mxu0
    %771 = vmatpush.xpose.msra.mxu0 %v349
    %772 = vmatpush.xpose.msra.mxu0 %v348
    %773 = vmatpush.xpose.msra.mxu0 %v347
    %774 = vmatpush.xpose.msra.mxu0 %v346
    %775 = vmatpush.xpose.msra.mxu0 %v345
    %776 = vmatpush.xpose.msra.mxu0 %v344
    %777 = vmatpush.xpose.msra.mxu0 %v343
    %778 = vmatpush.xpose.msra.mxu0 %v342
    %779 = vmatpush.xpose.msra.mxu0 %v341
    %780 = vmatpush.xpose.msra.mxu0 %v340
    %781 = vmatpush.xpose.msra.mxu0 %v339
    %782 = vmatpush.xpose.msra.mxu0 %v338
    %783 = vmatpush.xpose.msra.mxu0 %v337
    %784 = vmatpush.xpose.msra.mxu0 %v336
    %785 = vmatpush.xpose.msra.mxu0 %v335
    %786 = vmatpush.xpose.msra.mxu0 %v334
    %787 = vmatmul.f32.gmra.mxu0 %v238
    %v788 = vpop.f32.mrf.mxu0
    %v789 = vadd.f32 0.0, %v788
    %790 = vmatmul.f32.gmra.mxu0 %v239
    %v791 = vpop.f32.mrf.mxu0
    %v792 = vadd.f32 0.0, %v791
    %793 = vmatmul.f32.gmra.mxu0 %v240
    %v794 = vpop.f32.mrf.mxu0
    %v795 = vadd.f32 0.0, %v794
    %796 = vmatmul.f32.gmra.mxu0 %v241
    %v797 = vpop.f32.mrf.mxu0
    %v798 = vadd.f32 0.0, %v797
    %799 = vmatmul.f32.gmra.mxu0 %v242
    %v800 = vpop.f32.mrf.mxu0
    %v801 = vadd.f32 0.0, %v800
    %802 = vmatmul.f32.gmra.mxu0 %v243
    %v803 = vpop.f32.mrf.mxu0
    %v804 = vadd.f32 0.0, %v803
    %805 = vmatmul.f32.gmra.mxu0 %v244
    %v806 = vpop.f32.mrf.mxu0
    %v807 = vadd.f32 0.0, %v806
    %808 = vmatmul.f32.gmra.mxu0 %v245
    %v809 = vpop.f32.mrf.mxu0
    %v810 = vadd.f32 0.0, %v809
    %811 = vmatmul.f32.gmra.mxu0 %v246
    %v812 = vpop.f32.mrf.mxu0
    %v813 = vadd.f32 0.0, %v812
    %814 = vmatmul.f32.gmra.mxu0 %v247
    %v815 = vpop.f32.mrf.mxu0
    %v816 = vadd.f32 0.0, %v815
    %817 = vmatmul.f32.gmra.mxu0 %v248
    %v818 = vpop.f32.mrf.mxu0
    %v819 = vadd.f32 0.0, %v818
    %820 = vmatmul.f32.gmra.mxu0 %v249
    %v821 = vpop.f32.mrf.mxu0
    %v822 = vadd.f32 0.0, %v821
    %823 = vmatmul.f32.gmra.mxu0 %v250
    %v824 = vpop.f32.mrf.mxu0
    %v825 = vadd.f32 0.0, %v824
    %826 = vmatmul.f32.gmra.mxu0 %v251
    %v827 = vpop.f32.mrf.mxu0
    %v828 = vadd.f32 0.0, %v827
    %829 = vmatmul.f32.gmra.mxu0 %v252
    %v830 = vpop.f32.mrf.mxu0
    %v831 = vadd.f32 0.0, %v830
    %832 = vmatmul.f32.gmra.mxu0 %v253
    %v833 = vpop.f32.mrf.mxu0
    %v834 = vadd.f32 0.0, %v833
    %835 = vdwg.mxu0
    %v836 = vlaneseq
    %v837 = vshrl.u32 %v836, 7
    %v838 = vadd.s32 %v837, 8
    %v839 = vadd.s32 %v837, 16
    %v840 = vadd.s32 %v837, 24
    %v841 = vadd.s32 %v837, 32
    %v842 = vadd.s32 %v837, 40
    %v843 = vadd.s32 %v837, 48
    %v844 = vadd.s32 %v837, 56
    %v845 = vadd.s32 %v837, 64
    %v846 = vadd.s32 %v837, 72
    %v847 = vadd.s32 %v837, 80
    %v848 = vadd.s32 %v837, 88
    %v849 = vadd.s32 %v837, 96
    %v850 = vadd.s32 %v837, 104
    %v851 = vadd.s32 %v837, 112
    %v852 = vadd.s32 %v837, 120
    %v853 = vlaneseq
    %v854 = vand.u32 %v853, 127
    %vm855 = vcmp.le.s32.totalorder %v854, %v837
    %vm856 = vcmp.le.s32.totalorder %v854, %v838
    %vm857 = vcmp.le.s32.totalorder %v854, %v839
    %vm858 = vcmp.le.s32.totalorder %v854, %v840
    %vm859 = vcmp.le.s32.totalorder %v854, %v841
    %vm860 = vcmp.le.s32.totalorder %v854, %v842
    %vm861 = vcmp.le.s32.totalorder %v854, %v843
    %vm862 = vcmp.le.s32.totalorder %v854, %v844
    %vm863 = vcmp.le.s32.totalorder %v854, %v845
    %vm864 = vcmp.le.s32.totalorder %v854, %v846
    %vm865 = vcmp.le.s32.totalorder %v854, %v847
    %vm866 = vcmp.le.s32.totalorder %v854, %v848
    %vm867 = vcmp.le.s32.totalorder %v854, %v849
    %vm868 = vcmp.le.s32.totalorder %v854, %v850
    %vm869 = vcmp.le.s32.totalorder %v854, %v851
    %vm870 = vcmp.le.s32.totalorder %v854, %v852
    %v871 = vsel %vm855, 1, 0
    %v872 = vsel %vm856, 1, 0
    %v873 = vsel %vm857, 1, 0
    %v874 = vsel %vm858, 1, 0
    %v875 = vsel %vm859, 1, 0
    %v876 = vsel %vm860, 1, 0
    %v877 = vsel %vm861, 1, 0
    %v878 = vsel %vm862, 1, 0
    %v879 = vsel %vm863, 1, 0
    %v880 = vsel %vm864, 1, 0
    %v881 = vsel %vm865, 1, 0
    %v882 = vsel %vm866, 1, 0
    %v883 = vsel %vm867, 1, 0
    %v884 = vsel %vm868, 1, 0
    %v885 = vsel %vm869, 1, 0
    %v886 = vsel %vm870, 1, 0
    %vm887 = vcmp.eq.s32.totalorder %v871, 1
    %vm888 = vcmp.eq.s32.totalorder %v872, 1
    %vm889 = vcmp.eq.s32.totalorder %v873, 1
    %vm890 = vcmp.eq.s32.totalorder %v874, 1
    %vm891 = vcmp.eq.s32.totalorder %v875, 1
    %vm892 = vcmp.eq.s32.totalorder %v876, 1
    %vm893 = vcmp.eq.s32.totalorder %v877, 1
    %vm894 = vcmp.eq.s32.totalorder %v878, 1
    %vm895 = vcmp.eq.s32.totalorder %v879, 1
    %vm896 = vcmp.eq.s32.totalorder %v880, 1
    %vm897 = vcmp.eq.s32.totalorder %v881, 1
    %vm898 = vcmp.eq.s32.totalorder %v882, 1
    %vm899 = vcmp.eq.s32.totalorder %v883, 1
    %vm900 = vcmp.eq.s32.totalorder %v884, 1
    %vm901 = vcmp.eq.s32.totalorder %v885, 1
    %vm902 = vcmp.eq.s32.totalorder %v886, 1
    %v903 = vsel %vm887, %v464, -inf
    %v904 = vsel %vm888, %v467, -inf
    %v905 = vsel %vm889, %v470, -inf
    %v906 = vsel %vm890, %v473, -inf
    %v907 = vsel %vm891, %v476, -inf
    %v908 = vsel %vm892, %v479, -inf
    %v909 = vsel %vm893, %v482, -inf
    %v910 = vsel %vm894, %v485, -inf
    %v911 = vsel %vm895, %v488, -inf
    %v912 = vsel %vm896, %v491, -inf
    %v913 = vsel %vm897, %v494, -inf
    %v914 = vsel %vm898, %v497, -inf
    %v915 = vsel %vm899, %v500, -inf
    %v916 = vsel %vm900, %v503, -inf
    %v917 = vsel %vm901, %v506, -inf
    %v918 = vsel %vm902, %v509, -inf
    %v919 = vsel %vm887, %v529, -inf
    %v920 = vsel %vm888, %v532, -inf
    %v921 = vsel %vm889, %v535, -inf
    %v922 = vsel %vm890, %v538, -inf
    %v923 = vsel %vm891, %v541, -inf
    %v924 = vsel %vm892, %v544, -inf
    %v925 = vsel %vm893, %v547, -inf
    %v926 = vsel %vm894, %v550, -inf
    %v927 = vsel %vm895, %v553, -inf
    %v928 = vsel %vm896, %v556, -inf
    %v929 = vsel %vm897, %v559, -inf
    %v930 = vsel %vm898, %v562, -inf
    %v931 = vsel %vm899, %v565, -inf
    %v932 = vsel %vm900, %v568, -inf
    %v933 = vsel %vm901, %v571, -inf
    %v934 = vsel %vm902, %v574, -inf
    %v935 = vsel %vm887, %v594, -inf
    %v936 = vsel %vm888, %v597, -inf
    %v937 = vsel %vm889, %v600, -inf
    %v938 = vsel %vm890, %v603, -inf
    %v939 = vsel %vm891, %v606, -inf
    %v940 = vsel %vm892, %v609, -inf
    %v941 = vsel %vm893, %v612, -inf
    %v942 = vsel %vm894, %v615, -inf
    %v943 = vsel %vm895, %v618, -inf
    %v944 = vsel %vm896, %v621, -inf
    %v945 = vsel %vm897, %v624, -inf
    %v946 = vsel %vm898, %v627, -inf
    %v947 = vsel %vm899, %v630, -inf
    %v948 = vsel %vm900, %v633, -inf
    %v949 = vsel %vm901, %v636, -inf
    %v950 = vsel %vm902, %v639, -inf
    %v951 = vsel %vm887, %v659, -inf
    %v952 = vsel %vm888, %v662, -inf
    %v953 = vsel %vm889, %v665, -inf
    %v954 = vsel %vm890, %v668, -inf
    %v955 = vsel %vm891, %v671, -inf
    %v956 = vsel %vm892, %v674, -inf
    %v957 = vsel %vm893, %v677, -inf
    %v958 = vsel %vm894, %v680, -inf
    %v959 = vsel %vm895, %v683, -inf
    %v960 = vsel %vm896, %v686, -inf
    %v961 = vsel %vm897, %v689, -inf
    %v962 = vsel %vm898, %v692, -inf
    %v963 = vsel %vm899, %v695, -inf
    %v964 = vsel %vm900, %v698, -inf
    %v965 = vsel %vm901, %v701, -inf
    %v966 = vsel %vm902, %v704, -inf
    %v967 = vsel %vm887, %v724, -inf
    %v968 = vsel %vm888, %v727, -inf
    %v969 = vsel %vm889, %v730, -inf
    %v970 = vsel %vm890, %v733, -inf
    %v971 = vsel %vm891, %v736, -inf
    %v972 = vsel %vm892, %v739, -inf
    %v973 = vsel %vm893, %v742, -inf
    %v974 = vsel %vm894, %v745, -inf
    %v975 = vsel %vm895, %v748, -inf
    %v976 = vsel %vm896, %v751, -inf
    %v977 = vsel %vm897, %v754, -inf
    %v978 = vsel %vm898, %v757, -inf
    %v979 = vsel %vm899, %v760, -inf
    %v980 = vsel %vm900, %v763, -inf
    %v981 = vsel %vm901, %v766, -inf
    %v982 = vsel %vm902, %v769, -inf
    %v983 = vsel %vm887, %v789, -inf
    %v984 = vsel %vm888, %v792, -inf
    %v985 = vsel %vm889, %v795, -inf
    %v986 = vsel %vm890, %v798, -inf
    %v987 = vsel %vm891, %v801, -inf
    %v988 = vsel %vm892, %v804, -inf
    %v989 = vsel %vm893, %v807, -inf
    %v990 = vsel %vm894, %v810, -inf
    %v991 = vsel %vm895, %v813, -inf
    %v992 = vsel %vm896, %v816, -inf
    %v993 = vsel %vm897, %v819, -inf
    %v994 = vsel %vm898, %v822, -inf
    %v995 = vsel %vm899, %v825, -inf
    %v996 = vsel %vm900, %v828, -inf
    %v997 = vsel %vm901, %v831, -inf
    %v998 = vsel %vm902, %v834, -inf
    %999 = vmax.xlane.f32.xlu0 %v903
    %v1000 = vpop.xlane.xlu0 %999
    %1001 = vmax.xlane.f32.xlu0 %v904
    %v1002 = vpop.xlane.xlu0 %1001
    %1003 = vmax.xlane.f32.xlu0 %v905
    %v1004 = vpop.xlane.xlu0 %1003
    %1005 = vmax.xlane.f32.xlu0 %v906
    %v1006 = vpop.xlane.xlu0 %1005
    %1007 = vmax.xlane.f32.xlu0 %v907
    %v1008 = vpop.xlane.xlu0 %1007
    %1009 = vmax.xlane.f32.xlu0 %v908
    %v1010 = vpop.xlane.xlu0 %1009
    %1011 = vmax.xlane.f32.xlu0 %v909
    %v1012 = vpop.xlane.xlu0 %1011
    %1013 = vmax.xlane.f32.xlu0 %v910
    %v1014 = vpop.xlane.xlu0 %1013
    %1015 = vmax.xlane.f32.xlu0 %v911
    %v1016 = vpop.xlane.xlu0 %1015
    %1017 = vmax.xlane.f32.xlu0 %v912
    %v1018 = vpop.xlane.xlu0 %1017
    %1019 = vmax.xlane.f32.xlu0 %v913
    %v1020 = vpop.xlane.xlu0 %1019
    %1021 = vmax.xlane.f32.xlu0 %v914
    %v1022 = vpop.xlane.xlu0 %1021
    %1023 = vmax.xlane.f32.xlu0 %v915
    %v1024 = vpop.xlane.xlu0 %1023
    %1025 = vmax.xlane.f32.xlu0 %v916
    %v1026 = vpop.xlane.xlu0 %1025
    %1027 = vmax.xlane.f32.xlu0 %v917
    %v1028 = vpop.xlane.xlu0 %1027
    %1029 = vmax.xlane.f32.xlu0 %v918
    %v1030 = vpop.xlane.xlu0 %1029
    %1031 = vmax.xlane.f32.xlu0 %v919
    %v1032 = vpop.xlane.xlu0 %1031
    %1033 = vmax.xlane.f32.xlu0 %v920
    %v1034 = vpop.xlane.xlu0 %1033
    %1035 = vmax.xlane.f32.xlu0 %v921
    %v1036 = vpop.xlane.xlu0 %1035
    %1037 = vmax.xlane.f32.xlu0 %v922
    %v1038 = vpop.xlane.xlu0 %1037
    %1039 = vmax.xlane.f32.xlu0 %v923
    %v1040 = vpop.xlane.xlu0 %1039
    %1041 = vmax.xlane.f32.xlu0 %v924
    %v1042 = vpop.xlane.xlu0 %1041
    %1043 = vmax.xlane.f32.xlu0 %v925
    %v1044 = vpop.xlane.xlu0 %1043
    %1045 = vmax.xlane.f32.xlu0 %v926
    %v1046 = vpop.xlane.xlu0 %1045
    %1047 = vmax.xlane.f32.xlu0 %v927
    %v1048 = vpop.xlane.xlu0 %1047
    %1049 = vmax.xlane.f32.xlu0 %v928
    %v1050 = vpop.xlane.xlu0 %1049
    %1051 = vmax.xlane.f32.xlu0 %v929
    %v1052 = vpop.xlane.xlu0 %1051
    %1053 = vmax.xlane.f32.xlu0 %v930
    %v1054 = vpop.xlane.xlu0 %1053
    %1055 = vmax.xlane.f32.xlu0 %v931
    %v1056 = vpop.xlane.xlu0 %1055
    %1057 = vmax.xlane.f32.xlu0 %v932
    %v1058 = vpop.xlane.xlu0 %1057
    %1059 = vmax.xlane.f32.xlu0 %v933
    %v1060 = vpop.xlane.xlu0 %1059
    %1061 = vmax.xlane.f32.xlu0 %v934
    %v1062 = vpop.xlane.xlu0 %1061
    %1063 = vmax.xlane.f32.xlu0 %v935
    %v1064 = vpop.xlane.xlu0 %1063
    %1065 = vmax.xlane.f32.xlu0 %v936
    %v1066 = vpop.xlane.xlu0 %1065
    %1067 = vmax.xlane.f32.xlu0 %v937
    %v1068 = vpop.xlane.xlu0 %1067
    %1069 = vmax.xlane.f32.xlu0 %v938
    %v1070 = vpop.xlane.xlu0 %1069
    %1071 = vmax.xlane.f32.xlu0 %v939
    %v1072 = vpop.xlane.xlu0 %1071
    %1073 = vmax.xlane.f32.xlu0 %v940
    %v1074 = vpop.xlane.xlu0 %1073
    %1075 = vmax.xlane.f32.xlu0 %v941
    %v1076 = vpop.xlane.xlu0 %1075
    %1077 = vmax.xlane.f32.xlu0 %v942
    %v1078 = vpop.xlane.xlu0 %1077
    %1079 = vmax.xlane.f32.xlu0 %v943
    %v1080 = vpop.xlane.xlu0 %1079
    %1081 = vmax.xlane.f32.xlu0 %v944
    %v1082 = vpop.xlane.xlu0 %1081
    %1083 = vmax.xlane.f32.xlu0 %v945
    %v1084 = vpop.xlane.xlu0 %1083
    %1085 = vmax.xlane.f32.xlu0 %v946
    %v1086 = vpop.xlane.xlu0 %1085
    %1087 = vmax.xlane.f32.xlu0 %v947
    %v1088 = vpop.xlane.xlu0 %1087
    %1089 = vmax.xlane.f32.xlu0 %v948
    %v1090 = vpop.xlane.xlu0 %1089
    %1091 = vmax.xlane.f32.xlu0 %v949
    %v1092 = vpop.xlane.xlu0 %1091
    %1093 = vmax.xlane.f32.xlu0 %v950
    %v1094 = vpop.xlane.xlu0 %1093
    %1095 = vmax.xlane.f32.xlu0 %v951
    %v1096 = vpop.xlane.xlu0 %1095
    %1097 = vmax.xlane.f32.xlu0 %v952
    %v1098 = vpop.xlane.xlu0 %1097
    %1099 = vmax.xlane.f32.xlu0 %v953
    %v1100 = vpop.xlane.xlu0 %1099
    %1101 = vmax.xlane.f32.xlu0 %v954
    %v1102 = vpop.xlane.xlu0 %1101
    %1103 = vmax.xlane.f32.xlu0 %v955
    %v1104 = vpop.xlane.xlu0 %1103
    %1105 = vmax.xlane.f32.xlu0 %v956
    %v1106 = vpop.xlane.xlu0 %1105
    %1107 = vmax.xlane.f32.xlu0 %v957
    %v1108 = vpop.xlane.xlu0 %1107
    %1109 = vmax.xlane.f32.xlu0 %v958
    %v1110 = vpop.xlane.xlu0 %1109
    %1111 = vmax.xlane.f32.xlu0 %v959
    %v1112 = vpop.xlane.xlu0 %1111
    %1113 = vmax.xlane.f32.xlu0 %v960
    %v1114 = vpop.xlane.xlu0 %1113
    %1115 = vmax.xlane.f32.xlu0 %v961
    %v1116 = vpop.xlane.xlu0 %1115
    %1117 = vmax.xlane.f32.xlu0 %v962
    %v1118 = vpop.xlane.xlu0 %1117
    %1119 = vmax.xlane.f32.xlu0 %v963
    %v1120 = vpop.xlane.xlu0 %1119
    %1121 = vmax.xlane.f32.xlu0 %v964
    %v1122 = vpop.xlane.xlu0 %1121
    %1123 = vmax.xlane.f32.xlu0 %v965
    %v1124 = vpop.xlane.xlu0 %1123
    %1125 = vmax.xlane.f32.xlu0 %v966
    %v1126 = vpop.xlane.xlu0 %1125
    %1127 = vmax.xlane.f32.xlu0 %v967
    %v1128 = vpop.xlane.xlu0 %1127
    %1129 = vmax.xlane.f32.xlu0 %v968
    %v1130 = vpop.xlane.xlu0 %1129
    %1131 = vmax.xlane.f32.xlu0 %v969
    %v1132 = vpop.xlane.xlu0 %1131
    %1133 = vmax.xlane.f32.xlu0 %v970
    %v1134 = vpop.xlane.xlu0 %1133
    %1135 = vmax.xlane.f32.xlu0 %v971
    %v1136 = vpop.xlane.xlu0 %1135
    %1137 = vmax.xlane.f32.xlu0 %v972
    %v1138 = vpop.xlane.xlu0 %1137
    %1139 = vmax.xlane.f32.xlu0 %v973
    %v1140 = vpop.xlane.xlu0 %1139
    %1141 = vmax.xlane.f32.xlu0 %v974
    %v1142 = vpop.xlane.xlu0 %1141
    %1143 = vmax.xlane.f32.xlu0 %v975
    %v1144 = vpop.xlane.xlu0 %1143
    %1145 = vmax.xlane.f32.xlu0 %v976
    %v1146 = vpop.xlane.xlu0 %1145
    %1147 = vmax.xlane.f32.xlu0 %v977
    %v1148 = vpop.xlane.xlu0 %1147
    %1149 = vmax.xlane.f32.xlu0 %v978
    %v1150 = vpop.xlane.xlu0 %1149
    %1151 = vmax.xlane.f32.xlu0 %v979
    %v1152 = vpop.xlane.xlu0 %1151
    %1153 = vmax.xlane.f32.xlu0 %v980
    %v1154 = vpop.xlane.xlu0 %1153
    %1155 = vmax.xlane.f32.xlu0 %v981
    %v1156 = vpop.xlane.xlu0 %1155
    %1157 = vmax.xlane.f32.xlu0 %v982
    %v1158 = vpop.xlane.xlu0 %1157
    %1159 = vmax.xlane.f32.xlu0 %v983
    %v1160 = vpop.xlane.xlu0 %1159
    %1161 = vmax.xlane.f32.xlu0 %v984
    %v1162 = vpop.xlane.xlu0 %1161
    %1163 = vmax.xlane.f32.xlu0 %v985
    %v1164 = vpop.xlane.xlu0 %1163
    %1165 = vmax.xlane.f32.xlu0 %v986
    %v1166 = vpop.xlane.xlu0 %1165
    %1167 = vmax.xlane.f32.xlu0 %v987
    %v1168 = vpop.xlane.xlu0 %1167
    %1169 = vmax.xlane.f32.xlu0 %v988
    %v1170 = vpop.xlane.xlu0 %1169
    %1171 = vmax.xlane.f32.xlu0 %v989
    %v1172 = vpop.xlane.xlu0 %1171
    %1173 = vmax.xlane.f32.xlu0 %v990
    %v1174 = vpop.xlane.xlu0 %1173
    %1175 = vmax.xlane.f32.xlu0 %v991
    %v1176 = vpop.xlane.xlu0 %1175
    %1177 = vmax.xlane.f32.xlu0 %v992
    %v1178 = vpop.xlane.xlu0 %1177
    %1179 = vmax.xlane.f32.xlu0 %v993
    %v1180 = vpop.xlane.xlu0 %1179
    %1181 = vmax.xlane.f32.xlu0 %v994
    %v1182 = vpop.xlane.xlu0 %1181
    %1183 = vmax.xlane.f32.xlu0 %v995
    %v1184 = vpop.xlane.xlu0 %1183
    %1185 = vmax.xlane.f32.xlu0 %v996
    %v1186 = vpop.xlane.xlu0 %1185
    %1187 = vmax.xlane.f32.xlu0 %v997
    %v1188 = vpop.xlane.xlu0 %1187
    %1189 = vmax.xlane.f32.xlu0 %v998
    %v1190 = vpop.xlane.xlu0 %1189
    %v1191 = vsub.f32 %v903, %v1000
    %v1192 = vsub.f32 %v904, %v1002
    %v1193 = vsub.f32 %v905, %v1004
    %v1194 = vsub.f32 %v906, %v1006
    %v1195 = vsub.f32 %v907, %v1008
    %v1196 = vsub.f32 %v908, %v1010
    %v1197 = vsub.f32 %v909, %v1012
    %v1198 = vsub.f32 %v910, %v1014
    %v1199 = vsub.f32 %v911, %v1016
    %v1200 = vsub.f32 %v912, %v1018
    %v1201 = vsub.f32 %v913, %v1020
    %v1202 = vsub.f32 %v914, %v1022
    %v1203 = vsub.f32 %v915, %v1024
    %v1204 = vsub.f32 %v916, %v1026
    %v1205 = vsub.f32 %v917, %v1028
    %v1206 = vsub.f32 %v918, %v1030
    %v1207 = vsub.f32 %v919, %v1032
    %v1208 = vsub.f32 %v920, %v1034
    %v1209 = vsub.f32 %v921, %v1036
    %v1210 = vsub.f32 %v922, %v1038
    %v1211 = vsub.f32 %v923, %v1040
    %v1212 = vsub.f32 %v924, %v1042
    %v1213 = vsub.f32 %v925, %v1044
    %v1214 = vsub.f32 %v926, %v1046
    %v1215 = vsub.f32 %v927, %v1048
    %v1216 = vsub.f32 %v928, %v1050
    %v1217 = vsub.f32 %v929, %v1052
    %v1218 = vsub.f32 %v930, %v1054
    %v1219 = vsub.f32 %v931, %v1056
    %v1220 = vsub.f32 %v932, %v1058
    %v1221 = vsub.f32 %v933, %v1060
    %v1222 = vsub.f32 %v934, %v1062
    %v1223 = vsub.f32 %v935, %v1064
    %v1224 = vsub.f32 %v936, %v1066
    %v1225 = vsub.f32 %v937, %v1068
    %v1226 = vsub.f32 %v938, %v1070
    %v1227 = vsub.f32 %v939, %v1072
    %v1228 = vsub.f32 %v940, %v1074
    %v1229 = vsub.f32 %v941, %v1076
    %v1230 = vsub.f32 %v942, %v1078
    %v1231 = vsub.f32 %v943, %v1080
    %v1232 = vsub.f32 %v944, %v1082
    %v1233 = vsub.f32 %v945, %v1084
    %v1234 = vsub.f32 %v946, %v1086
    %v1235 = vsub.f32 %v947, %v1088
    %v1236 = vsub.f32 %v948, %v1090
    %v1237 = vsub.f32 %v949, %v1092
    %v1238 = vsub.f32 %v950, %v1094
    %v1239 = vsub.f32 %v951, %v1096
    %v1240 = vsub.f32 %v952, %v1098
    %v1241 = vsub.f32 %v953, %v1100
    %v1242 = vsub.f32 %v954, %v1102
    %v1243 = vsub.f32 %v955, %v1104
    %v1244 = vsub.f32 %v956, %v1106
    %v1245 = vsub.f32 %v957, %v1108
    %v1246 = vsub.f32 %v958, %v1110
    %v1247 = vsub.f32 %v959, %v1112
    %v1248 = vsub.f32 %v960, %v1114
    %v1249 = vsub.f32 %v961, %v1116
    %v1250 = vsub.f32 %v962, %v1118
    %v1251 = vsub.f32 %v963, %v1120
    %v1252 = vsub.f32 %v964, %v1122
    %v1253 = vsub.f32 %v965, %v1124
    %v1254 = vsub.f32 %v966, %v1126
    %v1255 = vsub.f32 %v967, %v1128
    %v1256 = vsub.f32 %v968, %v1130
    %v1257 = vsub.f32 %v969, %v1132
    %v1258 = vsub.f32 %v970, %v1134
    %v1259 = vsub.f32 %v971, %v1136
    %v1260 = vsub.f32 %v972, %v1138
    %v1261 = vsub.f32 %v973, %v1140
    %v1262 = vsub.f32 %v974, %v1142
    %v1263 = vsub.f32 %v975, %v1144
    %v1264 = vsub.f32 %v976, %v1146
    %v1265 = vsub.f32 %v977, %v1148
    %v1266 = vsub.f32 %v978, %v1150
    %v1267 = vsub.f32 %v979, %v1152
    %v1268 = vsub.f32 %v980, %v1154
    %v1269 = vsub.f32 %v981, %v1156
    %v1270 = vsub.f32 %v982, %v1158
    %v1271 = vsub.f32 %v983, %v1160
    %v1272 = vsub.f32 %v984, %v1162
    %v1273 = vsub.f32 %v985, %v1164
    %v1274 = vsub.f32 %v986, %v1166
    %v1275 = vsub.f32 %v987, %v1168
    %v1276 = vsub.f32 %v988, %v1170
    %v1277 = vsub.f32 %v989, %v1172
    %v1278 = vsub.f32 %v990, %v1174
    %v1279 = vsub.f32 %v991, %v1176
    %v1280 = vsub.f32 %v992, %v1178
    %v1281 = vsub.f32 %v993, %v1180
    %v1282 = vsub.f32 %v994, %v1182
    %v1283 = vsub.f32 %v995, %v1184
    %v1284 = vsub.f32 %v996, %v1186
    %v1285 = vsub.f32 %v997, %v1188
    %v1286 = vsub.f32 %v998, %v1190
    %v1287 = vmul.f32 %v1191, 1.442695
    %v1288 = vpow.pop %v1287
    %v1289 = vmul.f32 %v1192, 1.442695
    %v1290 = vpow.pop %v1289
    %v1291 = vmul.f32 %v1193, 1.442695
    %v1292 = vpow.pop %v1291
    %v1293 = vmul.f32 %v1194, 1.442695
    %v1294 = vpow.pop %v1293
    %v1295 = vmul.f32 %v1195, 1.442695
    %v1296 = vpow.pop %v1295
    %v1297 = vmul.f32 %v1196, 1.442695
    %v1298 = vpow.pop %v1297
    %v1299 = vmul.f32 %v1197, 1.442695
    %v1300 = vpow.pop %v1299
    %v1301 = vmul.f32 %v1198, 1.442695
    %v1302 = vpow.pop %v1301
    %v1303 = vmul.f32 %v1199, 1.442695
    %v1304 = vpow.pop %v1303
    %v1305 = vmul.f32 %v1200, 1.442695
    %v1306 = vpow.pop %v1305
    %v1307 = vmul.f32 %v1201, 1.442695
    %v1308 = vpow.pop %v1307
    %v1309 = vmul.f32 %v1202, 1.442695
    %v1310 = vpow.pop %v1309
    %v1311 = vmul.f32 %v1203, 1.442695
    %v1312 = vpow.pop %v1311
    %v1313 = vmul.f32 %v1204, 1.442695
    %v1314 = vpow.pop %v1313
    %v1315 = vmul.f32 %v1205, 1.442695
    %v1316 = vpow.pop %v1315
    %v1317 = vmul.f32 %v1206, 1.442695
    %v1318 = vpow.pop %v1317
    %v1319 = vmul.f32 %v1207, 1.442695
    %v1320 = vpow.pop %v1319
    %v1321 = vmul.f32 %v1208, 1.442695
    %v1322 = vpow.pop %v1321
    %v1323 = vmul.f32 %v1209, 1.442695
    %v1324 = vpow.pop %v1323
    %v1325 = vmul.f32 %v1210, 1.442695
    %v1326 = vpow.pop %v1325
    %v1327 = vmul.f32 %v1211, 1.442695
    %v1328 = vpow.pop %v1327
    %v1329 = vmul.f32 %v1212, 1.442695
    %v1330 = vpow.pop %v1329
    %v1331 = vmul.f32 %v1213, 1.442695
    %v1332 = vpow.pop %v1331
    %v1333 = vmul.f32 %v1214, 1.442695
    %v1334 = vpow.pop %v1333
    %v1335 = vmul.f32 %v1215, 1.442695
    %v1336 = vpow.pop %v1335
    %v1337 = vmul.f32 %v1216, 1.442695
    %v1338 = vpow.pop %v1337
    %v1339 = vmul.f32 %v1217, 1.442695
    %v1340 = vpow.pop %v1339
    %v1341 = vmul.f32 %v1218, 1.442695
    %v1342 = vpow.pop %v1341
    %v1343 = vmul.f32 %v1219, 1.442695
    %v1344 = vpow.pop %v1343
    %v1345 = vmul.f32 %v1220, 1.442695
    %v1346 = vpow.pop %v1345
    %v1347 = vmul.f32 %v1221, 1.442695
    %v1348 = vpow.pop %v1347
    %v1349 = vmul.f32 %v1222, 1.442695
    %v1350 = vpow.pop %v1349
    %v1351 = vmul.f32 %v1223, 1.442695
    %v1352 = vpow.pop %v1351
    %v1353 = vmul.f32 %v1224, 1.442695
    %v1354 = vpow.pop %v1353
    %v1355 = vmul.f32 %v1225, 1.442695
    %v1356 = vpow.pop %v1355
    %v1357 = vmul.f32 %v1226, 1.442695
    %v1358 = vpow.pop %v1357
    %v1359 = vmul.f32 %v1227, 1.442695
    %v1360 = vpow.pop %v1359
    %v1361 = vmul.f32 %v1228, 1.442695
    %v1362 = vpow.pop %v1361
    %v1363 = vmul.f32 %v1229, 1.442695
    %v1364 = vpow.pop %v1363
    %v1365 = vmul.f32 %v1230, 1.442695
    %v1366 = vpow.pop %v1365
    %v1367 = vmul.f32 %v1231, 1.442695
    %v1368 = vpow.pop %v1367
    %v1369 = vmul.f32 %v1232, 1.442695
    %v1370 = vpow.pop %v1369
    %v1371 = vmul.f32 %v1233, 1.442695
    %v1372 = vpow.pop %v1371
    %v1373 = vmul.f32 %v1234, 1.442695
    %v1374 = vpow.pop %v1373
    %v1375 = vmul.f32 %v1235, 1.442695
    %v1376 = vpow.pop %v1375
    %v1377 = vmul.f32 %v1236, 1.442695
    %v1378 = vpow.pop %v1377
    %v1379 = vmul.f32 %v1237, 1.442695
    %v1380 = vpow.pop %v1379
    %v1381 = vmul.f32 %v1238, 1.442695
    %v1382 = vpow.pop %v1381
    %v1383 = vmul.f32 %v1239, 1.442695
    %v1384 = vpow.pop %v1383
    %v1385 = vmul.f32 %v1240, 1.442695
    %v1386 = vpow.pop %v1385
    %v1387 = vmul.f32 %v1241, 1.442695
    %v1388 = vpow.pop %v1387
    %v1389 = vmul.f32 %v1242, 1.442695
    %v1390 = vpow.pop %v1389
    %v1391 = vmul.f32 %v1243, 1.442695
    %v1392 = vpow.pop %v1391
    %v1393 = vmul.f32 %v1244, 1.442695
    %v1394 = vpow.pop %v1393
    %v1395 = vmul.f32 %v1245, 1.442695
    %v1396 = vpow.pop %v1395
    %v1397 = vmul.f32 %v1246, 1.442695
    %v1398 = vpow.pop %v1397
    %v1399 = vmul.f32 %v1247, 1.442695
    %v1400 = vpow.pop %v1399
    %v1401 = vmul.f32 %v1248, 1.442695
    %v1402 = vpow.pop %v1401
    %v1403 = vmul.f32 %v1249, 1.442695
    %v1404 = vpow.pop %v1403
    %v1405 = vmul.f32 %v1250, 1.442695
    %v1406 = vpow.pop %v1405
    %v1407 = vmul.f32 %v1251, 1.442695
    %v1408 = vpow.pop %v1407
    %v1409 = vmul.f32 %v1252, 1.442695
    %v1410 = vpow.pop %v1409
    %v1411 = vmul.f32 %v1253, 1.442695
    %v1412 = vpow.pop %v1411
    %v1413 = vmul.f32 %v1254, 1.442695
    %v1414 = vpow.pop %v1413
    %v1415 = vmul.f32 %v1255, 1.442695
    %v1416 = vpow.pop %v1415
    %v1417 = vmul.f32 %v1256, 1.442695
    %v1418 = vpow.pop %v1417
    %v1419 = vmul.f32 %v1257, 1.442695
    %v1420 = vpow.pop %v1419
    %v1421 = vmul.f32 %v1258, 1.442695
    %v1422 = vpow.pop %v1421
    %v1423 = vmul.f32 %v1259, 1.442695
    %v1424 = vpow.pop %v1423
    %v1425 = vmul.f32 %v1260, 1.442695
    %v1426 = vpow.pop %v1425
    %v1427 = vmul.f32 %v1261, 1.442695
    %v1428 = vpow.pop %v1427
    %v1429 = vmul.f32 %v1262, 1.442695
    %v1430 = vpow.pop %v1429
    %v1431 = vmul.f32 %v1263, 1.442695
    %v1432 = vpow.pop %v1431
    %v1433 = vmul.f32 %v1264, 1.442695
    %v1434 = vpow.pop %v1433
    %v1435 = vmul.f32 %v1265, 1.442695
    %v1436 = vpow.pop %v1435
    %v1437 = vmul.f32 %v1266, 1.442695
    %v1438 = vpow.pop %v1437
    %v1439 = vmul.f32 %v1267, 1.442695
    %v1440 = vpow.pop %v1439
    %v1441 = vmul.f32 %v1268, 1.442695
    %v1442 = vpow.pop %v1441
    %v1443 = vmul.f32 %v1269, 1.442695
    %v1444 = vpow.pop %v1443
    %v1445 = vmul.f32 %v1270, 1.442695
    %v1446 = vpow.pop %v1445
    %v1447 = vmul.f32 %v1271, 1.442695
    %v1448 = vpow.pop %v1447
    %v1449 = vmul.f32 %v1272, 1.442695
    %v1450 = vpow.pop %v1449
    %v1451 = vmul.f32 %v1273, 1.442695
    %v1452 = vpow.pop %v1451
    %v1453 = vmul.f32 %v1274, 1.442695
    %v1454 = vpow.pop %v1453
    %v1455 = vmul.f32 %v1275, 1.442695
    %v1456 = vpow.pop %v1455
    %v1457 = vmul.f32 %v1276, 1.442695
    %v1458 = vpow.pop %v1457
    %v1459 = vmul.f32 %v1277, 1.442695
    %v1460 = vpow.pop %v1459
    %v1461 = vmul.f32 %v1278, 1.442695
    %v1462 = vpow.pop %v1461
    %v1463 = vmul.f32 %v1279, 1.442695
    %v1464 = vpow.pop %v1463
    %v1465 = vmul.f32 %v1280, 1.442695
    %v1466 = vpow.pop %v1465
    %v1467 = vmul.f32 %v1281, 1.442695
    %v1468 = vpow.pop %v1467
    %v1469 = vmul.f32 %v1282, 1.442695
    %v1470 = vpow.pop %v1469
    %v1471 = vmul.f32 %v1283, 1.442695
    %v1472 = vpow.pop %v1471
    %v1473 = vmul.f32 %v1284, 1.442695
    %v1474 = vpow.pop %v1473
    %v1475 = vmul.f32 %v1285, 1.442695
    %v1476 = vpow.pop %v1475
    %v1477 = vmul.f32 %v1286, 1.442695
    %v1478 = vpow.pop %v1477
    %1479 = vadd.xlane.f32.xlu0 %v1288
    %v1480 = vpop.xlane.xlu0 %1479
    %1481 = vadd.xlane.f32.xlu0 %v1290
    %v1482 = vpop.xlane.xlu0 %1481
    %1483 = vadd.xlane.f32.xlu0 %v1292
    %v1484 = vpop.xlane.xlu0 %1483
    %1485 = vadd.xlane.f32.xlu0 %v1294
    %v1486 = vpop.xlane.xlu0 %1485
    %1487 = vadd.xlane.f32.xlu0 %v1296
    %v1488 = vpop.xlane.xlu0 %1487
    %1489 = vadd.xlane.f32.xlu0 %v1298
    %v1490 = vpop.xlane.xlu0 %1489
    %1491 = vadd.xlane.f32.xlu0 %v1300
    %v1492 = vpop.xlane.xlu0 %1491
    %1493 = vadd.xlane.f32.xlu0 %v1302
    %v1494 = vpop.xlane.xlu0 %1493
    %1495 = vadd.xlane.f32.xlu0 %v1304
    %v1496 = vpop.xlane.xlu0 %1495
    %1497 = vadd.xlane.f32.xlu0 %v1306
    %v1498 = vpop.xlane.xlu0 %1497
    %1499 = vadd.xlane.f32.xlu0 %v1308
    %v1500 = vpop.xlane.xlu0 %1499
    %1501 = vadd.xlane.f32.xlu0 %v1310
    %v1502 = vpop.xlane.xlu0 %1501
    %1503 = vadd.xlane.f32.xlu0 %v1312
    %v1504 = vpop.xlane.xlu0 %1503
    %1505 = vadd.xlane.f32.xlu0 %v1314
    %v1506 = vpop.xlane.xlu0 %1505
    %1507 = vadd.xlane.f32.xlu0 %v1316
    %v1508 = vpop.xlane.xlu0 %1507
    %1509 = vadd.xlane.f32.xlu0 %v1318
    %v1510 = vpop.xlane.xlu0 %1509
    %1511 = vadd.xlane.f32.xlu0 %v1320
    %v1512 = vpop.xlane.xlu0 %1511
    %1513 = vadd.xlane.f32.xlu0 %v1322
    %v1514 = vpop.xlane.xlu0 %1513
    %1515 = vadd.xlane.f32.xlu0 %v1324
    %v1516 = vpop.xlane.xlu0 %1515
    %1517 = vadd.xlane.f32.xlu0 %v1326
    %v1518 = vpop.xlane.xlu0 %1517
    %1519 = vadd.xlane.f32.xlu0 %v1328
    %v1520 = vpop.xlane.xlu0 %1519
    %1521 = vadd.xlane.f32.xlu0 %v1330
    %v1522 = vpop.xlane.xlu0 %1521
    %1523 = vadd.xlane.f32.xlu0 %v1332
    %v1524 = vpop.xlane.xlu0 %1523
    %1525 = vadd.xlane.f32.xlu0 %v1334
    %v1526 = vpop.xlane.xlu0 %1525
    %1527 = vadd.xlane.f32.xlu0 %v1336
    %v1528 = vpop.xlane.xlu0 %1527
    %1529 = vadd.xlane.f32.xlu0 %v1338
    %v1530 = vpop.xlane.xlu0 %1529
    %1531 = vadd.xlane.f32.xlu0 %v1340
    %v1532 = vpop.xlane.xlu0 %1531
    %1533 = vadd.xlane.f32.xlu0 %v1342
    %v1534 = vpop.xlane.xlu0 %1533
    %1535 = vadd.xlane.f32.xlu0 %v1344
    %v1536 = vpop.xlane.xlu0 %1535
    %1537 = vadd.xlane.f32.xlu0 %v1346
    %v1538 = vpop.xlane.xlu0 %1537
    %1539 = vadd.xlane.f32.xlu0 %v1348
    %v1540 = vpop.xlane.xlu0 %1539
    %1541 = vadd.xlane.f32.xlu0 %v1350
    %v1542 = vpop.xlane.xlu0 %1541
    %1543 = vadd.xlane.f32.xlu0 %v1352
    %v1544 = vpop.xlane.xlu0 %1543
    %1545 = vadd.xlane.f32.xlu0 %v1354
    %v1546 = vpop.xlane.xlu0 %1545
    %1547 = vadd.xlane.f32.xlu0 %v1356
    %v1548 = vpop.xlane.xlu0 %1547
    %1549 = vadd.xlane.f32.xlu0 %v1358
    %v1550 = vpop.xlane.xlu0 %1549
    %1551 = vadd.xlane.f32.xlu0 %v1360
    %v1552 = vpop.xlane.xlu0 %1551
    %1553 = vadd.xlane.f32.xlu0 %v1362
    %v1554 = vpop.xlane.xlu0 %1553
    %1555 = vadd.xlane.f32.xlu0 %v1364
    %v1556 = vpop.xlane.xlu0 %1555
    %1557 = vadd.xlane.f32.xlu0 %v1366
    %v1558 = vpop.xlane.xlu0 %1557
    %1559 = vadd.xlane.f32.xlu0 %v1368
    %v1560 = vpop.xlane.xlu0 %1559
    %1561 = vadd.xlane.f32.xlu0 %v1370
    %v1562 = vpop.xlane.xlu0 %1561
    %1563 = vadd.xlane.f32.xlu0 %v1372
    %v1564 = vpop.xlane.xlu0 %1563
    %1565 = vadd.xlane.f32.xlu0 %v1374
    %v1566 = vpop.xlane.xlu0 %1565
    %1567 = vadd.xlane.f32.xlu0 %v1376
    %v1568 = vpop.xlane.xlu0 %1567
    %1569 = vadd.xlane.f32.xlu0 %v1378
    %v1570 = vpop.xlane.xlu0 %1569
    %1571 = vadd.xlane.f32.xlu0 %v1380
    %v1572 = vpop.xlane.xlu0 %1571
    %1573 = vadd.xlane.f32.xlu0 %v1382
    %v1574 = vpop.xlane.xlu0 %1573
    %1575 = vadd.xlane.f32.xlu0 %v1384
    %v1576 = vpop.xlane.xlu0 %1575
    %1577 = vadd.xlane.f32.xlu0 %v1386
    %v1578 = vpop.xlane.xlu0 %1577
    %1579 = vadd.xlane.f32.xlu0 %v1388
    %v1580 = vpop.xlane.xlu0 %1579
    %1581 = vadd.xlane.f32.xlu0 %v1390
    %v1582 = vpop.xlane.xlu0 %1581
    %1583 = vadd.xlane.f32.xlu0 %v1392
    %v1584 = vpop.xlane.xlu0 %1583
    %1585 = vadd.xlane.f32.xlu0 %v1394
    %v1586 = vpop.xlane.xlu0 %1585
    %1587 = vadd.xlane.f32.xlu0 %v1396
    %v1588 = vpop.xlane.xlu0 %1587
    %1589 = vadd.xlane.f32.xlu0 %v1398
    %v1590 = vpop.xlane.xlu0 %1589
    %1591 = vadd.xlane.f32.xlu0 %v1400
    %v1592 = vpop.xlane.xlu0 %1591
    %1593 = vadd.xlane.f32.xlu0 %v1402
    %v1594 = vpop.xlane.xlu0 %1593
    %1595 = vadd.xlane.f32.xlu0 %v1404
    %v1596 = vpop.xlane.xlu0 %1595
    %1597 = vadd.xlane.f32.xlu0 %v1406
    %v1598 = vpop.xlane.xlu0 %1597
    %1599 = vadd.xlane.f32.xlu0 %v1408
    %v1600 = vpop.xlane.xlu0 %1599
    %1601 = vadd.xlane.f32.xlu0 %v1410
    %v1602 = vpop.xlane.xlu0 %1601
    %1603 = vadd.xlane.f32.xlu0 %v1412
    %v1604 = vpop.xlane.xlu0 %1603
    %1605 = vadd.xlane.f32.xlu0 %v1414
    %v1606 = vpop.xlane.xlu0 %1605
    %1607 = vadd.xlane.f32.xlu0 %v1416
    %v1608 = vpop.xlane.xlu0 %1607
    %1609 = vadd.xlane.f32.xlu0 %v1418
    %v1610 = vpop.xlane.xlu0 %1609
    %1611 = vadd.xlane.f32.xlu0 %v1420
    %v1612 = vpop.xlane.xlu0 %1611
    %1613 = vadd.xlane.f32.xlu0 %v1422
    %v1614 = vpop.xlane.xlu0 %1613
    %1615 = vadd.xlane.f32.xlu0 %v1424
    %v1616 = vpop.xlane.xlu0 %1615
    %1617 = vadd.xlane.f32.xlu0 %v1426
    %v1618 = vpop.xlane.xlu0 %1617
    %1619 = vadd.xlane.f32.xlu0 %v1428
    %v1620 = vpop.xlane.xlu0 %1619
    %1621 = vadd.xlane.f32.xlu0 %v1430
    %v1622 = vpop.xlane.xlu0 %1621
    %1623 = vadd.xlane.f32.xlu0 %v1432
    %v1624 = vpop.xlane.xlu0 %1623
    %1625 = vadd.xlane.f32.xlu0 %v1434
    %v1626 = vpop.xlane.xlu0 %1625
    %1627 = vadd.xlane.f32.xlu0 %v1436
    %v1628 = vpop.xlane.xlu0 %1627
    %1629 = vadd.xlane.f32.xlu0 %v1438
    %v1630 = vpop.xlane.xlu0 %1629
    %1631 = vadd.xlane.f32.xlu0 %v1440
    %v1632 = vpop.xlane.xlu0 %1631
    %1633 = vadd.xlane.f32.xlu0 %v1442
    %v1634 = vpop.xlane.xlu0 %1633
    %1635 = vadd.xlane.f32.xlu0 %v1444
    %v1636 = vpop.xlane.xlu0 %1635
    %1637 = vadd.xlane.f32.xlu0 %v1446
    %v1638 = vpop.xlane.xlu0 %1637
    %1639 = vadd.xlane.f32.xlu0 %v1448
    %v1640 = vpop.xlane.xlu0 %1639
    %1641 = vadd.xlane.f32.xlu0 %v1450
    %v1642 = vpop.xlane.xlu0 %1641
    %1643 = vadd.xlane.f32.xlu0 %v1452
    %v1644 = vpop.xlane.xlu0 %1643
    %1645 = vadd.xlane.f32.xlu0 %v1454
    %v1646 = vpop.xlane.xlu0 %1645
    %1647 = vadd.xlane.f32.xlu0 %v1456
    %v1648 = vpop.xlane.xlu0 %1647
    %1649 = vadd.xlane.f32.xlu0 %v1458
    %v1650 = vpop.xlane.xlu0 %1649
    %1651 = vadd.xlane.f32.xlu0 %v1460
    %v1652 = vpop.xlane.xlu0 %1651
    %1653 = vadd.xlane.f32.xlu0 %v1462
    %v1654 = vpop.xlane.xlu0 %1653
    %1655 = vadd.xlane.f32.xlu0 %v1464
    %v1656 = vpop.xlane.xlu0 %1655
    %1657 = vadd.xlane.f32.xlu0 %v1466
    %v1658 = vpop.xlane.xlu0 %1657
    %1659 = vadd.xlane.f32.xlu0 %v1468
    %v1660 = vpop.xlane.xlu0 %1659
    %1661 = vadd.xlane.f32.xlu0 %v1470
    %v1662 = vpop.xlane.xlu0 %1661
    %1663 = vadd.xlane.f32.xlu0 %v1472
    %v1664 = vpop.xlane.xlu0 %1663
    %1665 = vadd.xlane.f32.xlu0 %v1474
    %v1666 = vpop.xlane.xlu0 %1665
    %1667 = vadd.xlane.f32.xlu0 %v1476
    %v1668 = vpop.xlane.xlu0 %1667
    %1669 = vadd.xlane.f32.xlu0 %v1478
    %v1670 = vpop.xlane.xlu0 %1669
    %1671 = vmatpush.msra.mxu0 %v365
    %1672 = vmatpush.msra.mxu0 %v364
    %1673 = vmatpush.msra.mxu0 %v363
    %1674 = vmatpush.msra.mxu0 %v362
    %1675 = vmatpush.msra.mxu0 %v361
    %1676 = vmatpush.msra.mxu0 %v360
    %1677 = vmatpush.msra.mxu0 %v359
    %1678 = vmatpush.msra.mxu0 %v358
    %1679 = vmatpush.msra.mxu0 %v357
    %1680 = vmatpush.msra.mxu0 %v356
    %1681 = vmatpush.msra.mxu0 %v355
    %1682 = vmatpush.msra.mxu0 %v354
    %1683 = vmatpush.msra.mxu0 %v353
    %1684 = vmatpush.msra.mxu0 %v352
    %1685 = vmatpush.msra.mxu0 %v351
    %1686 = vmatpush.msra.mxu0 %v350
    %1687 = vmatmul.f32.gmra.mxu0 %v1288
    %v1688 = vpop.f32.mrf.mxu0
    %v1689 = vadd.f32 0.0, %v1688
    %1690 = vmatmul.f32.gmra.mxu0 %v1290
    %v1691 = vpop.f32.mrf.mxu0
    %v1692 = vadd.f32 0.0, %v1691
    %1693 = vmatmul.f32.gmra.mxu0 %v1292
    %v1694 = vpop.f32.mrf.mxu0
    %v1695 = vadd.f32 0.0, %v1694
    %1696 = vmatmul.f32.gmra.mxu0 %v1294
    %v1697 = vpop.f32.mrf.mxu0
    %v1698 = vadd.f32 0.0, %v1697
    %1699 = vmatmul.f32.gmra.mxu0 %v1296
    %v1700 = vpop.f32.mrf.mxu0
    %v1701 = vadd.f32 0.0, %v1700
    %1702 = vmatmul.f32.gmra.mxu0 %v1298
    %v1703 = vpop.f32.mrf.mxu0
    %v1704 = vadd.f32 0.0, %v1703
    %1705 = vmatmul.f32.gmra.mxu0 %v1300
    %v1706 = vpop.f32.mrf.mxu0
    %v1707 = vadd.f32 0.0, %v1706
    %1708 = vmatmul.f32.gmra.mxu0 %v1302
    %v1709 = vpop.f32.mrf.mxu0
    %v1710 = vadd.f32 0.0, %v1709
    %1711 = vmatmul.f32.gmra.mxu0 %v1304
    %v1712 = vpop.f32.mrf.mxu0
    %v1713 = vadd.f32 0.0, %v1712
    %1714 = vmatmul.f32.gmra.mxu0 %v1306
    %v1715 = vpop.f32.mrf.mxu0
    %v1716 = vadd.f32 0.0, %v1715
    %1717 = vmatmul.f32.gmra.mxu0 %v1308
    %v1718 = vpop.f32.mrf.mxu0
    %v1719 = vadd.f32 0.0, %v1718
    %1720 = vmatmul.f32.gmra.mxu0 %v1310
    %v1721 = vpop.f32.mrf.mxu0
    %v1722 = vadd.f32 0.0, %v1721
    %1723 = vmatmul.f32.gmra.mxu0 %v1312
    %v1724 = vpop.f32.mrf.mxu0
    %v1725 = vadd.f32 0.0, %v1724
    %1726 = vmatmul.f32.gmra.mxu0 %v1314
    %v1727 = vpop.f32.mrf.mxu0
    %v1728 = vadd.f32 0.0, %v1727
    %1729 = vmatmul.f32.gmra.mxu0 %v1316
    %v1730 = vpop.f32.mrf.mxu0
    %v1731 = vadd.f32 0.0, %v1730
    %1732 = vmatmul.f32.gmra.mxu0 %v1318
    %v1733 = vpop.f32.mrf.mxu0
    %v1734 = vadd.f32 0.0, %v1733
    %1735 = vdwg.mxu0
    %1736 = vmatpush.msra.mxu0 %v381
    %1737 = vmatpush.msra.mxu0 %v380
    %1738 = vmatpush.msra.mxu0 %v379
    %1739 = vmatpush.msra.mxu0 %v378
    %1740 = vmatpush.msra.mxu0 %v377
    %1741 = vmatpush.msra.mxu0 %v376
    %1742 = vmatpush.msra.mxu0 %v375
    %1743 = vmatpush.msra.mxu0 %v374
    %1744 = vmatpush.msra.mxu0 %v373
    %1745 = vmatpush.msra.mxu0 %v372
    %1746 = vmatpush.msra.mxu0 %v371
    %1747 = vmatpush.msra.mxu0 %v370
    %1748 = vmatpush.msra.mxu0 %v369
    %1749 = vmatpush.msra.mxu0 %v368
    %1750 = vmatpush.msra.mxu0 %v367
    %1751 = vmatpush.msra.mxu0 %v366
    %1752 = vmatmul.f32.gmra.mxu0 %v1320
    %v1753 = vpop.f32.mrf.mxu0
    %v1754 = vadd.f32 0.0, %v1753
    %1755 = vmatmul.f32.gmra.mxu0 %v1322
    %v1756 = vpop.f32.mrf.mxu0
    %v1757 = vadd.f32 0.0, %v1756
    %1758 = vmatmul.f32.gmra.mxu0 %v1324
    %v1759 = vpop.f32.mrf.mxu0
    %v1760 = vadd.f32 0.0, %v1759
    %1761 = vmatmul.f32.gmra.mxu0 %v1326
    %v1762 = vpop.f32.mrf.mxu0
    %v1763 = vadd.f32 0.0, %v1762
    %1764 = vmatmul.f32.gmra.mxu0 %v1328
    %v1765 = vpop.f32.mrf.mxu0
    %v1766 = vadd.f32 0.0, %v1765
    %1767 = vmatmul.f32.gmra.mxu0 %v1330
    %v1768 = vpop.f32.mrf.mxu0
    %v1769 = vadd.f32 0.0, %v1768
    %1770 = vmatmul.f32.gmra.mxu0 %v1332
    %v1771 = vpop.f32.mrf.mxu0
    %v1772 = vadd.f32 0.0, %v1771
    %1773 = vmatmul.f32.gmra.mxu0 %v1334
    %v1774 = vpop.f32.mrf.mxu0
    %v1775 = vadd.f32 0.0, %v1774
    %1776 = vmatmul.f32.gmra.mxu0 %v1336
    %v1777 = vpop.f32.mrf.mxu0
    %v1778 = vadd.f32 0.0, %v1777
    %1779 = vmatmul.f32.gmra.mxu0 %v1338
    %v1780 = vpop.f32.mrf.mxu0
    %v1781 = vadd.f32 0.0, %v1780
    %1782 = vmatmul.f32.gmra.mxu0 %v1340
    %v1783 = vpop.f32.mrf.mxu0
    %v1784 = vadd.f32 0.0, %v1783
    %1785 = vmatmul.f32.gmra.mxu0 %v1342
    %v1786 = vpop.f32.mrf.mxu0
    %v1787 = vadd.f32 0.0, %v1786
    %1788 = vmatmul.f32.gmra.mxu0 %v1344
    %v1789 = vpop.f32.mrf.mxu0
    %v1790 = vadd.f32 0.0, %v1789
    %1791 = vmatmul.f32.gmra.mxu0 %v1346
    %v1792 = vpop.f32.mrf.mxu0
    %v1793 = vadd.f32 0.0, %v1792
    %1794 = vmatmul.f32.gmra.mxu0 %v1348
    %v1795 = vpop.f32.mrf.mxu0
    %v1796 = vadd.f32 0.0, %v1795
    %1797 = vmatmul.f32.gmra.mxu0 %v1350
    %v1798 = vpop.f32.mrf.mxu0
    %v1799 = vadd.f32 0.0, %v1798
    %1800 = vdwg.mxu0
    %1801 = vmatpush.msra.mxu0 %v397
    %1802 = vmatpush.msra.mxu0 %v396
    %1803 = vmatpush.msra.mxu0 %v395
    %1804 = vmatpush.msra.mxu0 %v394
    %1805 = vmatpush.msra.mxu0 %v393
    %1806 = vmatpush.msra.mxu0 %v392
    %1807 = vmatpush.msra.mxu0 %v391
    %1808 = vmatpush.msra.mxu0 %v390
    %1809 = vmatpush.msra.mxu0 %v389
    %1810 = vmatpush.msra.mxu0 %v388
    %1811 = vmatpush.msra.mxu0 %v387
    %1812 = vmatpush.msra.mxu0 %v386
    %1813 = vmatpush.msra.mxu0 %v385
    %1814 = vmatpush.msra.mxu0 %v384
    %1815 = vmatpush.msra.mxu0 %v383
    %1816 = vmatpush.msra.mxu0 %v382
    %1817 = vmatmul.f32.gmra.mxu0 %v1352
    %v1818 = vpop.f32.mrf.mxu0
    %v1819 = vadd.f32 0.0, %v1818
    %1820 = vmatmul.f32.gmra.mxu0 %v1354
    %v1821 = vpop.f32.mrf.mxu0
    %v1822 = vadd.f32 0.0, %v1821
    %1823 = vmatmul.f32.gmra.mxu0 %v1356
    %v1824 = vpop.f32.mrf.mxu0
    %v1825 = vadd.f32 0.0, %v1824
    %1826 = vmatmul.f32.gmra.mxu0 %v1358
    %v1827 = vpop.f32.mrf.mxu0
    %v1828 = vadd.f32 0.0, %v1827
    %1829 = vmatmul.f32.gmra.mxu0 %v1360
    %v1830 = vpop.f32.mrf.mxu0
    %v1831 = vadd.f32 0.0, %v1830
    %1832 = vmatmul.f32.gmra.mxu0 %v1362
    %v1833 = vpop.f32.mrf.mxu0
    %v1834 = vadd.f32 0.0, %v1833
    %1835 = vmatmul.f32.gmra.mxu0 %v1364
    %v1836 = vpop.f32.mrf.mxu0
    %v1837 = vadd.f32 0.0, %v1836
    %1838 = vmatmul.f32.gmra.mxu0 %v1366
    %v1839 = vpop.f32.mrf.mxu0
    %v1840 = vadd.f32 0.0, %v1839
    %1841 = vmatmul.f32.gmra.mxu0 %v1368
    %v1842 = vpop.f32.mrf.mxu0
    %v1843 = vadd.f32 0.0, %v1842
    %1844 = vmatmul.f32.gmra.mxu0 %v1370
    %v1845 = vpop.f32.mrf.mxu0
    %v1846 = vadd.f32 0.0, %v1845
    %1847 = vmatmul.f32.gmra.mxu0 %v1372
    %v1848 = vpop.f32.mrf.mxu0
    %v1849 = vadd.f32 0.0, %v1848
    %1850 = vmatmul.f32.gmra.mxu0 %v1374
    %v1851 = vpop.f32.mrf.mxu0
    %v1852 = vadd.f32 0.0, %v1851
    %1853 = vmatmul.f32.gmra.mxu0 %v1376
    %v1854 = vpop.f32.mrf.mxu0
    %v1855 = vadd.f32 0.0, %v1854
    %1856 = vmatmul.f32.gmra.mxu0 %v1378
    %v1857 = vpop.f32.mrf.mxu0
    %v1858 = vadd.f32 0.0, %v1857
    %1859 = vmatmul.f32.gmra.mxu0 %v1380
    %v1860 = vpop.f32.mrf.mxu0
    %v1861 = vadd.f32 0.0, %v1860
    %1862 = vmatmul.f32.gmra.mxu0 %v1382
    %v1863 = vpop.f32.mrf.mxu0
    %v1864 = vadd.f32 0.0, %v1863
    %1865 = vdwg.mxu0
    %1866 = vmatpush.msra.mxu0 %v413
    %1867 = vmatpush.msra.mxu0 %v412
    %1868 = vmatpush.msra.mxu0 %v411
    %1869 = vmatpush.msra.mxu0 %v410
    %1870 = vmatpush.msra.mxu0 %v409
    %1871 = vmatpush.msra.mxu0 %v408
    %1872 = vmatpush.msra.mxu0 %v407
    %1873 = vmatpush.msra.mxu0 %v406
    %1874 = vmatpush.msra.mxu0 %v405
    %1875 = vmatpush.msra.mxu0 %v404
    %1876 = vmatpush.msra.mxu0 %v403
    %1877 = vmatpush.msra.mxu0 %v402
    %1878 = vmatpush.msra.mxu0 %v401
    %1879 = vmatpush.msra.mxu0 %v400
    %1880 = vmatpush.msra.mxu0 %v399
    %1881 = vmatpush.msra.mxu0 %v398
    %1882 = vmatmul.f32.gmra.mxu0 %v1384
    %v1883 = vpop.f32.mrf.mxu0
    %v1884 = vadd.f32 0.0, %v1883
    %1885 = vmatmul.f32.gmra.mxu0 %v1386
    %v1886 = vpop.f32.mrf.mxu0
    %v1887 = vadd.f32 0.0, %v1886
    %1888 = vmatmul.f32.gmra.mxu0 %v1388
    %v1889 = vpop.f32.mrf.mxu0
    %v1890 = vadd.f32 0.0, %v1889
    %1891 = vmatmul.f32.gmra.mxu0 %v1390
    %v1892 = vpop.f32.mrf.mxu0
    %v1893 = vadd.f32 0.0, %v1892
    %1894 = vmatmul.f32.gmra.mxu0 %v1392
    %v1895 = vpop.f32.mrf.mxu0
    %v1896 = vadd.f32 0.0, %v1895
    %1897 = vmatmul.f32.gmra.mxu0 %v1394
    %v1898 = vpop.f32.mrf.mxu0
    %v1899 = vadd.f32 0.0, %v1898
    %1900 = vmatmul.f32.gmra.mxu0 %v1396
    %v1901 = vpop.f32.mrf.mxu0
    %v1902 = vadd.f32 0.0, %v1901
    %1903 = vmatmul.f32.gmra.mxu0 %v1398
    %v1904 = vpop.f32.mrf.mxu0
    %v1905 = vadd.f32 0.0, %v1904
    %1906 = vmatmul.f32.gmra.mxu0 %v1400
    %v1907 = vpop.f32.mrf.mxu0
    %v1908 = vadd.f32 0.0, %v1907
    %1909 = vmatmul.f32.gmra.mxu0 %v1402
    %v1910 = vpop.f32.mrf.mxu0
    %v1911 = vadd.f32 0.0, %v1910
    %1912 = vmatmul.f32.gmra.mxu0 %v1404
    %v1913 = vpop.f32.mrf.mxu0
    %v1914 = vadd.f32 0.0, %v1913
    %1915 = vmatmul.f32.gmra.mxu0 %v1406
    %v1916 = vpop.f32.mrf.mxu0
    %v1917 = vadd.f32 0.0, %v1916
    %1918 = vmatmul.f32.gmra.mxu0 %v1408
    %v1919 = vpop.f32.mrf.mxu0
    %v1920 = vadd.f32 0.0, %v1919
    %1921 = vmatmul.f32.gmra.mxu0 %v1410
    %v1922 = vpop.f32.mrf.mxu0
    %v1923 = vadd.f32 0.0, %v1922
    %1924 = vmatmul.f32.gmra.mxu0 %v1412
    %v1925 = vpop.f32.mrf.mxu0
    %v1926 = vadd.f32 0.0, %v1925
    %1927 = vmatmul.f32.gmra.mxu0 %v1414
    %v1928 = vpop.f32.mrf.mxu0
    %v1929 = vadd.f32 0.0, %v1928
    %1930 = vdwg.mxu0
    %1931 = vmatpush.msra.mxu0 %v429
    %1932 = vmatpush.msra.mxu0 %v428
    %1933 = vmatpush.msra.mxu0 %v427
    %1934 = vmatpush.msra.mxu0 %v426
    %1935 = vmatpush.msra.mxu0 %v425
    %1936 = vmatpush.msra.mxu0 %v424
    %1937 = vmatpush.msra.mxu0 %v423
    %1938 = vmatpush.msra.mxu0 %v422
    %1939 = vmatpush.msra.mxu0 %v421
    %1940 = vmatpush.msra.mxu0 %v420
    %1941 = vmatpush.msra.mxu0 %v419
    %1942 = vmatpush.msra.mxu0 %v418
    %1943 = vmatpush.msra.mxu0 %v417
    %1944 = vmatpush.msra.mxu0 %v416
    %1945 = vmatpush.msra.mxu0 %v415
    %1946 = vmatpush.msra.mxu0 %v414
    %1947 = vmatmul.f32.gmra.mxu0 %v1416
    %v1948 = vpop.f32.mrf.mxu0
    %v1949 = vadd.f32 0.0, %v1948
    %1950 = vmatmul.f32.gmra.mxu0 %v1418
    %v1951 = vpop.f32.mrf.mxu0
    %v1952 = vadd.f32 0.0, %v1951
    %1953 = vmatmul.f32.gmra.mxu0 %v1420
    %v1954 = vpop.f32.mrf.mxu0
    %v1955 = vadd.f32 0.0, %v1954
    %1956 = vmatmul.f32.gmra.mxu0 %v1422
    %v1957 = vpop.f32.mrf.mxu0
    %v1958 = vadd.f32 0.0, %v1957
    %1959 = vmatmul.f32.gmra.mxu0 %v1424
    %v1960 = vpop.f32.mrf.mxu0
    %v1961 = vadd.f32 0.0, %v1960
    %1962 = vmatmul.f32.gmra.mxu0 %v1426
    %v1963 = vpop.f32.mrf.mxu0
    %v1964 = vadd.f32 0.0, %v1963
    %1965 = vmatmul.f32.gmra.mxu0 %v1428
    %v1966 = vpop.f32.mrf.mxu0
    %v1967 = vadd.f32 0.0, %v1966
    %1968 = vmatmul.f32.gmra.mxu0 %v1430
    %v1969 = vpop.f32.mrf.mxu0
    %v1970 = vadd.f32 0.0, %v1969
    %1971 = vmatmul.f32.gmra.mxu0 %v1432
    %v1972 = vpop.f32.mrf.mxu0
    %v1973 = vadd.f32 0.0, %v1972
    %1974 = vmatmul.f32.gmra.mxu0 %v1434
    %v1975 = vpop.f32.mrf.mxu0
    %v1976 = vadd.f32 0.0, %v1975
    %1977 = vmatmul.f32.gmra.mxu0 %v1436
    %v1978 = vpop.f32.mrf.mxu0
    %v1979 = vadd.f32 0.0, %v1978
    %1980 = vmatmul.f32.gmra.mxu0 %v1438
    %v1981 = vpop.f32.mrf.mxu0
    %v1982 = vadd.f32 0.0, %v1981
    %1983 = vmatmul.f32.gmra.mxu0 %v1440
    %v1984 = vpop.f32.mrf.mxu0
    %v1985 = vadd.f32 0.0, %v1984
    %1986 = vmatmul.f32.gmra.mxu0 %v1442
    %v1987 = vpop.f32.mrf.mxu0
    %v1988 = vadd.f32 0.0, %v1987
    %1989 = vmatmul.f32.gmra.mxu0 %v1444
    %v1990 = vpop.f32.mrf.mxu0
    %v1991 = vadd.f32 0.0, %v1990
    %1992 = vmatmul.f32.gmra.mxu0 %v1446
    %v1993 = vpop.f32.mrf.mxu0
    %v1994 = vadd.f32 0.0, %v1993
    %1995 = vdwg.mxu0
    %1996 = vmatpush.msra.mxu0 %v445
    %1997 = vmatpush.msra.mxu0 %v444
    %1998 = vmatpush.msra.mxu0 %v443
    %1999 = vmatpush.msra.mxu0 %v442
    %2000 = vmatpush.msra.mxu0 %v441
    %2001 = vmatpush.msra.mxu0 %v440
    %2002 = vmatpush.msra.mxu0 %v439
    %2003 = vmatpush.msra.mxu0 %v438
    %2004 = vmatpush.msra.mxu0 %v437
    %2005 = vmatpush.msra.mxu0 %v436
    %2006 = vmatpush.msra.mxu0 %v435
    %2007 = vmatpush.msra.mxu0 %v434
    %2008 = vmatpush.msra.mxu0 %v433
    %2009 = vmatpush.msra.mxu0 %v432
    %2010 = vmatpush.msra.mxu0 %v431
    %2011 = vmatpush.msra.mxu0 %v430
    %2012 = vmatmul.f32.gmra.mxu0 %v1448
    %v2013 = vpop.f32.mrf.mxu0
    %v2014 = vadd.f32 0.0, %v2013
    %2015 = vmatmul.f32.gmra.mxu0 %v1450
    %v2016 = vpop.f32.mrf.mxu0
    %v2017 = vadd.f32 0.0, %v2016
    %2018 = vmatmul.f32.gmra.mxu0 %v1452
    %v2019 = vpop.f32.mrf.mxu0
    %v2020 = vadd.f32 0.0, %v2019
    %2021 = vmatmul.f32.gmra.mxu0 %v1454
    %v2022 = vpop.f32.mrf.mxu0
    %v2023 = vadd.f32 0.0, %v2022
    %2024 = vmatmul.f32.gmra.mxu0 %v1456
    %v2025 = vpop.f32.mrf.mxu0
    %v2026 = vadd.f32 0.0, %v2025
    %2027 = vmatmul.f32.gmra.mxu0 %v1458
    %v2028 = vpop.f32.mrf.mxu0
    %v2029 = vadd.f32 0.0, %v2028
    %2030 = vmatmul.f32.gmra.mxu0 %v1460
    %v2031 = vpop.f32.mrf.mxu0
    %v2032 = vadd.f32 0.0, %v2031
    %2033 = vmatmul.f32.gmra.mxu0 %v1462
    %v2034 = vpop.f32.mrf.mxu0
    %v2035 = vadd.f32 0.0, %v2034
    %2036 = vmatmul.f32.gmra.mxu0 %v1464
    %v2037 = vpop.f32.mrf.mxu0
    %v2038 = vadd.f32 0.0, %v2037
    %2039 = vmatmul.f32.gmra.mxu0 %v1466
    %v2040 = vpop.f32.mrf.mxu0
    %v2041 = vadd.f32 0.0, %v2040
    %2042 = vmatmul.f32.gmra.mxu0 %v1468
    %v2043 = vpop.f32.mrf.mxu0
    %v2044 = vadd.f32 0.0, %v2043
    %2045 = vmatmul.f32.gmra.mxu0 %v1470
    %v2046 = vpop.f32.mrf.mxu0
    %v2047 = vadd.f32 0.0, %v2046
    %2048 = vmatmul.f32.gmra.mxu0 %v1472
    %v2049 = vpop.f32.mrf.mxu0
    %v2050 = vadd.f32 0.0, %v2049
    %2051 = vmatmul.f32.gmra.mxu0 %v1474
    %v2052 = vpop.f32.mrf.mxu0
    %v2053 = vadd.f32 0.0, %v2052
    %2054 = vmatmul.f32.gmra.mxu0 %v1476
    %v2055 = vpop.f32.mrf.mxu0
    %v2056 = vadd.f32 0.0, %v2055
    %2057 = vmatmul.f32.gmra.mxu0 %v1478
    %v2058 = vpop.f32.mrf.mxu0
    %v2059 = vadd.f32 0.0, %v2058
    %2060 = vdwg.mxu0
    %v2061 = vrcp.pop %v1480
    %v2062 = vmul.f32 %v1480, %v2061
    %v2063 = vsub.f32 1.0, %v2062
    %v2064 = vmul.f32 %v2061, %v2063
    %v2065 = vadd.f32 %v2061, %v2064
    %vm2066 = vweird.f32 %v1480
    %vm2067 = vweird.f32 %v2061
    %vm2068 = vmor %vm2066, %vm2067
    %v2069 = vsel %vm2068, %v2061, %v2065
    %v2070 = vand.u32 2147483647, %v1480
    %vm2071 = vcmp.eq.f32.partialorder %v2070, 8.507059e+37
    %v2072 = vand.u32 %v1480, 2147483648
    %v2073 = vor.u32 1.1754944e-38, %v2072
    %v2074 = vsel %vm2071, %v2073, %v2069
    %v2075 = vmul.f32 %v1689, %v2074
    %v2076 = vrcp.pop %v1482
    %v2077 = vmul.f32 %v1482, %v2076
    %v2078 = vsub.f32 1.0, %v2077
    %v2079 = vmul.f32 %v2076, %v2078
    %v2080 = vadd.f32 %v2076, %v2079
    %vm2081 = vweird.f32 %v1482
    %vm2082 = vweird.f32 %v2076
    %vm2083 = vmor %vm2081, %vm2082
    %v2084 = vsel %vm2083, %v2076, %v2080
    %v2085 = vand.u32 2147483647, %v1482
    %vm2086 = vcmp.eq.f32.partialorder %v2085, 8.507059e+37
    %v2087 = vand.u32 %v1482, 2147483648
    %v2088 = vor.u32 1.1754944e-38, %v2087
    %v2089 = vsel %vm2086, %v2088, %v2084
    %v2090 = vmul.f32 %v1692, %v2089
    %v2091 = vrcp.pop %v1484
    %v2092 = vmul.f32 %v1484, %v2091
    %v2093 = vsub.f32 1.0, %v2092
    %v2094 = vmul.f32 %v2091, %v2093
    %v2095 = vadd.f32 %v2091, %v2094
    %vm2096 = vweird.f32 %v1484
    %vm2097 = vweird.f32 %v2091
    %vm2098 = vmor %vm2096, %vm2097
    %v2099 = vsel %vm2098, %v2091, %v2095
    %v2100 = vand.u32 2147483647, %v1484
    %vm2101 = vcmp.eq.f32.partialorder %v2100, 8.507059e+37
    %v2102 = vand.u32 %v1484, 2147483648
    %v2103 = vor.u32 1.1754944e-38, %v2102
    %v2104 = vsel %vm2101, %v2103, %v2099
    %v2105 = vmul.f32 %v1695, %v2104
    %v2106 = vrcp.pop %v1486
    %v2107 = vmul.f32 %v1486, %v2106
    %v2108 = vsub.f32 1.0, %v2107
    %v2109 = vmul.f32 %v2106, %v2108
    %v2110 = vadd.f32 %v2106, %v2109
    %vm2111 = vweird.f32 %v1486
    %vm2112 = vweird.f32 %v2106
    %vm2113 = vmor %vm2111, %vm2112
    %v2114 = vsel %vm2113, %v2106, %v2110
    %v2115 = vand.u32 2147483647, %v1486
    %vm2116 = vcmp.eq.f32.partialorder %v2115, 8.507059e+37
    %v2117 = vand.u32 %v1486, 2147483648
    %v2118 = vor.u32 1.1754944e-38, %v2117
    %v2119 = vsel %vm2116, %v2118, %v2114
    %v2120 = vmul.f32 %v1698, %v2119
    %v2121 = vrcp.pop %v1488
    %v2122 = vmul.f32 %v1488, %v2121
    %v2123 = vsub.f32 1.0, %v2122
    %v2124 = vmul.f32 %v2121, %v2123
    %v2125 = vadd.f32 %v2121, %v2124
    %vm2126 = vweird.f32 %v1488
    %vm2127 = vweird.f32 %v2121
    %vm2128 = vmor %vm2126, %vm2127
    %v2129 = vsel %vm2128, %v2121, %v2125
    %v2130 = vand.u32 2147483647, %v1488
    %vm2131 = vcmp.eq.f32.partialorder %v2130, 8.507059e+37
    %v2132 = vand.u32 %v1488, 2147483648
    %v2133 = vor.u32 1.1754944e-38, %v2132
    %v2134 = vsel %vm2131, %v2133, %v2129
    %v2135 = vmul.f32 %v1701, %v2134
    %v2136 = vrcp.pop %v1490
    %v2137 = vmul.f32 %v1490, %v2136
    %v2138 = vsub.f32 1.0, %v2137
    %v2139 = vmul.f32 %v2136, %v2138
    %v2140 = vadd.f32 %v2136, %v2139
    %vm2141 = vweird.f32 %v1490
    %vm2142 = vweird.f32 %v2136
    %vm2143 = vmor %vm2141, %vm2142
    %v2144 = vsel %vm2143, %v2136, %v2140
    %v2145 = vand.u32 2147483647, %v1490
    %vm2146 = vcmp.eq.f32.partialorder %v2145, 8.507059e+37
    %v2147 = vand.u32 %v1490, 2147483648
    %v2148 = vor.u32 1.1754944e-38, %v2147
    %v2149 = vsel %vm2146, %v2148, %v2144
    %v2150 = vmul.f32 %v1704, %v2149
    %v2151 = vrcp.pop %v1492
    %v2152 = vmul.f32 %v1492, %v2151
    %v2153 = vsub.f32 1.0, %v2152
    %v2154 = vmul.f32 %v2151, %v2153
    %v2155 = vadd.f32 %v2151, %v2154
    %vm2156 = vweird.f32 %v1492
    %vm2157 = vweird.f32 %v2151
    %vm2158 = vmor %vm2156, %vm2157
    %v2159 = vsel %vm2158, %v2151, %v2155
    %v2160 = vand.u32 2147483647, %v1492
    %vm2161 = vcmp.eq.f32.partialorder %v2160, 8.507059e+37
    %v2162 = vand.u32 %v1492, 2147483648
    %v2163 = vor.u32 1.1754944e-38, %v2162
    %v2164 = vsel %vm2161, %v2163, %v2159
    %v2165 = vmul.f32 %v1707, %v2164
    %v2166 = vrcp.pop %v1494
    %v2167 = vmul.f32 %v1494, %v2166
    %v2168 = vsub.f32 1.0, %v2167
    %v2169 = vmul.f32 %v2166, %v2168
    %v2170 = vadd.f32 %v2166, %v2169
    %vm2171 = vweird.f32 %v1494
    %vm2172 = vweird.f32 %v2166
    %vm2173 = vmor %vm2171, %vm2172
    %v2174 = vsel %vm2173, %v2166, %v2170
    %v2175 = vand.u32 2147483647, %v1494
    %vm2176 = vcmp.eq.f32.partialorder %v2175, 8.507059e+37
    %v2177 = vand.u32 %v1494, 2147483648
    %v2178 = vor.u32 1.1754944e-38, %v2177
    %v2179 = vsel %vm2176, %v2178, %v2174
    %v2180 = vmul.f32 %v1710, %v2179
    %v2181 = vrcp.pop %v1496
    %v2182 = vmul.f32 %v1496, %v2181
    %v2183 = vsub.f32 1.0, %v2182
    %v2184 = vmul.f32 %v2181, %v2183
    %v2185 = vadd.f32 %v2181, %v2184
    %vm2186 = vweird.f32 %v1496
    %vm2187 = vweird.f32 %v2181
    %vm2188 = vmor %vm2186, %vm2187
    %v2189 = vsel %vm2188, %v2181, %v2185
    %v2190 = vand.u32 2147483647, %v1496
    %vm2191 = vcmp.eq.f32.partialorder %v2190, 8.507059e+37
    %v2192 = vand.u32 %v1496, 2147483648
    %v2193 = vor.u32 1.1754944e-38, %v2192
    %v2194 = vsel %vm2191, %v2193, %v2189
    %v2195 = vmul.f32 %v1713, %v2194
    %v2196 = vrcp.pop %v1498
    %v2197 = vmul.f32 %v1498, %v2196
    %v2198 = vsub.f32 1.0, %v2197
    %v2199 = vmul.f32 %v2196, %v2198
    %v2200 = vadd.f32 %v2196, %v2199
    %vm2201 = vweird.f32 %v1498
    %vm2202 = vweird.f32 %v2196
    %vm2203 = vmor %vm2201, %vm2202
    %v2204 = vsel %vm2203, %v2196, %v2200
    %v2205 = vand.u32 2147483647, %v1498
    %vm2206 = vcmp.eq.f32.partialorder %v2205, 8.507059e+37
    %v2207 = vand.u32 %v1498, 2147483648
    %v2208 = vor.u32 1.1754944e-38, %v2207
    %v2209 = vsel %vm2206, %v2208, %v2204
    %v2210 = vmul.f32 %v1716, %v2209
    %v2211 = vrcp.pop %v1500
    %v2212 = vmul.f32 %v1500, %v2211
    %v2213 = vsub.f32 1.0, %v2212
    %v2214 = vmul.f32 %v2211, %v2213
    %v2215 = vadd.f32 %v2211, %v2214
    %vm2216 = vweird.f32 %v1500
    %vm2217 = vweird.f32 %v2211
    %vm2218 = vmor %vm2216, %vm2217
    %v2219 = vsel %vm2218, %v2211, %v2215
    %v2220 = vand.u32 2147483647, %v1500
    %vm2221 = vcmp.eq.f32.partialorder %v2220, 8.507059e+37
    %v2222 = vand.u32 %v1500, 2147483648
    %v2223 = vor.u32 1.1754944e-38, %v2222
    %v2224 = vsel %vm2221, %v2223, %v2219
    %v2225 = vmul.f32 %v1719, %v2224
    %v2226 = vrcp.pop %v1502
    %v2227 = vmul.f32 %v1502, %v2226
    %v2228 = vsub.f32 1.0, %v2227
    %v2229 = vmul.f32 %v2226, %v2228
    %v2230 = vadd.f32 %v2226, %v2229
    %vm2231 = vweird.f32 %v1502
    %vm2232 = vweird.f32 %v2226
    %vm2233 = vmor %vm2231, %vm2232
    %v2234 = vsel %vm2233, %v2226, %v2230
    %v2235 = vand.u32 2147483647, %v1502
    %vm2236 = vcmp.eq.f32.partialorder %v2235, 8.507059e+37
    %v2237 = vand.u32 %v1502, 2147483648
    %v2238 = vor.u32 1.1754944e-38, %v2237
    %v2239 = vsel %vm2236, %v2238, %v2234
    %v2240 = vmul.f32 %v1722, %v2239
    %v2241 = vrcp.pop %v1504
    %v2242 = vmul.f32 %v1504, %v2241
    %v2243 = vsub.f32 1.0, %v2242
    %v2244 = vmul.f32 %v2241, %v2243
    %v2245 = vadd.f32 %v2241, %v2244
    %vm2246 = vweird.f32 %v1504
    %vm2247 = vweird.f32 %v2241
    %vm2248 = vmor %vm2246, %vm2247
    %v2249 = vsel %vm2248, %v2241, %v2245
    %v2250 = vand.u32 2147483647, %v1504
    %vm2251 = vcmp.eq.f32.partialorder %v2250, 8.507059e+37
    %v2252 = vand.u32 %v1504, 2147483648
    %v2253 = vor.u32 1.1754944e-38, %v2252
    %v2254 = vsel %vm2251, %v2253, %v2249
    %v2255 = vmul.f32 %v1725, %v2254
    %v2256 = vrcp.pop %v1506
    %v2257 = vmul.f32 %v1506, %v2256
    %v2258 = vsub.f32 1.0, %v2257
    %v2259 = vmul.f32 %v2256, %v2258
    %v2260 = vadd.f32 %v2256, %v2259
    %vm2261 = vweird.f32 %v1506
    %vm2262 = vweird.f32 %v2256
    %vm2263 = vmor %vm2261, %vm2262
    %v2264 = vsel %vm2263, %v2256, %v2260
    %v2265 = vand.u32 2147483647, %v1506
    %vm2266 = vcmp.eq.f32.partialorder %v2265, 8.507059e+37
    %v2267 = vand.u32 %v1506, 2147483648
    %v2268 = vor.u32 1.1754944e-38, %v2267
    %v2269 = vsel %vm2266, %v2268, %v2264
    %v2270 = vmul.f32 %v1728, %v2269
    %v2271 = vrcp.pop %v1508
    %v2272 = vmul.f32 %v1508, %v2271
    %v2273 = vsub.f32 1.0, %v2272
    %v2274 = vmul.f32 %v2271, %v2273
    %v2275 = vadd.f32 %v2271, %v2274
    %vm2276 = vweird.f32 %v1508
    %vm2277 = vweird.f32 %v2271
    %vm2278 = vmor %vm2276, %vm2277
    %v2279 = vsel %vm2278, %v2271, %v2275
    %v2280 = vand.u32 2147483647, %v1508
    %vm2281 = vcmp.eq.f32.partialorder %v2280, 8.507059e+37
    %v2282 = vand.u32 %v1508, 2147483648
    %v2283 = vor.u32 1.1754944e-38, %v2282
    %v2284 = vsel %vm2281, %v2283, %v2279
    %v2285 = vmul.f32 %v1731, %v2284
    %v2286 = vrcp.pop %v1510
    %v2287 = vmul.f32 %v1510, %v2286
    %v2288 = vsub.f32 1.0, %v2287
    %v2289 = vmul.f32 %v2286, %v2288
    %v2290 = vadd.f32 %v2286, %v2289
    %vm2291 = vweird.f32 %v1510
    %vm2292 = vweird.f32 %v2286
    %vm2293 = vmor %vm2291, %vm2292
    %v2294 = vsel %vm2293, %v2286, %v2290
    %v2295 = vand.u32 2147483647, %v1510
    %vm2296 = vcmp.eq.f32.partialorder %v2295, 8.507059e+37
    %v2297 = vand.u32 %v1510, 2147483648
    %v2298 = vor.u32 1.1754944e-38, %v2297
    %v2299 = vsel %vm2296, %v2298, %v2294
    %v2300 = vmul.f32 %v1734, %v2299
    %v2301 = vrcp.pop %v1512
    %v2302 = vmul.f32 %v1512, %v2301
    %v2303 = vsub.f32 1.0, %v2302
    %v2304 = vmul.f32 %v2301, %v2303
    %v2305 = vadd.f32 %v2301, %v2304
    %vm2306 = vweird.f32 %v1512
    %vm2307 = vweird.f32 %v2301
    %vm2308 = vmor %vm2306, %vm2307
    %v2309 = vsel %vm2308, %v2301, %v2305
    %v2310 = vand.u32 2147483647, %v1512
    %vm2311 = vcmp.eq.f32.partialorder %v2310, 8.507059e+37
    %v2312 = vand.u32 %v1512, 2147483648
    %v2313 = vor.u32 1.1754944e-38, %v2312
    %v2314 = vsel %vm2311, %v2313, %v2309
    %v2315 = vmul.f32 %v1754, %v2314
    %v2316 = vrcp.pop %v1514
    %v2317 = vmul.f32 %v1514, %v2316
    %v2318 = vsub.f32 1.0, %v2317
    %v2319 = vmul.f32 %v2316, %v2318
    %v2320 = vadd.f32 %v2316, %v2319
    %vm2321 = vweird.f32 %v1514
    %vm2322 = vweird.f32 %v2316
    %vm2323 = vmor %vm2321, %vm2322
    %v2324 = vsel %vm2323, %v2316, %v2320
    %v2325 = vand.u32 2147483647, %v1514
    %vm2326 = vcmp.eq.f32.partialorder %v2325, 8.507059e+37
    %v2327 = vand.u32 %v1514, 2147483648
    %v2328 = vor.u32 1.1754944e-38, %v2327
    %v2329 = vsel %vm2326, %v2328, %v2324
    %v2330 = vmul.f32 %v1757, %v2329
    %v2331 = vrcp.pop %v1516
    %v2332 = vmul.f32 %v1516, %v2331
    %v2333 = vsub.f32 1.0, %v2332
    %v2334 = vmul.f32 %v2331, %v2333
    %v2335 = vadd.f32 %v2331, %v2334
    %vm2336 = vweird.f32 %v1516
    %vm2337 = vweird.f32 %v2331
    %vm2338 = vmor %vm2336, %vm2337
    %v2339 = vsel %vm2338, %v2331, %v2335
    %v2340 = vand.u32 2147483647, %v1516
    %vm2341 = vcmp.eq.f32.partialorder %v2340, 8.507059e+37
    %v2342 = vand.u32 %v1516, 2147483648
    %v2343 = vor.u32 1.1754944e-38, %v2342
    %v2344 = vsel %vm2341, %v2343, %v2339
    %v2345 = vmul.f32 %v1760, %v2344
    %v2346 = vrcp.pop %v1518
    %v2347 = vmul.f32 %v1518, %v2346
    %v2348 = vsub.f32 1.0, %v2347
    %v2349 = vmul.f32 %v2346, %v2348
    %v2350 = vadd.f32 %v2346, %v2349
    %vm2351 = vweird.f32 %v1518
    %vm2352 = vweird.f32 %v2346
    %vm2353 = vmor %vm2351, %vm2352
    %v2354 = vsel %vm2353, %v2346, %v2350
    %v2355 = vand.u32 2147483647, %v1518
    %vm2356 = vcmp.eq.f32.partialorder %v2355, 8.507059e+37
    %v2357 = vand.u32 %v1518, 2147483648
    %v2358 = vor.u32 1.1754944e-38, %v2357
    %v2359 = vsel %vm2356, %v2358, %v2354
    %v2360 = vmul.f32 %v1763, %v2359
    %v2361 = vrcp.pop %v1520
    %v2362 = vmul.f32 %v1520, %v2361
    %v2363 = vsub.f32 1.0, %v2362
    %v2364 = vmul.f32 %v2361, %v2363
    %v2365 = vadd.f32 %v2361, %v2364
    %vm2366 = vweird.f32 %v1520
    %vm2367 = vweird.f32 %v2361
    %vm2368 = vmor %vm2366, %vm2367
    %v2369 = vsel %vm2368, %v2361, %v2365
    %v2370 = vand.u32 2147483647, %v1520
    %vm2371 = vcmp.eq.f32.partialorder %v2370, 8.507059e+37
    %v2372 = vand.u32 %v1520, 2147483648
    %v2373 = vor.u32 1.1754944e-38, %v2372
    %v2374 = vsel %vm2371, %v2373, %v2369
    %v2375 = vmul.f32 %v1766, %v2374
    %v2376 = vrcp.pop %v1522
    %v2377 = vmul.f32 %v1522, %v2376
    %v2378 = vsub.f32 1.0, %v2377
    %v2379 = vmul.f32 %v2376, %v2378
    %v2380 = vadd.f32 %v2376, %v2379
    %vm2381 = vweird.f32 %v1522
    %vm2382 = vweird.f32 %v2376
    %vm2383 = vmor %vm2381, %vm2382
    %v2384 = vsel %vm2383, %v2376, %v2380
    %v2385 = vand.u32 2147483647, %v1522
    %vm2386 = vcmp.eq.f32.partialorder %v2385, 8.507059e+37
    %v2387 = vand.u32 %v1522, 2147483648
    %v2388 = vor.u32 1.1754944e-38, %v2387
    %v2389 = vsel %vm2386, %v2388, %v2384
    %v2390 = vmul.f32 %v1769, %v2389
    %v2391 = vrcp.pop %v1524
    %v2392 = vmul.f32 %v1524, %v2391
    %v2393 = vsub.f32 1.0, %v2392
    %v2394 = vmul.f32 %v2391, %v2393
    %v2395 = vadd.f32 %v2391, %v2394
    %vm2396 = vweird.f32 %v1524
    %vm2397 = vweird.f32 %v2391
    %vm2398 = vmor %vm2396, %vm2397
    %v2399 = vsel %vm2398, %v2391, %v2395
    %v2400 = vand.u32 2147483647, %v1524
    %vm2401 = vcmp.eq.f32.partialorder %v2400, 8.507059e+37
    %v2402 = vand.u32 %v1524, 2147483648
    %v2403 = vor.u32 1.1754944e-38, %v2402
    %v2404 = vsel %vm2401, %v2403, %v2399
    %v2405 = vmul.f32 %v1772, %v2404
    %v2406 = vrcp.pop %v1526
    %v2407 = vmul.f32 %v1526, %v2406
    %v2408 = vsub.f32 1.0, %v2407
    %v2409 = vmul.f32 %v2406, %v2408
    %v2410 = vadd.f32 %v2406, %v2409
    %vm2411 = vweird.f32 %v1526
    %vm2412 = vweird.f32 %v2406
    %vm2413 = vmor %vm2411, %vm2412
    %v2414 = vsel %vm2413, %v2406, %v2410
    %v2415 = vand.u32 2147483647, %v1526
    %vm2416 = vcmp.eq.f32.partialorder %v2415, 8.507059e+37
    %v2417 = vand.u32 %v1526, 2147483648
    %v2418 = vor.u32 1.1754944e-38, %v2417
    %v2419 = vsel %vm2416, %v2418, %v2414
    %v2420 = vmul.f32 %v1775, %v2419
    %v2421 = vrcp.pop %v1528
    %v2422 = vmul.f32 %v1528, %v2421
    %v2423 = vsub.f32 1.0, %v2422
    %v2424 = vmul.f32 %v2421, %v2423
    %v2425 = vadd.f32 %v2421, %v2424
    %vm2426 = vweird.f32 %v1528
    %vm2427 = vweird.f32 %v2421
    %vm2428 = vmor %vm2426, %vm2427
    %v2429 = vsel %vm2428, %v2421, %v2425
    %v2430 = vand.u32 2147483647, %v1528
    %vm2431 = vcmp.eq.f32.partialorder %v2430, 8.507059e+37
    %v2432 = vand.u32 %v1528, 2147483648
    %v2433 = vor.u32 1.1754944e-38, %v2432
    %v2434 = vsel %vm2431, %v2433, %v2429
    %v2435 = vmul.f32 %v1778, %v2434
    %v2436 = vrcp.pop %v1530
    %v2437 = vmul.f32 %v1530, %v2436
    %v2438 = vsub.f32 1.0, %v2437
    %v2439 = vmul.f32 %v2436, %v2438
    %v2440 = vadd.f32 %v2436, %v2439
    %vm2441 = vweird.f32 %v1530
    %vm2442 = vweird.f32 %v2436
    %vm2443 = vmor %vm2441, %vm2442
    %v2444 = vsel %vm2443, %v2436, %v2440
    %v2445 = vand.u32 2147483647, %v1530
    %vm2446 = vcmp.eq.f32.partialorder %v2445, 8.507059e+37
    %v2447 = vand.u32 %v1530, 2147483648
    %v2448 = vor.u32 1.1754944e-38, %v2447
    %v2449 = vsel %vm2446, %v2448, %v2444
    %v2450 = vmul.f32 %v1781, %v2449
    %v2451 = vrcp.pop %v1532
    %v2452 = vmul.f32 %v1532, %v2451
    %v2453 = vsub.f32 1.0, %v2452
    %v2454 = vmul.f32 %v2451, %v2453
    %v2455 = vadd.f32 %v2451, %v2454
    %vm2456 = vweird.f32 %v1532
    %vm2457 = vweird.f32 %v2451
    %vm2458 = vmor %vm2456, %vm2457
    %v2459 = vsel %vm2458, %v2451, %v2455
    %v2460 = vand.u32 2147483647, %v1532
    %vm2461 = vcmp.eq.f32.partialorder %v2460, 8.507059e+37
    %v2462 = vand.u32 %v1532, 2147483648
    %v2463 = vor.u32 1.1754944e-38, %v2462
    %v2464 = vsel %vm2461, %v2463, %v2459
    %v2465 = vmul.f32 %v1784, %v2464
    %v2466 = vrcp.pop %v1534
    %v2467 = vmul.f32 %v1534, %v2466
    %v2468 = vsub.f32 1.0, %v2467
    %v2469 = vmul.f32 %v2466, %v2468
    %v2470 = vadd.f32 %v2466, %v2469
    %vm2471 = vweird.f32 %v1534
    %vm2472 = vweird.f32 %v2466
    %vm2473 = vmor %vm2471, %vm2472
    %v2474 = vsel %vm2473, %v2466, %v2470
    %v2475 = vand.u32 2147483647, %v1534
    %vm2476 = vcmp.eq.f32.partialorder %v2475, 8.507059e+37
    %v2477 = vand.u32 %v1534, 2147483648
    %v2478 = vor.u32 1.1754944e-38, %v2477
    %v2479 = vsel %vm2476, %v2478, %v2474
    %v2480 = vmul.f32 %v1787, %v2479
    %v2481 = vrcp.pop %v1536
    %v2482 = vmul.f32 %v1536, %v2481
    %v2483 = vsub.f32 1.0, %v2482
    %v2484 = vmul.f32 %v2481, %v2483
    %v2485 = vadd.f32 %v2481, %v2484
    %vm2486 = vweird.f32 %v1536
    %vm2487 = vweird.f32 %v2481
    %vm2488 = vmor %vm2486, %vm2487
    %v2489 = vsel %vm2488, %v2481, %v2485
    %v2490 = vand.u32 2147483647, %v1536
    %vm2491 = vcmp.eq.f32.partialorder %v2490, 8.507059e+37
    %v2492 = vand.u32 %v1536, 2147483648
    %v2493 = vor.u32 1.1754944e-38, %v2492
    %v2494 = vsel %vm2491, %v2493, %v2489
    %v2495 = vmul.f32 %v1790, %v2494
    %v2496 = vrcp.pop %v1538
    %v2497 = vmul.f32 %v1538, %v2496
    %v2498 = vsub.f32 1.0, %v2497
    %v2499 = vmul.f32 %v2496, %v2498
    %v2500 = vadd.f32 %v2496, %v2499
    %vm2501 = vweird.f32 %v1538
    %vm2502 = vweird.f32 %v2496
    %vm2503 = vmor %vm2501, %vm2502
    %v2504 = vsel %vm2503, %v2496, %v2500
    %v2505 = vand.u32 2147483647, %v1538
    %vm2506 = vcmp.eq.f32.partialorder %v2505, 8.507059e+37
    %v2507 = vand.u32 %v1538, 2147483648
    %v2508 = vor.u32 1.1754944e-38, %v2507
    %v2509 = vsel %vm2506, %v2508, %v2504
    %v2510 = vmul.f32 %v1793, %v2509
    %v2511 = vrcp.pop %v1540
    %v2512 = vmul.f32 %v1540, %v2511
    %v2513 = vsub.f32 1.0, %v2512
    %v2514 = vmul.f32 %v2511, %v2513
    %v2515 = vadd.f32 %v2511, %v2514
    %vm2516 = vweird.f32 %v1540
    %vm2517 = vweird.f32 %v2511
    %vm2518 = vmor %vm2516, %vm2517
    %v2519 = vsel %vm2518, %v2511, %v2515
    %v2520 = vand.u32 2147483647, %v1540
    %vm2521 = vcmp.eq.f32.partialorder %v2520, 8.507059e+37
    %v2522 = vand.u32 %v1540, 2147483648
    %v2523 = vor.u32 1.1754944e-38, %v2522
    %v2524 = vsel %vm2521, %v2523, %v2519
    %v2525 = vmul.f32 %v1796, %v2524
    %v2526 = vrcp.pop %v1542
    %v2527 = vmul.f32 %v1542, %v2526
    %v2528 = vsub.f32 1.0, %v2527
    %v2529 = vmul.f32 %v2526, %v2528
    %v2530 = vadd.f32 %v2526, %v2529
    %vm2531 = vweird.f32 %v1542
    %vm2532 = vweird.f32 %v2526
    %vm2533 = vmor %vm2531, %vm2532
    %v2534 = vsel %vm2533, %v2526, %v2530
    %v2535 = vand.u32 2147483647, %v1542
    %vm2536 = vcmp.eq.f32.partialorder %v2535, 8.507059e+37
    %v2537 = vand.u32 %v1542, 2147483648
    %v2538 = vor.u32 1.1754944e-38, %v2537
    %v2539 = vsel %vm2536, %v2538, %v2534
    %v2540 = vmul.f32 %v1799, %v2539
    %v2541 = vrcp.pop %v1544
    %v2542 = vmul.f32 %v1544, %v2541
    %v2543 = vsub.f32 1.0, %v2542
    %v2544 = vmul.f32 %v2541, %v2543
    %v2545 = vadd.f32 %v2541, %v2544
    %vm2546 = vweird.f32 %v1544
    %vm2547 = vweird.f32 %v2541
    %vm2548 = vmor %vm2546, %vm2547
    %v2549 = vsel %vm2548, %v2541, %v2545
    %v2550 = vand.u32 2147483647, %v1544
    %vm2551 = vcmp.eq.f32.partialorder %v2550, 8.507059e+37
    %v2552 = vand.u32 %v1544, 2147483648
    %v2553 = vor.u32 1.1754944e-38, %v2552
    %v2554 = vsel %vm2551, %v2553, %v2549
    %v2555 = vmul.f32 %v1819, %v2554
    %v2556 = vrcp.pop %v1546
    %v2557 = vmul.f32 %v1546, %v2556
    %v2558 = vsub.f32 1.0, %v2557
    %v2559 = vmul.f32 %v2556, %v2558
    %v2560 = vadd.f32 %v2556, %v2559
    %vm2561 = vweird.f32 %v1546
    %vm2562 = vweird.f32 %v2556
    %vm2563 = vmor %vm2561, %vm2562
    %v2564 = vsel %vm2563, %v2556, %v2560
    %v2565 = vand.u32 2147483647, %v1546
    %vm2566 = vcmp.eq.f32.partialorder %v2565, 8.507059e+37
    %v2567 = vand.u32 %v1546, 2147483648
    %v2568 = vor.u32 1.1754944e-38, %v2567
    %v2569 = vsel %vm2566, %v2568, %v2564
    %v2570 = vmul.f32 %v1822, %v2569
    %v2571 = vrcp.pop %v1548
    %v2572 = vmul.f32 %v1548, %v2571
    %v2573 = vsub.f32 1.0, %v2572
    %v2574 = vmul.f32 %v2571, %v2573
    %v2575 = vadd.f32 %v2571, %v2574
    %vm2576 = vweird.f32 %v1548
    %vm2577 = vweird.f32 %v2571
    %vm2578 = vmor %vm2576, %vm2577
    %v2579 = vsel %vm2578, %v2571, %v2575
    %v2580 = vand.u32 2147483647, %v1548
    %vm2581 = vcmp.eq.f32.partialorder %v2580, 8.507059e+37
    %v2582 = vand.u32 %v1548, 2147483648
    %v2583 = vor.u32 1.1754944e-38, %v2582
    %v2584 = vsel %vm2581, %v2583, %v2579
    %v2585 = vmul.f32 %v1825, %v2584
    %v2586 = vrcp.pop %v1550
    %v2587 = vmul.f32 %v1550, %v2586
    %v2588 = vsub.f32 1.0, %v2587
    %v2589 = vmul.f32 %v2586, %v2588
    %v2590 = vadd.f32 %v2586, %v2589
    %vm2591 = vweird.f32 %v1550
    %vm2592 = vweird.f32 %v2586
    %vm2593 = vmor %vm2591, %vm2592
    %v2594 = vsel %vm2593, %v2586, %v2590
    %v2595 = vand.u32 2147483647, %v1550
    %vm2596 = vcmp.eq.f32.partialorder %v2595, 8.507059e+37
    %v2597 = vand.u32 %v1550, 2147483648
    %v2598 = vor.u32 1.1754944e-38, %v2597
    %v2599 = vsel %vm2596, %v2598, %v2594
    %v2600 = vmul.f32 %v1828, %v2599
    %v2601 = vrcp.pop %v1552
    %v2602 = vmul.f32 %v1552, %v2601
    %v2603 = vsub.f32 1.0, %v2602
    %v2604 = vmul.f32 %v2601, %v2603
    %v2605 = vadd.f32 %v2601, %v2604
    %vm2606 = vweird.f32 %v1552
    %vm2607 = vweird.f32 %v2601
    %vm2608 = vmor %vm2606, %vm2607
    %v2609 = vsel %vm2608, %v2601, %v2605
    %v2610 = vand.u32 2147483647, %v1552
    %vm2611 = vcmp.eq.f32.partialorder %v2610, 8.507059e+37
    %v2612 = vand.u32 %v1552, 2147483648
    %v2613 = vor.u32 1.1754944e-38, %v2612
    %v2614 = vsel %vm2611, %v2613, %v2609
    %v2615 = vmul.f32 %v1831, %v2614
    %v2616 = vrcp.pop %v1554
    %v2617 = vmul.f32 %v1554, %v2616
    %v2618 = vsub.f32 1.0, %v2617
    %v2619 = vmul.f32 %v2616, %v2618
    %v2620 = vadd.f32 %v2616, %v2619
    %vm2621 = vweird.f32 %v1554
    %vm2622 = vweird.f32 %v2616
    %vm2623 = vmor %vm2621, %vm2622
    %v2624 = vsel %vm2623, %v2616, %v2620
    %v2625 = vand.u32 2147483647, %v1554
    %vm2626 = vcmp.eq.f32.partialorder %v2625, 8.507059e+37
    %v2627 = vand.u32 %v1554, 2147483648
    %v2628 = vor.u32 1.1754944e-38, %v2627
    %v2629 = vsel %vm2626, %v2628, %v2624
    %v2630 = vmul.f32 %v1834, %v2629
    %v2631 = vrcp.pop %v1556
    %v2632 = vmul.f32 %v1556, %v2631
    %v2633 = vsub.f32 1.0, %v2632
    %v2634 = vmul.f32 %v2631, %v2633
    %v2635 = vadd.f32 %v2631, %v2634
    %vm2636 = vweird.f32 %v1556
    %vm2637 = vweird.f32 %v2631
    %vm2638 = vmor %vm2636, %vm2637
    %v2639 = vsel %vm2638, %v2631, %v2635
    %v2640 = vand.u32 2147483647, %v1556
    %vm2641 = vcmp.eq.f32.partialorder %v2640, 8.507059e+37
    %v2642 = vand.u32 %v1556, 2147483648
    %v2643 = vor.u32 1.1754944e-38, %v2642
    %v2644 = vsel %vm2641, %v2643, %v2639
    %v2645 = vmul.f32 %v1837, %v2644
    %v2646 = vrcp.pop %v1558
    %v2647 = vmul.f32 %v1558, %v2646
    %v2648 = vsub.f32 1.0, %v2647
    %v2649 = vmul.f32 %v2646, %v2648
    %v2650 = vadd.f32 %v2646, %v2649
    %vm2651 = vweird.f32 %v1558
    %vm2652 = vweird.f32 %v2646
    %vm2653 = vmor %vm2651, %vm2652
    %v2654 = vsel %vm2653, %v2646, %v2650
    %v2655 = vand.u32 2147483647, %v1558
    %vm2656 = vcmp.eq.f32.partialorder %v2655, 8.507059e+37
    %v2657 = vand.u32 %v1558, 2147483648
    %v2658 = vor.u32 1.1754944e-38, %v2657
    %v2659 = vsel %vm2656, %v2658, %v2654
    %v2660 = vmul.f32 %v1840, %v2659
    %v2661 = vrcp.pop %v1560
    %v2662 = vmul.f32 %v1560, %v2661
    %v2663 = vsub.f32 1.0, %v2662
    %v2664 = vmul.f32 %v2661, %v2663
    %v2665 = vadd.f32 %v2661, %v2664
    %vm2666 = vweird.f32 %v1560
    %vm2667 = vweird.f32 %v2661
    %vm2668 = vmor %vm2666, %vm2667
    %v2669 = vsel %vm2668, %v2661, %v2665
    %v2670 = vand.u32 2147483647, %v1560
    %vm2671 = vcmp.eq.f32.partialorder %v2670, 8.507059e+37
    %v2672 = vand.u32 %v1560, 2147483648
    %v2673 = vor.u32 1.1754944e-38, %v2672
    %v2674 = vsel %vm2671, %v2673, %v2669
    %v2675 = vmul.f32 %v1843, %v2674
    %v2676 = vrcp.pop %v1562
    %v2677 = vmul.f32 %v1562, %v2676
    %v2678 = vsub.f32 1.0, %v2677
    %v2679 = vmul.f32 %v2676, %v2678
    %v2680 = vadd.f32 %v2676, %v2679
    %vm2681 = vweird.f32 %v1562
    %vm2682 = vweird.f32 %v2676
    %vm2683 = vmor %vm2681, %vm2682
    %v2684 = vsel %vm2683, %v2676, %v2680
    %v2685 = vand.u32 2147483647, %v1562
    %vm2686 = vcmp.eq.f32.partialorder %v2685, 8.507059e+37
    %v2687 = vand.u32 %v1562, 2147483648
    %v2688 = vor.u32 1.1754944e-38, %v2687
    %v2689 = vsel %vm2686, %v2688, %v2684
    %v2690 = vmul.f32 %v1846, %v2689
    %v2691 = vrcp.pop %v1564
    %v2692 = vmul.f32 %v1564, %v2691
    %v2693 = vsub.f32 1.0, %v2692
    %v2694 = vmul.f32 %v2691, %v2693
    %v2695 = vadd.f32 %v2691, %v2694
    %vm2696 = vweird.f32 %v1564
    %vm2697 = vweird.f32 %v2691
    %vm2698 = vmor %vm2696, %vm2697
    %v2699 = vsel %vm2698, %v2691, %v2695
    %v2700 = vand.u32 2147483647, %v1564
    %vm2701 = vcmp.eq.f32.partialorder %v2700, 8.507059e+37
    %v2702 = vand.u32 %v1564, 2147483648
    %v2703 = vor.u32 1.1754944e-38, %v2702
    %v2704 = vsel %vm2701, %v2703, %v2699
    %v2705 = vmul.f32 %v1849, %v2704
    %v2706 = vrcp.pop %v1566
    %v2707 = vmul.f32 %v1566, %v2706
    %v2708 = vsub.f32 1.0, %v2707
    %v2709 = vmul.f32 %v2706, %v2708
    %v2710 = vadd.f32 %v2706, %v2709
    %vm2711 = vweird.f32 %v1566
    %vm2712 = vweird.f32 %v2706
    %vm2713 = vmor %vm2711, %vm2712
    %v2714 = vsel %vm2713, %v2706, %v2710
    %v2715 = vand.u32 2147483647, %v1566
    %vm2716 = vcmp.eq.f32.partialorder %v2715, 8.507059e+37
    %v2717 = vand.u32 %v1566, 2147483648
    %v2718 = vor.u32 1.1754944e-38, %v2717
    %v2719 = vsel %vm2716, %v2718, %v2714
    %v2720 = vmul.f32 %v1852, %v2719
    %v2721 = vrcp.pop %v1568
    %v2722 = vmul.f32 %v1568, %v2721
    %v2723 = vsub.f32 1.0, %v2722
    %v2724 = vmul.f32 %v2721, %v2723
    %v2725 = vadd.f32 %v2721, %v2724
    %vm2726 = vweird.f32 %v1568
    %vm2727 = vweird.f32 %v2721
    %vm2728 = vmor %vm2726, %vm2727
    %v2729 = vsel %vm2728, %v2721, %v2725
    %v2730 = vand.u32 2147483647, %v1568
    %vm2731 = vcmp.eq.f32.partialorder %v2730, 8.507059e+37
    %v2732 = vand.u32 %v1568, 2147483648
    %v2733 = vor.u32 1.1754944e-38, %v2732
    %v2734 = vsel %vm2731, %v2733, %v2729
    %v2735 = vmul.f32 %v1855, %v2734
    %v2736 = vrcp.pop %v1570
    %v2737 = vmul.f32 %v1570, %v2736
    %v2738 = vsub.f32 1.0, %v2737
    %v2739 = vmul.f32 %v2736, %v2738
    %v2740 = vadd.f32 %v2736, %v2739
    %vm2741 = vweird.f32 %v1570
    %vm2742 = vweird.f32 %v2736
    %vm2743 = vmor %vm2741, %vm2742
    %v2744 = vsel %vm2743, %v2736, %v2740
    %v2745 = vand.u32 2147483647, %v1570
    %vm2746 = vcmp.eq.f32.partialorder %v2745, 8.507059e+37
    %v2747 = vand.u32 %v1570, 2147483648
    %v2748 = vor.u32 1.1754944e-38, %v2747
    %v2749 = vsel %vm2746, %v2748, %v2744
    %v2750 = vmul.f32 %v1858, %v2749
    %v2751 = vrcp.pop %v1572
    %v2752 = vmul.f32 %v1572, %v2751
    %v2753 = vsub.f32 1.0, %v2752
    %v2754 = vmul.f32 %v2751, %v2753
    %v2755 = vadd.f32 %v2751, %v2754
    %vm2756 = vweird.f32 %v1572
    %vm2757 = vweird.f32 %v2751
    %vm2758 = vmor %vm2756, %vm2757
    %v2759 = vsel %vm2758, %v2751, %v2755
    %v2760 = vand.u32 2147483647, %v1572
    %vm2761 = vcmp.eq.f32.partialorder %v2760, 8.507059e+37
    %v2762 = vand.u32 %v1572, 2147483648
    %v2763 = vor.u32 1.1754944e-38, %v2762
    %v2764 = vsel %vm2761, %v2763, %v2759
    %v2765 = vmul.f32 %v1861, %v2764
    %v2766 = vrcp.pop %v1574
    %v2767 = vmul.f32 %v1574, %v2766
    %v2768 = vsub.f32 1.0, %v2767
    %v2769 = vmul.f32 %v2766, %v2768
    %v2770 = vadd.f32 %v2766, %v2769
    %vm2771 = vweird.f32 %v1574
    %vm2772 = vweird.f32 %v2766
    %vm2773 = vmor %vm2771, %vm2772
    %v2774 = vsel %vm2773, %v2766, %v2770
    %v2775 = vand.u32 2147483647, %v1574
    %vm2776 = vcmp.eq.f32.partialorder %v2775, 8.507059e+37
    %v2777 = vand.u32 %v1574, 2147483648
    %v2778 = vor.u32 1.1754944e-38, %v2777
    %v2779 = vsel %vm2776, %v2778, %v2774
    %v2780 = vmul.f32 %v1864, %v2779
    %v2781 = vrcp.pop %v1576
    %v2782 = vmul.f32 %v1576, %v2781
    %v2783 = vsub.f32 1.0, %v2782
    %v2784 = vmul.f32 %v2781, %v2783
    %v2785 = vadd.f32 %v2781, %v2784
    %vm2786 = vweird.f32 %v1576
    %vm2787 = vweird.f32 %v2781
    %vm2788 = vmor %vm2786, %vm2787
    %v2789 = vsel %vm2788, %v2781, %v2785
    %v2790 = vand.u32 2147483647, %v1576
    %vm2791 = vcmp.eq.f32.partialorder %v2790, 8.507059e+37
    %v2792 = vand.u32 %v1576, 2147483648
    %v2793 = vor.u32 1.1754944e-38, %v2792
    %v2794 = vsel %vm2791, %v2793, %v2789
    %v2795 = vmul.f32 %v1884, %v2794
    %v2796 = vrcp.pop %v1578
    %v2797 = vmul.f32 %v1578, %v2796
    %v2798 = vsub.f32 1.0, %v2797
    %v2799 = vmul.f32 %v2796, %v2798
    %v2800 = vadd.f32 %v2796, %v2799
    %vm2801 = vweird.f32 %v1578
    %vm2802 = vweird.f32 %v2796
    %vm2803 = vmor %vm2801, %vm2802
    %v2804 = vsel %vm2803, %v2796, %v2800
    %v2805 = vand.u32 2147483647, %v1578
    %vm2806 = vcmp.eq.f32.partialorder %v2805, 8.507059e+37
    %v2807 = vand.u32 %v1578, 2147483648
    %v2808 = vor.u32 1.1754944e-38, %v2807
    %v2809 = vsel %vm2806, %v2808, %v2804
    %v2810 = vmul.f32 %v1887, %v2809
    %v2811 = vrcp.pop %v1580
    %v2812 = vmul.f32 %v1580, %v2811
    %v2813 = vsub.f32 1.0, %v2812
    %v2814 = vmul.f32 %v2811, %v2813
    %v2815 = vadd.f32 %v2811, %v2814
    %vm2816 = vweird.f32 %v1580
    %vm2817 = vweird.f32 %v2811
    %vm2818 = vmor %vm2816, %vm2817
    %v2819 = vsel %vm2818, %v2811, %v2815
    %v2820 = vand.u32 2147483647, %v1580
    %vm2821 = vcmp.eq.f32.partialorder %v2820, 8.507059e+37
    %v2822 = vand.u32 %v1580, 2147483648
    %v2823 = vor.u32 1.1754944e-38, %v2822
    %v2824 = vsel %vm2821, %v2823, %v2819
    %v2825 = vmul.f32 %v1890, %v2824
    %v2826 = vrcp.pop %v1582
    %v2827 = vmul.f32 %v1582, %v2826
    %v2828 = vsub.f32 1.0, %v2827
    %v2829 = vmul.f32 %v2826, %v2828
    %v2830 = vadd.f32 %v2826, %v2829
    %vm2831 = vweird.f32 %v1582
    %vm2832 = vweird.f32 %v2826
    %vm2833 = vmor %vm2831, %vm2832
    %v2834 = vsel %vm2833, %v2826, %v2830
    %v2835 = vand.u32 2147483647, %v1582
    %vm2836 = vcmp.eq.f32.partialorder %v2835, 8.507059e+37
    %v2837 = vand.u32 %v1582, 2147483648
    %v2838 = vor.u32 1.1754944e-38, %v2837
    %v2839 = vsel %vm2836, %v2838, %v2834
    %v2840 = vmul.f32 %v1893, %v2839
    %v2841 = vrcp.pop %v1584
    %v2842 = vmul.f32 %v1584, %v2841
    %v2843 = vsub.f32 1.0, %v2842
    %v2844 = vmul.f32 %v2841, %v2843
    %v2845 = vadd.f32 %v2841, %v2844
    %vm2846 = vweird.f32 %v1584
    %vm2847 = vweird.f32 %v2841
    %vm2848 = vmor %vm2846, %vm2847
    %v2849 = vsel %vm2848, %v2841, %v2845
    %v2850 = vand.u32 2147483647, %v1584
    %vm2851 = vcmp.eq.f32.partialorder %v2850, 8.507059e+37
    %v2852 = vand.u32 %v1584, 2147483648
    %v2853 = vor.u32 1.1754944e-38, %v2852
    %v2854 = vsel %vm2851, %v2853, %v2849
    %v2855 = vmul.f32 %v1896, %v2854
    %v2856 = vrcp.pop %v1586
    %v2857 = vmul.f32 %v1586, %v2856
    %v2858 = vsub.f32 1.0, %v2857
    %v2859 = vmul.f32 %v2856, %v2858
    %v2860 = vadd.f32 %v2856, %v2859
    %vm2861 = vweird.f32 %v1586
    %vm2862 = vweird.f32 %v2856
    %vm2863 = vmor %vm2861, %vm2862
    %v2864 = vsel %vm2863, %v2856, %v2860
    %v2865 = vand.u32 2147483647, %v1586
    %vm2866 = vcmp.eq.f32.partialorder %v2865, 8.507059e+37
    %v2867 = vand.u32 %v1586, 2147483648
    %v2868 = vor.u32 1.1754944e-38, %v2867
    %v2869 = vsel %vm2866, %v2868, %v2864
    %v2870 = vmul.f32 %v1899, %v2869
    %v2871 = vrcp.pop %v1588
    %v2872 = vmul.f32 %v1588, %v2871
    %v2873 = vsub.f32 1.0, %v2872
    %v2874 = vmul.f32 %v2871, %v2873
    %v2875 = vadd.f32 %v2871, %v2874
    %vm2876 = vweird.f32 %v1588
    %vm2877 = vweird.f32 %v2871
    %vm2878 = vmor %vm2876, %vm2877
    %v2879 = vsel %vm2878, %v2871, %v2875
    %v2880 = vand.u32 2147483647, %v1588
    %vm2881 = vcmp.eq.f32.partialorder %v2880, 8.507059e+37
    %v2882 = vand.u32 %v1588, 2147483648
    %v2883 = vor.u32 1.1754944e-38, %v2882
    %v2884 = vsel %vm2881, %v2883, %v2879
    %v2885 = vmul.f32 %v1902, %v2884
    %v2886 = vrcp.pop %v1590
    %v2887 = vmul.f32 %v1590, %v2886
    %v2888 = vsub.f32 1.0, %v2887
    %v2889 = vmul.f32 %v2886, %v2888
    %v2890 = vadd.f32 %v2886, %v2889
    %vm2891 = vweird.f32 %v1590
    %vm2892 = vweird.f32 %v2886
    %vm2893 = vmor %vm2891, %vm2892
    %v2894 = vsel %vm2893, %v2886, %v2890
    %v2895 = vand.u32 2147483647, %v1590
    %vm2896 = vcmp.eq.f32.partialorder %v2895, 8.507059e+37
    %v2897 = vand.u32 %v1590, 2147483648
    %v2898 = vor.u32 1.1754944e-38, %v2897
    %v2899 = vsel %vm2896, %v2898, %v2894
    %v2900 = vmul.f32 %v1905, %v2899
    %v2901 = vrcp.pop %v1592
    %v2902 = vmul.f32 %v1592, %v2901
    %v2903 = vsub.f32 1.0, %v2902
    %v2904 = vmul.f32 %v2901, %v2903
    %v2905 = vadd.f32 %v2901, %v2904
    %vm2906 = vweird.f32 %v1592
    %vm2907 = vweird.f32 %v2901
    %vm2908 = vmor %vm2906, %vm2907
    %v2909 = vsel %vm2908, %v2901, %v2905
    %v2910 = vand.u32 2147483647, %v1592
    %vm2911 = vcmp.eq.f32.partialorder %v2910, 8.507059e+37
    %v2912 = vand.u32 %v1592, 2147483648
    %v2913 = vor.u32 1.1754944e-38, %v2912
    %v2914 = vsel %vm2911, %v2913, %v2909
    %v2915 = vmul.f32 %v1908, %v2914
    %v2916 = vrcp.pop %v1594
    %v2917 = vmul.f32 %v1594, %v2916
    %v2918 = vsub.f32 1.0, %v2917
    %v2919 = vmul.f32 %v2916, %v2918
    %v2920 = vadd.f32 %v2916, %v2919
    %vm2921 = vweird.f32 %v1594
    %vm2922 = vweird.f32 %v2916
    %vm2923 = vmor %vm2921, %vm2922
    %v2924 = vsel %vm2923, %v2916, %v2920
    %v2925 = vand.u32 2147483647, %v1594
    %vm2926 = vcmp.eq.f32.partialorder %v2925, 8.507059e+37
    %v2927 = vand.u32 %v1594, 2147483648
    %v2928 = vor.u32 1.1754944e-38, %v2927
    %v2929 = vsel %vm2926, %v2928, %v2924
    %v2930 = vmul.f32 %v1911, %v2929
    %v2931 = vrcp.pop %v1596
    %v2932 = vmul.f32 %v1596, %v2931
    %v2933 = vsub.f32 1.0, %v2932
    %v2934 = vmul.f32 %v2931, %v2933
    %v2935 = vadd.f32 %v2931, %v2934
    %vm2936 = vweird.f32 %v1596
    %vm2937 = vweird.f32 %v2931
    %vm2938 = vmor %vm2936, %vm2937
    %v2939 = vsel %vm2938, %v2931, %v2935
    %v2940 = vand.u32 2147483647, %v1596
    %vm2941 = vcmp.eq.f32.partialorder %v2940, 8.507059e+37
    %v2942 = vand.u32 %v1596, 2147483648
    %v2943 = vor.u32 1.1754944e-38, %v2942
    %v2944 = vsel %vm2941, %v2943, %v2939
    %v2945 = vmul.f32 %v1914, %v2944
    %v2946 = vrcp.pop %v1598
    %v2947 = vmul.f32 %v1598, %v2946
    %v2948 = vsub.f32 1.0, %v2947
    %v2949 = vmul.f32 %v2946, %v2948
    %v2950 = vadd.f32 %v2946, %v2949
    %vm2951 = vweird.f32 %v1598
    %vm2952 = vweird.f32 %v2946
    %vm2953 = vmor %vm2951, %vm2952
    %v2954 = vsel %vm2953, %v2946, %v2950
    %v2955 = vand.u32 2147483647, %v1598
    %vm2956 = vcmp.eq.f32.partialorder %v2955, 8.507059e+37
    %v2957 = vand.u32 %v1598, 2147483648
    %v2958 = vor.u32 1.1754944e-38, %v2957
    %v2959 = vsel %vm2956, %v2958, %v2954
    %v2960 = vmul.f32 %v1917, %v2959
    %v2961 = vrcp.pop %v1600
    %v2962 = vmul.f32 %v1600, %v2961
    %v2963 = vsub.f32 1.0, %v2962
    %v2964 = vmul.f32 %v2961, %v2963
    %v2965 = vadd.f32 %v2961, %v2964
    %vm2966 = vweird.f32 %v1600
    %vm2967 = vweird.f32 %v2961
    %vm2968 = vmor %vm2966, %vm2967
    %v2969 = vsel %vm2968, %v2961, %v2965
    %v2970 = vand.u32 2147483647, %v1600
    %vm2971 = vcmp.eq.f32.partialorder %v2970, 8.507059e+37
    %v2972 = vand.u32 %v1600, 2147483648
    %v2973 = vor.u32 1.1754944e-38, %v2972
    %v2974 = vsel %vm2971, %v2973, %v2969
    %v2975 = vmul.f32 %v1920, %v2974
    %v2976 = vrcp.pop %v1602
    %v2977 = vmul.f32 %v1602, %v2976
    %v2978 = vsub.f32 1.0, %v2977
    %v2979 = vmul.f32 %v2976, %v2978
    %v2980 = vadd.f32 %v2976, %v2979
    %vm2981 = vweird.f32 %v1602
    %vm2982 = vweird.f32 %v2976
    %vm2983 = vmor %vm2981, %vm2982
    %v2984 = vsel %vm2983, %v2976, %v2980
    %v2985 = vand.u32 2147483647, %v1602
    %vm2986 = vcmp.eq.f32.partialorder %v2985, 8.507059e+37
    %v2987 = vand.u32 %v1602, 2147483648
    %v2988 = vor.u32 1.1754944e-38, %v2987
    %v2989 = vsel %vm2986, %v2988, %v2984
    %v2990 = vmul.f32 %v1923, %v2989
    %v2991 = vrcp.pop %v1604
    %v2992 = vmul.f32 %v1604, %v2991
    %v2993 = vsub.f32 1.0, %v2992
    %v2994 = vmul.f32 %v2991, %v2993
    %v2995 = vadd.f32 %v2991, %v2994
    %vm2996 = vweird.f32 %v1604
    %vm2997 = vweird.f32 %v2991
    %vm2998 = vmor %vm2996, %vm2997
    %v2999 = vsel %vm2998, %v2991, %v2995
    %v3000 = vand.u32 2147483647, %v1604
    %vm3001 = vcmp.eq.f32.partialorder %v3000, 8.507059e+37
    %v3002 = vand.u32 %v1604, 2147483648
    %v3003 = vor.u32 1.1754944e-38, %v3002
    %v3004 = vsel %vm3001, %v3003, %v2999
    %v3005 = vmul.f32 %v1926, %v3004
    %v3006 = vrcp.pop %v1606
    %v3007 = vmul.f32 %v1606, %v3006
    %v3008 = vsub.f32 1.0, %v3007
    %v3009 = vmul.f32 %v3006, %v3008
    %v3010 = vadd.f32 %v3006, %v3009
    %vm3011 = vweird.f32 %v1606
    %vm3012 = vweird.f32 %v3006
    %vm3013 = vmor %vm3011, %vm3012
    %v3014 = vsel %vm3013, %v3006, %v3010
    %v3015 = vand.u32 2147483647, %v1606
    %vm3016 = vcmp.eq.f32.partialorder %v3015, 8.507059e+37
    %v3017 = vand.u32 %v1606, 2147483648
    %v3018 = vor.u32 1.1754944e-38, %v3017
    %v3019 = vsel %vm3016, %v3018, %v3014
    %v3020 = vmul.f32 %v1929, %v3019
    %v3021 = vrcp.pop %v1608
    %v3022 = vmul.f32 %v1608, %v3021
    %v3023 = vsub.f32 1.0, %v3022
    %v3024 = vmul.f32 %v3021, %v3023
    %v3025 = vadd.f32 %v3021, %v3024
    %vm3026 = vweird.f32 %v1608
    %vm3027 = vweird.f32 %v3021
    %vm3028 = vmor %vm3026, %vm3027
    %v3029 = vsel %vm3028, %v3021, %v3025
    %v3030 = vand.u32 2147483647, %v1608
    %vm3031 = vcmp.eq.f32.partialorder %v3030, 8.507059e+37
    %v3032 = vand.u32 %v1608, 2147483648
    %v3033 = vor.u32 1.1754944e-38, %v3032
    %v3034 = vsel %vm3031, %v3033, %v3029
    %v3035 = vmul.f32 %v1949, %v3034
    %v3036 = vrcp.pop %v1610
    %v3037 = vmul.f32 %v1610, %v3036
    %v3038 = vsub.f32 1.0, %v3037
    %v3039 = vmul.f32 %v3036, %v3038
    %v3040 = vadd.f32 %v3036, %v3039
    %vm3041 = vweird.f32 %v1610
    %vm3042 = vweird.f32 %v3036
    %vm3043 = vmor %vm3041, %vm3042
    %v3044 = vsel %vm3043, %v3036, %v3040
    %v3045 = vand.u32 2147483647, %v1610
    %vm3046 = vcmp.eq.f32.partialorder %v3045, 8.507059e+37
    %v3047 = vand.u32 %v1610, 2147483648
    %v3048 = vor.u32 1.1754944e-38, %v3047
    %v3049 = vsel %vm3046, %v3048, %v3044
    %v3050 = vmul.f32 %v1952, %v3049
    %v3051 = vrcp.pop %v1612
    %v3052 = vmul.f32 %v1612, %v3051
    %v3053 = vsub.f32 1.0, %v3052
    %v3054 = vmul.f32 %v3051, %v3053
    %v3055 = vadd.f32 %v3051, %v3054
    %vm3056 = vweird.f32 %v1612
    %vm3057 = vweird.f32 %v3051
    %vm3058 = vmor %vm3056, %vm3057
    %v3059 = vsel %vm3058, %v3051, %v3055
    %v3060 = vand.u32 2147483647, %v1612
    %vm3061 = vcmp.eq.f32.partialorder %v3060, 8.507059e+37
    %v3062 = vand.u32 %v1612, 2147483648
    %v3063 = vor.u32 1.1754944e-38, %v3062
    %v3064 = vsel %vm3061, %v3063, %v3059
    %v3065 = vmul.f32 %v1955, %v3064
    %v3066 = vrcp.pop %v1614
    %v3067 = vmul.f32 %v1614, %v3066
    %v3068 = vsub.f32 1.0, %v3067
    %v3069 = vmul.f32 %v3066, %v3068
    %v3070 = vadd.f32 %v3066, %v3069
    %vm3071 = vweird.f32 %v1614
    %vm3072 = vweird.f32 %v3066
    %vm3073 = vmor %vm3071, %vm3072
    %v3074 = vsel %vm3073, %v3066, %v3070
    %v3075 = vand.u32 2147483647, %v1614
    %vm3076 = vcmp.eq.f32.partialorder %v3075, 8.507059e+37
    %v3077 = vand.u32 %v1614, 2147483648
    %v3078 = vor.u32 1.1754944e-38, %v3077
    %v3079 = vsel %vm3076, %v3078, %v3074
    %v3080 = vmul.f32 %v1958, %v3079
    %v3081 = vrcp.pop %v1616
    %v3082 = vmul.f32 %v1616, %v3081
    %v3083 = vsub.f32 1.0, %v3082
    %v3084 = vmul.f32 %v3081, %v3083
    %v3085 = vadd.f32 %v3081, %v3084
    %vm3086 = vweird.f32 %v1616
    %vm3087 = vweird.f32 %v3081
    %vm3088 = vmor %vm3086, %vm3087
    %v3089 = vsel %vm3088, %v3081, %v3085
    %v3090 = vand.u32 2147483647, %v1616
    %vm3091 = vcmp.eq.f32.partialorder %v3090, 8.507059e+37
    %v3092 = vand.u32 %v1616, 2147483648
    %v3093 = vor.u32 1.1754944e-38, %v3092
    %v3094 = vsel %vm3091, %v3093, %v3089
    %v3095 = vmul.f32 %v1961, %v3094
    %v3096 = vrcp.pop %v1618
    %v3097 = vmul.f32 %v1618, %v3096
    %v3098 = vsub.f32 1.0, %v3097
    %v3099 = vmul.f32 %v3096, %v3098
    %v3100 = vadd.f32 %v3096, %v3099
    %vm3101 = vweird.f32 %v1618
    %vm3102 = vweird.f32 %v3096
    %vm3103 = vmor %vm3101, %vm3102
    %v3104 = vsel %vm3103, %v3096, %v3100
    %v3105 = vand.u32 2147483647, %v1618
    %vm3106 = vcmp.eq.f32.partialorder %v3105, 8.507059e+37
    %v3107 = vand.u32 %v1618, 2147483648
    %v3108 = vor.u32 1.1754944e-38, %v3107
    %v3109 = vsel %vm3106, %v3108, %v3104
    %v3110 = vmul.f32 %v1964, %v3109
    %v3111 = vrcp.pop %v1620
    %v3112 = vmul.f32 %v1620, %v3111
    %v3113 = vsub.f32 1.0, %v3112
    %v3114 = vmul.f32 %v3111, %v3113
    %v3115 = vadd.f32 %v3111, %v3114
    %vm3116 = vweird.f32 %v1620
    %vm3117 = vweird.f32 %v3111
    %vm3118 = vmor %vm3116, %vm3117
    %v3119 = vsel %vm3118, %v3111, %v3115
    %v3120 = vand.u32 2147483647, %v1620
    %vm3121 = vcmp.eq.f32.partialorder %v3120, 8.507059e+37
    %v3122 = vand.u32 %v1620, 2147483648
    %v3123 = vor.u32 1.1754944e-38, %v3122
    %v3124 = vsel %vm3121, %v3123, %v3119
    %v3125 = vmul.f32 %v1967, %v3124
    %v3126 = vrcp.pop %v1622
    %v3127 = vmul.f32 %v1622, %v3126
    %v3128 = vsub.f32 1.0, %v3127
    %v3129 = vmul.f32 %v3126, %v3128
    %v3130 = vadd.f32 %v3126, %v3129
    %vm3131 = vweird.f32 %v1622
    %vm3132 = vweird.f32 %v3126
    %vm3133 = vmor %vm3131, %vm3132
    %v3134 = vsel %vm3133, %v3126, %v3130
    %v3135 = vand.u32 2147483647, %v1622
    %vm3136 = vcmp.eq.f32.partialorder %v3135, 8.507059e+37
    %v3137 = vand.u32 %v1622, 2147483648
    %v3138 = vor.u32 1.1754944e-38, %v3137
    %v3139 = vsel %vm3136, %v3138, %v3134
    %v3140 = vmul.f32 %v1970, %v3139
    %v3141 = vrcp.pop %v1624
    %v3142 = vmul.f32 %v1624, %v3141
    %v3143 = vsub.f32 1.0, %v3142
    %v3144 = vmul.f32 %v3141, %v3143
    %v3145 = vadd.f32 %v3141, %v3144
    %vm3146 = vweird.f32 %v1624
    %vm3147 = vweird.f32 %v3141
    %vm3148 = vmor %vm3146, %vm3147
    %v3149 = vsel %vm3148, %v3141, %v3145
    %v3150 = vand.u32 2147483647, %v1624
    %vm3151 = vcmp.eq.f32.partialorder %v3150, 8.507059e+37
    %v3152 = vand.u32 %v1624, 2147483648
    %v3153 = vor.u32 1.1754944e-38, %v3152
    %v3154 = vsel %vm3151, %v3153, %v3149
    %v3155 = vmul.f32 %v1973, %v3154
    %v3156 = vrcp.pop %v1626
    %v3157 = vmul.f32 %v1626, %v3156
    %v3158 = vsub.f32 1.0, %v3157
    %v3159 = vmul.f32 %v3156, %v3158
    %v3160 = vadd.f32 %v3156, %v3159
    %vm3161 = vweird.f32 %v1626
    %vm3162 = vweird.f32 %v3156
    %vm3163 = vmor %vm3161, %vm3162
    %v3164 = vsel %vm3163, %v3156, %v3160
    %v3165 = vand.u32 2147483647, %v1626
    %vm3166 = vcmp.eq.f32.partialorder %v3165, 8.507059e+37
    %v3167 = vand.u32 %v1626, 2147483648
    %v3168 = vor.u32 1.1754944e-38, %v3167
    %v3169 = vsel %vm3166, %v3168, %v3164
    %v3170 = vmul.f32 %v1976, %v3169
    %v3171 = vrcp.pop %v1628
    %v3172 = vmul.f32 %v1628, %v3171
    %v3173 = vsub.f32 1.0, %v3172
    %v3174 = vmul.f32 %v3171, %v3173
    %v3175 = vadd.f32 %v3171, %v3174
    %vm3176 = vweird.f32 %v1628
    %vm3177 = vweird.f32 %v3171
    %vm3178 = vmor %vm3176, %vm3177
    %v3179 = vsel %vm3178, %v3171, %v3175
    %v3180 = vand.u32 2147483647, %v1628
    %vm3181 = vcmp.eq.f32.partialorder %v3180, 8.507059e+37
    %v3182 = vand.u32 %v1628, 2147483648
    %v3183 = vor.u32 1.1754944e-38, %v3182
    %v3184 = vsel %vm3181, %v3183, %v3179
    %v3185 = vmul.f32 %v1979, %v3184
    %v3186 = vrcp.pop %v1630
    %v3187 = vmul.f32 %v1630, %v3186
    %v3188 = vsub.f32 1.0, %v3187
    %v3189 = vmul.f32 %v3186, %v3188
    %v3190 = vadd.f32 %v3186, %v3189
    %vm3191 = vweird.f32 %v1630
    %vm3192 = vweird.f32 %v3186
    %vm3193 = vmor %vm3191, %vm3192
    %v3194 = vsel %vm3193, %v3186, %v3190
    %v3195 = vand.u32 2147483647, %v1630
    %vm3196 = vcmp.eq.f32.partialorder %v3195, 8.507059e+37
    %v3197 = vand.u32 %v1630, 2147483648
    %v3198 = vor.u32 1.1754944e-38, %v3197
    %v3199 = vsel %vm3196, %v3198, %v3194
    %v3200 = vmul.f32 %v1982, %v3199
    %v3201 = vrcp.pop %v1632
    %v3202 = vmul.f32 %v1632, %v3201
    %v3203 = vsub.f32 1.0, %v3202
    %v3204 = vmul.f32 %v3201, %v3203
    %v3205 = vadd.f32 %v3201, %v3204
    %vm3206 = vweird.f32 %v1632
    %vm3207 = vweird.f32 %v3201
    %vm3208 = vmor %vm3206, %vm3207
    %v3209 = vsel %vm3208, %v3201, %v3205
    %v3210 = vand.u32 2147483647, %v1632
    %vm3211 = vcmp.eq.f32.partialorder %v3210, 8.507059e+37
    %v3212 = vand.u32 %v1632, 2147483648
    %v3213 = vor.u32 1.1754944e-38, %v3212
    %v3214 = vsel %vm3211, %v3213, %v3209
    %v3215 = vmul.f32 %v1985, %v3214
    %v3216 = vrcp.pop %v1634
    %v3217 = vmul.f32 %v1634, %v3216
    %v3218 = vsub.f32 1.0, %v3217
    %v3219 = vmul.f32 %v3216, %v3218
    %v3220 = vadd.f32 %v3216, %v3219
    %vm3221 = vweird.f32 %v1634
    %vm3222 = vweird.f32 %v3216
    %vm3223 = vmor %vm3221, %vm3222
    %v3224 = vsel %vm3223, %v3216, %v3220
    %v3225 = vand.u32 2147483647, %v1634
    %vm3226 = vcmp.eq.f32.partialorder %v3225, 8.507059e+37
    %v3227 = vand.u32 %v1634, 2147483648
    %v3228 = vor.u32 1.1754944e-38, %v3227
    %v3229 = vsel %vm3226, %v3228, %v3224
    %v3230 = vmul.f32 %v1988, %v3229
    %v3231 = vrcp.pop %v1636
    %v3232 = vmul.f32 %v1636, %v3231
    %v3233 = vsub.f32 1.0, %v3232
    %v3234 = vmul.f32 %v3231, %v3233
    %v3235 = vadd.f32 %v3231, %v3234
    %vm3236 = vweird.f32 %v1636
    %vm3237 = vweird.f32 %v3231
    %vm3238 = vmor %vm3236, %vm3237
    %v3239 = vsel %vm3238, %v3231, %v3235
    %v3240 = vand.u32 2147483647, %v1636
    %vm3241 = vcmp.eq.f32.partialorder %v3240, 8.507059e+37
    %v3242 = vand.u32 %v1636, 2147483648
    %v3243 = vor.u32 1.1754944e-38, %v3242
    %v3244 = vsel %vm3241, %v3243, %v3239
    %v3245 = vmul.f32 %v1991, %v3244
    %v3246 = vrcp.pop %v1638
    %v3247 = vmul.f32 %v1638, %v3246
    %v3248 = vsub.f32 1.0, %v3247
    %v3249 = vmul.f32 %v3246, %v3248
    %v3250 = vadd.f32 %v3246, %v3249
    %vm3251 = vweird.f32 %v1638
    %vm3252 = vweird.f32 %v3246
    %vm3253 = vmor %vm3251, %vm3252
    %v3254 = vsel %vm3253, %v3246, %v3250
    %v3255 = vand.u32 2147483647, %v1638
    %vm3256 = vcmp.eq.f32.partialorder %v3255, 8.507059e+37
    %v3257 = vand.u32 %v1638, 2147483648
    %v3258 = vor.u32 1.1754944e-38, %v3257
    %v3259 = vsel %vm3256, %v3258, %v3254
    %v3260 = vmul.f32 %v1994, %v3259
    %v3261 = vrcp.pop %v1640
    %v3262 = vmul.f32 %v1640, %v3261
    %v3263 = vsub.f32 1.0, %v3262
    %v3264 = vmul.f32 %v3261, %v3263
    %v3265 = vadd.f32 %v3261, %v3264
    %vm3266 = vweird.f32 %v1640
    %vm3267 = vweird.f32 %v3261
    %vm3268 = vmor %vm3266, %vm3267
    %v3269 = vsel %vm3268, %v3261, %v3265
    %v3270 = vand.u32 2147483647, %v1640
    %vm3271 = vcmp.eq.f32.partialorder %v3270, 8.507059e+37
    %v3272 = vand.u32 %v1640, 2147483648
    %v3273 = vor.u32 1.1754944e-38, %v3272
    %v3274 = vsel %vm3271, %v3273, %v3269
    %v3275 = vmul.f32 %v2014, %v3274
    %v3276 = vrcp.pop %v1642
    %v3277 = vmul.f32 %v1642, %v3276
    %v3278 = vsub.f32 1.0, %v3277
    %v3279 = vmul.f32 %v3276, %v3278
    %v3280 = vadd.f32 %v3276, %v3279
    %vm3281 = vweird.f32 %v1642
    %vm3282 = vweird.f32 %v3276
    %vm3283 = vmor %vm3281, %vm3282
    %v3284 = vsel %vm3283, %v3276, %v3280
    %v3285 = vand.u32 2147483647, %v1642
    %vm3286 = vcmp.eq.f32.partialorder %v3285, 8.507059e+37
    %v3287 = vand.u32 %v1642, 2147483648
    %v3288 = vor.u32 1.1754944e-38, %v3287
    %v3289 = vsel %vm3286, %v3288, %v3284
    %v3290 = vmul.f32 %v2017, %v3289
    %v3291 = vrcp.pop %v1644
    %v3292 = vmul.f32 %v1644, %v3291
    %v3293 = vsub.f32 1.0, %v3292
    %v3294 = vmul.f32 %v3291, %v3293
    %v3295 = vadd.f32 %v3291, %v3294
    %vm3296 = vweird.f32 %v1644
    %vm3297 = vweird.f32 %v3291
    %vm3298 = vmor %vm3296, %vm3297
    %v3299 = vsel %vm3298, %v3291, %v3295
    %v3300 = vand.u32 2147483647, %v1644
    %vm3301 = vcmp.eq.f32.partialorder %v3300, 8.507059e+37
    %v3302 = vand.u32 %v1644, 2147483648
    %v3303 = vor.u32 1.1754944e-38, %v3302
    %v3304 = vsel %vm3301, %v3303, %v3299
    %v3305 = vmul.f32 %v2020, %v3304
    %v3306 = vrcp.pop %v1646
    %v3307 = vmul.f32 %v1646, %v3306
    %v3308 = vsub.f32 1.0, %v3307
    %v3309 = vmul.f32 %v3306, %v3308
    %v3310 = vadd.f32 %v3306, %v3309
    %vm3311 = vweird.f32 %v1646
    %vm3312 = vweird.f32 %v3306
    %vm3313 = vmor %vm3311, %vm3312
    %v3314 = vsel %vm3313, %v3306, %v3310
    %v3315 = vand.u32 2147483647, %v1646
    %vm3316 = vcmp.eq.f32.partialorder %v3315, 8.507059e+37
    %v3317 = vand.u32 %v1646, 2147483648
    %v3318 = vor.u32 1.1754944e-38, %v3317
    %v3319 = vsel %vm3316, %v3318, %v3314
    %v3320 = vmul.f32 %v2023, %v3319
    %v3321 = vrcp.pop %v1648
    %v3322 = vmul.f32 %v1648, %v3321
    %v3323 = vsub.f32 1.0, %v3322
    %v3324 = vmul.f32 %v3321, %v3323
    %v3325 = vadd.f32 %v3321, %v3324
    %vm3326 = vweird.f32 %v1648
    %vm3327 = vweird.f32 %v3321
    %vm3328 = vmor %vm3326, %vm3327
    %v3329 = vsel %vm3328, %v3321, %v3325
    %v3330 = vand.u32 2147483647, %v1648
    %vm3331 = vcmp.eq.f32.partialorder %v3330, 8.507059e+37
    %v3332 = vand.u32 %v1648, 2147483648
    %v3333 = vor.u32 1.1754944e-38, %v3332
    %v3334 = vsel %vm3331, %v3333, %v3329
    %v3335 = vmul.f32 %v2026, %v3334
    %v3336 = vrcp.pop %v1650
    %v3337 = vmul.f32 %v1650, %v3336
    %v3338 = vsub.f32 1.0, %v3337
    %v3339 = vmul.f32 %v3336, %v3338
    %v3340 = vadd.f32 %v3336, %v3339
    %vm3341 = vweird.f32 %v1650
    %vm3342 = vweird.f32 %v3336
    %vm3343 = vmor %vm3341, %vm3342
    %v3344 = vsel %vm3343, %v3336, %v3340
    %v3345 = vand.u32 2147483647, %v1650
    %vm3346 = vcmp.eq.f32.partialorder %v3345, 8.507059e+37
    %v3347 = vand.u32 %v1650, 2147483648
    %v3348 = vor.u32 1.1754944e-38, %v3347
    %v3349 = vsel %vm3346, %v3348, %v3344
    %v3350 = vmul.f32 %v2029, %v3349
    %v3351 = vrcp.pop %v1652
    %v3352 = vmul.f32 %v1652, %v3351
    %v3353 = vsub.f32 1.0, %v3352
    %v3354 = vmul.f32 %v3351, %v3353
    %v3355 = vadd.f32 %v3351, %v3354
    %vm3356 = vweird.f32 %v1652
    %vm3357 = vweird.f32 %v3351
    %vm3358 = vmor %vm3356, %vm3357
    %v3359 = vsel %vm3358, %v3351, %v3355
    %v3360 = vand.u32 2147483647, %v1652
    %vm3361 = vcmp.eq.f32.partialorder %v3360, 8.507059e+37
    %v3362 = vand.u32 %v1652, 2147483648
    %v3363 = vor.u32 1.1754944e-38, %v3362
    %v3364 = vsel %vm3361, %v3363, %v3359
    %v3365 = vmul.f32 %v2032, %v3364
    %v3366 = vrcp.pop %v1654
    %v3367 = vmul.f32 %v1654, %v3366
    %v3368 = vsub.f32 1.0, %v3367
    %v3369 = vmul.f32 %v3366, %v3368
    %v3370 = vadd.f32 %v3366, %v3369
    %vm3371 = vweird.f32 %v1654
    %vm3372 = vweird.f32 %v3366
    %vm3373 = vmor %vm3371, %vm3372
    %v3374 = vsel %vm3373, %v3366, %v3370
    %v3375 = vand.u32 2147483647, %v1654
    %vm3376 = vcmp.eq.f32.partialorder %v3375, 8.507059e+37
    %v3377 = vand.u32 %v1654, 2147483648
    %v3378 = vor.u32 1.1754944e-38, %v3377
    %v3379 = vsel %vm3376, %v3378, %v3374
    %v3380 = vmul.f32 %v2035, %v3379
    %v3381 = vrcp.pop %v1656
    %v3382 = vmul.f32 %v1656, %v3381
    %v3383 = vsub.f32 1.0, %v3382
    %v3384 = vmul.f32 %v3381, %v3383
    %v3385 = vadd.f32 %v3381, %v3384
    %vm3386 = vweird.f32 %v1656
    %vm3387 = vweird.f32 %v3381
    %vm3388 = vmor %vm3386, %vm3387
    %v3389 = vsel %vm3388, %v3381, %v3385
    %v3390 = vand.u32 2147483647, %v1656
    %vm3391 = vcmp.eq.f32.partialorder %v3390, 8.507059e+37
    %v3392 = vand.u32 %v1656, 2147483648
    %v3393 = vor.u32 1.1754944e-38, %v3392
    %v3394 = vsel %vm3391, %v3393, %v3389
    %v3395 = vmul.f32 %v2038, %v3394
    %v3396 = vrcp.pop %v1658
    %v3397 = vmul.f32 %v1658, %v3396
    %v3398 = vsub.f32 1.0, %v3397
    %v3399 = vmul.f32 %v3396, %v3398
    %v3400 = vadd.f32 %v3396, %v3399
    %vm3401 = vweird.f32 %v1658
    %vm3402 = vweird.f32 %v3396
    %vm3403 = vmor %vm3401, %vm3402
    %v3404 = vsel %vm3403, %v3396, %v3400
    %v3405 = vand.u32 2147483647, %v1658
    %vm3406 = vcmp.eq.f32.partialorder %v3405, 8.507059e+37
    %v3407 = vand.u32 %v1658, 2147483648
    %v3408 = vor.u32 1.1754944e-38, %v3407
    %v3409 = vsel %vm3406, %v3408, %v3404
    %v3410 = vmul.f32 %v2041, %v3409
    %v3411 = vrcp.pop %v1660
    %v3412 = vmul.f32 %v1660, %v3411
    %v3413 = vsub.f32 1.0, %v3412
    %v3414 = vmul.f32 %v3411, %v3413
    %v3415 = vadd.f32 %v3411, %v3414
    %vm3416 = vweird.f32 %v1660
    %vm3417 = vweird.f32 %v3411
    %vm3418 = vmor %vm3416, %vm3417
    %v3419 = vsel %vm3418, %v3411, %v3415
    %v3420 = vand.u32 2147483647, %v1660
    %vm3421 = vcmp.eq.f32.partialorder %v3420, 8.507059e+37
    %v3422 = vand.u32 %v1660, 2147483648
    %v3423 = vor.u32 1.1754944e-38, %v3422
    %v3424 = vsel %vm3421, %v3423, %v3419
    %v3425 = vmul.f32 %v2044, %v3424
    %v3426 = vrcp.pop %v1662
    %v3427 = vmul.f32 %v1662, %v3426
    %v3428 = vsub.f32 1.0, %v3427
    %v3429 = vmul.f32 %v3426, %v3428
    %v3430 = vadd.f32 %v3426, %v3429
    %vm3431 = vweird.f32 %v1662
    %vm3432 = vweird.f32 %v3426
    %vm3433 = vmor %vm3431, %vm3432
    %v3434 = vsel %vm3433, %v3426, %v3430
    %v3435 = vand.u32 2147483647, %v1662
    %vm3436 = vcmp.eq.f32.partialorder %v3435, 8.507059e+37
    %v3437 = vand.u32 %v1662, 2147483648
    %v3438 = vor.u32 1.1754944e-38, %v3437
    %v3439 = vsel %vm3436, %v3438, %v3434
    %v3440 = vmul.f32 %v2047, %v3439
    %v3441 = vrcp.pop %v1664
    %v3442 = vmul.f32 %v1664, %v3441
    %v3443 = vsub.f32 1.0, %v3442
    %v3444 = vmul.f32 %v3441, %v3443
    %v3445 = vadd.f32 %v3441, %v3444
    %vm3446 = vweird.f32 %v1664
    %vm3447 = vweird.f32 %v3441
    %vm3448 = vmor %vm3446, %vm3447
    %v3449 = vsel %vm3448, %v3441, %v3445
    %v3450 = vand.u32 2147483647, %v1664
    %vm3451 = vcmp.eq.f32.partialorder %v3450, 8.507059e+37
    %v3452 = vand.u32 %v1664, 2147483648
    %v3453 = vor.u32 1.1754944e-38, %v3452
    %v3454 = vsel %vm3451, %v3453, %v3449
    %v3455 = vmul.f32 %v2050, %v3454
    %v3456 = vrcp.pop %v1666
    %v3457 = vmul.f32 %v1666, %v3456
    %v3458 = vsub.f32 1.0, %v3457
    %v3459 = vmul.f32 %v3456, %v3458
    %v3460 = vadd.f32 %v3456, %v3459
    %vm3461 = vweird.f32 %v1666
    %vm3462 = vweird.f32 %v3456
    %vm3463 = vmor %vm3461, %vm3462
    %v3464 = vsel %vm3463, %v3456, %v3460
    %v3465 = vand.u32 2147483647, %v1666
    %vm3466 = vcmp.eq.f32.partialorder %v3465, 8.507059e+37
    %v3467 = vand.u32 %v1666, 2147483648
    %v3468 = vor.u32 1.1754944e-38, %v3467
    %v3469 = vsel %vm3466, %v3468, %v3464
    %v3470 = vmul.f32 %v2053, %v3469
    %v3471 = vrcp.pop %v1668
    %v3472 = vmul.f32 %v1668, %v3471
    %v3473 = vsub.f32 1.0, %v3472
    %v3474 = vmul.f32 %v3471, %v3473
    %v3475 = vadd.f32 %v3471, %v3474
    %vm3476 = vweird.f32 %v1668
    %vm3477 = vweird.f32 %v3471
    %vm3478 = vmor %vm3476, %vm3477
    %v3479 = vsel %vm3478, %v3471, %v3475
    %v3480 = vand.u32 2147483647, %v1668
    %vm3481 = vcmp.eq.f32.partialorder %v3480, 8.507059e+37
    %v3482 = vand.u32 %v1668, 2147483648
    %v3483 = vor.u32 1.1754944e-38, %v3482
    %v3484 = vsel %vm3481, %v3483, %v3479
    %v3485 = vmul.f32 %v2056, %v3484
    %v3486 = vrcp.pop %v1670
    %v3487 = vmul.f32 %v1670, %v3486
    %v3488 = vsub.f32 1.0, %v3487
    %v3489 = vmul.f32 %v3486, %v3488
    %v3490 = vadd.f32 %v3486, %v3489
    %vm3491 = vweird.f32 %v1670
    %vm3492 = vweird.f32 %v3486
    %vm3493 = vmor %vm3491, %vm3492
    %v3494 = vsel %vm3493, %v3486, %v3490
    %v3495 = vand.u32 2147483647, %v1670
    %vm3496 = vcmp.eq.f32.partialorder %v3495, 8.507059e+37
    %v3497 = vand.u32 %v1670, 2147483648
    %v3498 = vor.u32 1.1754944e-38, %v3497
    %v3499 = vsel %vm3496, %v3498, %v3494
    %v3500 = vmul.f32 %v2059, %v3499
    %3501 = vst [vmem:[#allocation8] sm:$0xff] %v2075
    %3502 = vst [vmem:[#allocation8 + $0x8] sm:$0xff] %v2090
    %3503 = vst [vmem:[#allocation8 + $0x10] sm:$0xff] %v2105
    %3504 = vst [vmem:[#allocation8 + $0x18] sm:$0xff] %v2120
    %3505 = vst [vmem:[#allocation8 + $0x20] sm:$0xff] %v2135
    %3506 = vst [vmem:[#allocation8 + $0x28] sm:$0xff] %v2150
    %3507 = vst [vmem:[#allocation8 + $0x30] sm:$0xff] %v2165
    %3508 = vst [vmem:[#allocation8 + $0x38] sm:$0xff] %v2180
    %3509 = vst [vmem:[#allocation8 + $0x40] sm:$0xff] %v2195
    %3510 = vst [vmem:[#allocation8 + $0x48] sm:$0xff] %v2210
    %3511 = vst [vmem:[#allocation8 + $0x50] sm:$0xff] %v2225
    %3512 = vst [vmem:[#allocation8 + $0x58] sm:$0xff] %v2240
    %3513 = vst [vmem:[#allocation8 + $0x60] sm:$0xff] %v2255
    %3514 = vst [vmem:[#allocation8 + $0x68] sm:$0xff] %v2270
    %3515 = vst [vmem:[#allocation8 + $0x70] sm:$0xff] %v2285
    %3516 = vst [vmem:[#allocation8 + $0x78] sm:$0xff] %v2300
    %3517 = vst [vmem:[#allocation8 + $0x80] sm:$0xff] %v2315
    %3518 = vst [vmem:[#allocation8 + $0x88] sm:$0xff] %v2330
    %3519 = vst [vmem:[#allocation8 + $0x90] sm:$0xff] %v2345
    %3520 = vst [vmem:[#allocation8 + $0x98] sm:$0xff] %v2360
    %3521 = vst [vmem:[#allocation8 + $0xa0] sm:$0xff] %v2375
    %3522 = vst [vmem:[#allocation8 + $0xa8] sm:$0xff] %v2390
    %3523 = vst [vmem:[#allocation8 + $0xb0] sm:$0xff] %v2405
    %3524 = vst [vmem:[#allocation8 + $0xb8] sm:$0xff] %v2420
    %3525 = vst [vmem:[#allocation8 + $0xc0] sm:$0xff] %v2435
    %3526 = vst [vmem:[#allocation8 + $0xc8] sm:$0xff] %v2450
    %3527 = vst [vmem:[#allocation8 + $0xd0] sm:$0xff] %v2465
    %3528 = vst [vmem:[#allocation8 + $0xd8] sm:$0xff] %v2480
    %3529 = vst [vmem:[#allocation8 + $0xe0] sm:$0xff] %v2495
    %3530 = vst [vmem:[#allocation8 + $0xe8] sm:$0xff] %v2510
    %3531 = vst [vmem:[#allocation8 + $0xf0] sm:$0xff] %v2525
    %3532 = vst [vmem:[#allocation8 + $0xf8] sm:$0xff] %v2540
    %3533 = vst [vmem:[#allocation8 + $0x100] sm:$0xff] %v2555
    %3534 = vst [vmem:[#allocation8 + $0x108] sm:$0xff] %v2570
    %3535 = vst [vmem:[#allocation8 + $0x110] sm:$0xff] %v2585
    %3536 = vst [vmem:[#allocation8 + $0x118] sm:$0xff] %v2600
    %3537 = vst [vmem:[#allocation8 + $0x120] sm:$0xff] %v2615
    %3538 = vst [vmem:[#allocation8 + $0x128] sm:$0xff] %v2630
    %3539 = vst [vmem:[#allocation8 + $0x130] sm:$0xff] %v2645
    %3540 = vst [vmem:[#allocation8 + $0x138] sm:$0xff] %v2660
    %3541 = vst [vmem:[#allocation8 + $0x140] sm:$0xff] %v2675
    %3542 = vst [vmem:[#allocation8 + $0x148] sm:$0xff] %v2690
    %3543 = vst [vmem:[#allocation8 + $0x150] sm:$0xff] %v2705
    %3544 = vst [vmem:[#allocation8 + $0x158] sm:$0xff] %v2720
    %3545 = vst [vmem:[#allocation8 + $0x160] sm:$0xff] %v2735
    %3546 = vst [vmem:[#allocation8 + $0x168] sm:$0xff] %v2750
    %3547 = vst [vmem:[#allocation8 + $0x170] sm:$0xff] %v2765
    %3548 = vst [vmem:[#allocation8 + $0x178] sm:$0xff] %v2780
    %3549 = vst [vmem:[#allocation8 + $0x180] sm:$0xff] %v2795
    %3550 = vst [vmem:[#allocation8 + $0x188] sm:$0xff] %v2810
    %3551 = vst [vmem:[#allocation8 + $0x190] sm:$0xff] %v2825
    %3552 = vst [vmem:[#allocation8 + $0x198] sm:$0xff] %v2840
    %3553 = vst [vmem:[#allocation8 + $0x1a0] sm:$0xff] %v2855
    %3554 = vst [vmem:[#allocation8 + $0x1a8] sm:$0xff] %v2870
    %3555 = vst [vmem:[#allocation8 + $0x1b0] sm:$0xff] %v2885
    %3556 = vst [vmem:[#allocation8 + $0x1b8] sm:$0xff] %v2900
    %3557 = vst [vmem:[#allocation8 + $0x1c0] sm:$0xff] %v2915
    %3558 = vst [vmem:[#allocation8 + $0x1c8] sm:$0xff] %v2930
    %3559 = vst [vmem:[#allocation8 + $0x1d0] sm:$0xff] %v2945
    %3560 = vst [vmem:[#allocation8 + $0x1d8] sm:$0xff] %v2960
    %3561 = vst [vmem:[#allocation8 + $0x1e0] sm:$0xff] %v2975
    %3562 = vst [vmem:[#allocation8 + $0x1e8] sm:$0xff] %v2990
    %3563 = vst [vmem:[#allocation8 + $0x1f0] sm:$0xff] %v3005
    %3564 = vst [vmem:[#allocation8 + $0x1f8] sm:$0xff] %v3020
    %3565 = vst [vmem:[#allocation8 + $0x200] sm:$0xff] %v3035
    %3566 = vst [vmem:[#allocation8 + $0x208] sm:$0xff] %v3050
    %3567 = vst [vmem:[#allocation8 + $0x210] sm:$0xff] %v3065
    %3568 = vst [vmem:[#allocation8 + $0x218] sm:$0xff] %v3080
    %3569 = vst [vmem:[#allocation8 + $0x220] sm:$0xff] %v3095
    %3570 = vst [vmem:[#allocation8 + $0x228] sm:$0xff] %v3110
    %3571 = vst [vmem:[#allocation8 + $0x230] sm:$0xff] %v3125
    %3572 = vst [vmem:[#allocation8 + $0x238] sm:$0xff] %v3140
    %3573 = vst [vmem:[#allocation8 + $0x240] sm:$0xff] %v3155
    %3574 = vst [vmem:[#allocation8 + $0x248] sm:$0xff] %v3170
    %3575 = vst [vmem:[#allocation8 + $0x250] sm:$0xff] %v3185
    %3576 = vst [vmem:[#allocation8 + $0x258] sm:$0xff] %v3200
    %3577 = vst [vmem:[#allocation8 + $0x260] sm:$0xff] %v3215
    %3578 = vst [vmem:[#allocation8 + $0x268] sm:$0xff] %v3230
    %3579 = vst [vmem:[#allocation8 + $0x270] sm:$0xff] %v3245
    %3580 = vst [vmem:[#allocation8 + $0x278] sm:$0xff] %v3260
    %3581 = vst [vmem:[#allocation8 + $0x280] sm:$0xff] %v3275
    %3582 = vst [vmem:[#allocation8 + $0x288] sm:$0xff] %v3290
    %3583 = vst [vmem:[#allocation8 + $0x290] sm:$0xff] %v3305
    %3584 = vst [vmem:[#allocation8 + $0x298] sm:$0xff] %v3320
    %3585 = vst [vmem:[#allocation8 + $0x2a0] sm:$0xff] %v3335
    %3586 = vst [vmem:[#allocation8 + $0x2a8] sm:$0xff] %v3350
    %3587 = vst [vmem:[#allocation8 + $0x2b0] sm:$0xff] %v3365
    %3588 = vst [vmem:[#allocation8 + $0x2b8] sm:$0xff] %v3380
    %3589 = vst [vmem:[#allocation8 + $0x2c0] sm:$0xff] %v3395
    %3590 = vst [vmem:[#allocation8 + $0x2c8] sm:$0xff] %v3410
    %3591 = vst [vmem:[#allocation8 + $0x2d0] sm:$0xff] %v3425
    %3592 = vst [vmem:[#allocation8 + $0x2d8] sm:$0xff] %v3440
    %3593 = vst [vmem:[#allocation8 + $0x2e0] sm:$0xff] %v3455
    %3594 = vst [vmem:[#allocation8 + $0x2e8] sm:$0xff] %v3470
    %3595 = vst [vmem:[#allocation8 + $0x2f0] sm:$0xff] %v3485
    %3596 = vst [vmem:[#allocation8 + $0x2f8] sm:$0xff] %v3500
    // Predicated region
    $region26: #{tpu_custom_call.1} parent=1 // pred_check
      _
    $region27: #{tpu_custom_call.1} parent=1 // pred_check_branch
      %3598 = sbr.rel (0) target = $region29
    $region28: #{tpu_custom_call.1} parent=1 // pred_region
      %3600 = vsyncadd [#allocation4], 0
      %s3601 = sshll.u32 [#allocation8], 4
      %s3602 = int_to_ptr.vmem [resolvable:$true] %s3601
      %s3603 = sshll.u32 %s3, 4
      %s3604 = int_to_ptr.hbm [resolvable:$true] %s3603
      %3609 = dma.vmem_to_hbm [thread:$0]  %s3602, 12288, %s3604, [#allocation4], 128, 128, 8
    $region29: #{tpu_custom_call.1} parent=1 // pred_fallthru
      _
    // Predicated region
    $region30: #{tpu_custom_call.1} parent=1 // pred_check
      _
    $region31: #{tpu_custom_call.1} parent=1 // pred_check_branch
      %3611 = sbr.rel (0) target = $region33
    $region32: #{tpu_custom_call.1} parent=1 // pred_region
      %3613 = dma.done [#allocation4], 12288
    $region33: #{tpu_custom_call.1} parent=1 // pred_fallthru
      _
    %3614 = vsyncpa [#allocation3], 1
    %3615 = vsyncpa [#allocation6], 1
    %3616 = vsyncpa [#allocation4], 1

</llo_original>
